<compile_context>
chip_gen: v7x
topology: tpu7x:2x2x1
jax: 0.10.0
libtpu: 0.0.40
codegen_flags: <defaults>
</compile_context>

<pallas_src>
import jax
import jax.numpy as jnp
from jax.experimental import pallas as pl
from jax.experimental.pallas import tpu as pltpu

HIDDEN_DIM = 24          # LSTM input size / bidirectional output size
NUM_LAYER = 3
H = HIDDEN_DIM // 2      # per-direction hidden size = 12


def _round_up(n, m):
    return ((n + m - 1) // m) * m


def _cdiv(a, b):
    return -(-a // b)


def _hint8(v):
    # Alignment hint for dynamic sublane starts (no-op on concrete ints).
    return v if isinstance(v, int) else pl.multiple_of(v, 8)


def _gate_sigmoid(x):
    # sigmoid(x) = 0.5*(1 + tanh(x/2)): single EUP pass + VPU scale/add.
    return 0.5 * jnp.tanh(0.5 * x) + 0.5


def _make_kernel(T, BT):
    unroll = True if T <= 16 else 8

    def kernel(x_ref, wih_ref, whh_ref, b_ref, wfc_ref, bfc_ref, out_ref,
               cur_a, cur_b, xproj_ref):
        """One batch tile of the full TGDiscriminator forward pass.

        x_ref   : [T*BT, 48]   doubled input: lanes 0:24 time-major x, 24:48 reversed x
        wih_ref : [3, 48, 96]  fused / row-permuted input->gates weights per layer
        whh_ref : [3, 24, 96]  block-diagonal hidden->gates weights per layer
        b_ref   : [3, 1, 96]   fused gate bias (b_ih + b_hh)
        wfc_ref : [8, 24]      final linear weight in row 0 (rows 1:8 zero pad)
        bfc_ref : [1, 1]       final linear bias
        out_ref : [1, T*BT]    lane-dense sigmoid(fc(bi-lstm(x)))
        cur_a/cur_b/xproj_ref  VMEM scratch (ping-pong layer buffers + projection)
        """
        bufs = (cur_a, cur_b)
        srcs = [x_ref] + [bufs[l % 2] for l in range(NUM_LAYER - 1)]
        dsts = [bufs[l % 2] for l in range(NUM_LAYER)]

        for layer in range(NUM_LAYER):
            src, dst = srcs[layer], dsts[layer]
            last = layer == NUM_LAYER - 1

            # Hoisted input projection for BOTH directions: one big MXU matmul.
            # Backward-direction columns need no reversal because the source
            # buffer carries a time-reversed copy of each direction.
            xproj_ref[...] = (
                jnp.dot(src[...], wih_ref[layer],
                        preferred_element_type=jnp.float32)
                + b_ref[layer])

            whh = whh_ref[layer]                      # [24, 96] block-diagonal

            def step(i, carry, whh=whh, dst=dst, last=last):
                h, c = carry                          # [BT, 24] each (fwd | bwd)
                fwd = _hint8(i * BT)
                rev = _hint8((T - 1 - i) * BT)
                gates = (jnp.dot(h, whh, preferred_element_type=jnp.float32)
                         + xproj_ref[pl.ds(fwd, BT), :])          # [BT, 96]
                # column layout: [i_f, i_b, f_f, f_b, o_f, o_b, g_f, g_b]
                sg = _gate_sigmoid(gates[:, 0:6 * H])             # i, f, o
                gg = jnp.tanh(gates[:, 6 * H:8 * H])              # g
                c_new = sg[:, 2 * H:4 * H] * c + sg[:, 0:2 * H] * gg
                h_new = sg[:, 4 * H:6 * H] * jnp.tanh(c_new)      # [BT, 24]

                if last:
                    # final layer: forward-time-ordered [fwd | bwd] for the fc.
                    dst[pl.ds(fwd, BT), 0:H] = h_new[:, 0:H]
                    dst[pl.ds(rev, BT), H:2 * H] = h_new[:, H:2 * H]
                else:
                    # Two contiguous 24-lane stores (was four 12-lane stores):
                    #   row i     lanes  0:24 <- [h_fwd(i)     | h_bwd(T-1-i)]
                    #   row T-1-i lanes 24:48 <- [h_bwd(T-1-i) | h_fwd(i)    ]
                    dst[pl.ds(fwd, BT), 0:2 * H] = h_new
                    # half-rotation of h_new (swap fwd/bwd lane halves).
                    h_swap = jnp.concatenate(
                        [h_new[:, H:2 * H], h_new[:, 0:H]], axis=-1)
                    dst[pl.ds(rev, BT), 2 * H:4 * H] = h_swap
                return h_new, c_new

            h0 = jnp.zeros((BT, 2 * H), jnp.float32)
            c0 = jnp.zeros((BT, 2 * H), jnp.float32)
            jax.lax.fori_loop(0, T, step, (h0, c0), unroll=unroll)

        # fc(24 -> 1) + sigmoid, written lane-dense as [1, T*BT]:
        # wfc[8,24] x feats[T*BT,24]^T on the MXU (row 0 carries the weight).
        feats = dsts[-1][:, 0:2 * H]                              # [T*BT, 24]
        logits = jax.lax.dot_general(
            wfc_ref[...], feats,
            dimension_numbers=(((1,), (1,)), ((), ())),
            preferred_element_type=jnp.float32)                   # [8, T*BT]
        logits = logits[0:1, :] + bfc_ref[0, 0]
        out_ref[...] = jax.nn.sigmoid(logits).astype(out_ref.dtype)

    return kernel


def _prep_params(params):
    """Build fused / reordered kernel weights from canonical per-direction params.

    Canonical per-direction gate order: (i, f, g, o), each of width H.
    Fused 96-wide gate columns: [i_f, i_b, f_f, f_b, o_f, o_b, g_f, g_b].
    Layer-0 input lanes:  0:24 = x fwd-ordered, 24:48 = x time-reversed.
    Layer>0 input lanes:  0:12 prev fwd hidden fwd-ordered,
                         12:24 prev bwd hidden time-reversed,
                         24:36 prev bwd hidden fwd-ordered,
                         36:48 prev fwd hidden time-reversed
    (these are exactly the lanes the previous layer's two merged stores write).
    """
    wih_c, whh_c, b_c, wfc, bfc = params

    def gates(w):
        return [w[..., k * H:(k + 1) * H] for k in range(4)]   # i, f, g, o

    def cat(*xs):
        return jnp.concatenate(xs, axis=-1)

    wih_l, whh_l, b_l = [], [], []
    for layer in range(NUM_LAYER):
        fi, ff, fg, fo = gates(wih_c[2 * layer])        # forward direction
        bi, bf_, bg, bo = gates(wih_c[2 * layer + 1])   # backward direction

        if layer == 0:
            z = jnp.zeros((HIDDEN_DIM, H), jnp.float32)
            top = cat(fi, z, ff, z, fo, z, fg, z)        # rows 0:24 (x fwd copy)
            bot = cat(z, bi, z, bf_, z, bo, z, bg)       # rows 24:48 (x reversed)
            wih_l.append(jnp.concatenate([top, bot], axis=0))       # [48, 96]
        else:
            z = jnp.zeros((H, H), jnp.float32)
            r0 = cat(fi[:H], z, ff[:H], z, fo[:H], z, fg[:H], z)    # lanes  0:12
            r1 = cat(z, bi[H:], z, bf_[H:], z, bo[H:], z, bg[H:])   # lanes 12:24
            r2 = cat(fi[H:], z, ff[H:], z, fo[H:], z, fg[H:], z)    # lanes 24:36
            r3 = cat(z, bi[:H], z, bf_[:H], z, bo[:H], z, bg[:H])   # lanes 36:48
            wih_l.append(jnp.concatenate([r0, r1, r2, r3], axis=0))  # [48, 96]

        # hidden -> gates: block-diagonal so [h_fwd | h_bwd] @ W works fused.
        fi, ff, fg, fo = gates(whh_c[2 * layer])
        bi, bf_, bg, bo = gates(whh_c[2 * layer + 1])
        zh = jnp.zeros((H, H), jnp.float32)
        toph = cat(fi, zh, ff, zh, fo, zh, fg, zh)
        both = cat(zh, bi, zh, bf_, zh, bo, zh, bg)
        whh_l.append(jnp.concatenate([toph, both], axis=0))          # [24, 96]

        fi, ff, fg, fo = gates(b_c[2 * layer])
        bi, bf_, bg, bo = gates(b_c[2 * layer + 1])
        b_l.append(cat(fi, bi, ff, bf_, fo, bo, fg, bg))             # [1, 96]

    # Pad fc weight [1,24] -> [8,24] (zero rows) for a canonical MXU lhs tile.
    wfc8 = jnp.concatenate(
        [wfc.astype(jnp.float32), jnp.zeros((7, HIDDEN_DIM), jnp.float32)], axis=0)
    return (jnp.stack(wih_l), jnp.stack(whh_l), jnp.stack(b_l), wfc8,
            bfc.astype(jnp.float32))


def _pick_batch_tile(B, T):
    """Per-generation batch-tile heuristic (VMEM budget + megacore tiling)."""
    try:
        kind = jax.devices()[0].device_kind.lower()
    except Exception:
        kind = ""
    B8 = _round_up(max(B, 1), 8)
    # Resident VMEM bytes per row of the [T*BT, :] working set: double-buffered
    # 48-lane input, two 48-lane ping-pong buffers, 96-lane xproj, 2x1-lane out.
    row_bytes = 4 * (2 * 48 + 48 + 48 + 96 + 2)
    budget = (12 if "v5" in kind else 22) * (1 << 20)   # v5e has 16 MiB default scoped VMEM
    bt_cap = max(8, (budget // (row_bytes * T)) // 8 * 8)
    # v7x has 2 TensorCores: keep >=2 grid tiles so the "parallel" batch axis
    # can shard across them; single-TC chips prefer one big tile.
    two_cores = ("v7" in kind) or ("tpu7" in kind)
    min_tiles = 2 if (two_cores and B8 >= 16) else 1
    nb = max(min_tiles, _cdiv(B8, bt_cap))
    return _round_up(_cdiv(B8, nb), 8)


def tg_discriminator(x, params, *, batch_tile=None):
    """x: [B, T, 24] batch-first float32 -> [B, T, 1] sigmoid scores."""
    # TODO(synk): `sigmoid=False` path of the PyTorch forward not exposed; kernel
    # always applies the (default) sigmoid.
    B, T, D = x.shape
    assert D == HIDDEN_DIM
    wih_k, whh_k, b_k, wfc_k, bfc_k = _prep_params(params)

    BT = batch_tile or _pick_batch_tile(B, T)
    assert BT % 8 == 0
    BP = _round_up(B, BT)
    nb = BP // BT

    # Doubled input: forward-ordered copy || time-reversed copy (48 features),
    # laid out time-major inside each batch tile: [nb, T*BT, 48].
    xp = jnp.pad(x.astype(jnp.float32), ((0, BP - B), (0, 0), (0, 0)))
    xd = jnp.concatenate([xp, xp[:, ::-1, :]], axis=-1)               # [BP, T, 48]
    xd = (xd.reshape(nb, BT, T, 2 * D)
            .transpose(0, 2, 1, 3)
            .reshape(nb, T * BT, 2 * D))

    # Explicit VMEM budget (helps v5e's 16 MiB scoped default; stays well under
    # the v7x 64 MiB physical ceiling).
    footprint = 4 * T * BT * (2 * 48 + 48 + 48 + 96 + 2) + (1 << 20)
    vmem_limit = int(min(48 << 20, max(16 << 20, 2 * footprint)))

    kernel = _make_kernel(T, BT)
    out = pl.pallas_call(
        kernel,
        out_shape=jax.ShapeDtypeStruct((nb, 1, T * BT), jnp.float32),
        grid=(nb,),
        in_specs=[
            pl.BlockSpec((None, T * BT, 2 * D), lambda g: (g, 0, 0)),
            pl.BlockSpec(wih_k.shape, lambda g: (0, 0, 0)),
            pl.BlockSpec(whh_k.shape, lambda g: (0, 0, 0)),
            pl.BlockSpec(b_k.shape, lambda g: (0, 0, 0)),
            pl.BlockSpec(wfc_k.shape, lambda g: (0, 0)),
            pl.BlockSpec(bfc_k.shape, lambda g: (0, 0)),
        ],
        out_specs=pl.BlockSpec((None, 1, T * BT), lambda g: (g, 0, 0)),
        scratch_shapes=[
            pltpu.VMEM((T * BT, 4 * H), jnp.float32),   # ping-pong layer buffer A
            pltpu.VMEM((T * BT, 4 * H), jnp.float32),   # ping-pong layer buffer B
            pltpu.VMEM((T * BT, 8 * H), jnp.float32),   # hoisted input projection
        ],
        compiler_params=pltpu.CompilerParams(
            dimension_semantics=("parallel",),
            vmem_limit_bytes=vmem_limit),
    )(xd, wih_k, whh_k, b_k, wfc_k, bfc_k)

    # [nb, 1, T*BT] -> [B, T, 1]
    out = (out.reshape(nb, T, BT)
              .transpose(0, 2, 1)
              .reshape(BP, T))
    return out[:B, :, None]


def init_params(key):
    """Deterministic synthetic parameters (canonical shapes, gate order i,f,g,o)."""
    ks = jax.random.split(key, 5)
    s = 0.2
    # All layers have input size 24 (layer0: hidden_dim, layers>0: 2*H = 24).
    wih = jax.random.normal(ks[0], (NUM_LAYER * 2, HIDDEN_DIM, 4 * H), jnp.float32) * s
    whh = jax.random.normal(ks[1], (NUM_LAYER * 2, H, 4 * H), jnp.float32) * s
    b = jax.random.normal(ks[2], (NUM_LAYER * 2, 1, 4 * H), jnp.float32) * s  # b_ih + b_hh
    wfc = jax.random.normal(ks[3], (1, HIDDEN_DIM), jnp.float32) * s
    bfc = jax.random.normal(ks[4], (1, 1), jnp.float32) * s
    return wih, whh, b, wfc, bfc


def reference(x, params):
    """Pure-JAX reference mirroring PyTorch bi-LSTM + Linear + Sigmoid semantics."""
    wih, whh, b, wfc, bfc = params
    B, T, D = x.shape
    cur = x.astype(jnp.float32)
    for layer in range(NUM_LAYER):
        outs = []
        for d in range(2):
            idx = layer * 2 + d
            seq = cur if d == 0 else cur[:, ::-1, :]
            h = jnp.zeros((B, H), jnp.float32)
            c = jnp.zeros((B, H), jnp.float32)
            hs = []
            for t in range(T):
                gates = seq[:, t, :] @ wih[idx] + h @ whh[idx] + b[idx]
                i_g = jax.nn.sigmoid(gates[:, 0:H])
                f_g = jax.nn.sigmoid(gates[:, H:2 * H])
                g_g = jnp.tanh(gates[:, 2 * H:3 * H])
                o_g = jax.nn.sigmoid(gates[:, 3 * H:4 * H])
                c = f_g * c + i_g * g_g
                h = o_g * jnp.tanh(c)
                hs.append(h)
            hs = jnp.stack(hs, axis=1)
            if d == 1:
                hs = hs[:, ::-1, :]
            outs.append(hs)
        cur = jnp.concatenate(outs, axis=-1)
    logits = cur @ wfc.T + bfc[0, 0]
    return jax.nn.sigmoid(logits)


if __name__ == "__main__":
    key = jax.random.PRNGKey(0)
    kx, kp = jax.random.split(key)
    B, T = 4, 8
    x = jax.random.normal(kx, (B, T, HIDDEN_DIM), jnp.float32)
    params = init_params(kp)

    y = tg_discriminator(x, params)
    jax.block_until_ready(y)

    y_ref = reference(x, params)
    assert y.shape == (B, T, 1), y.shape
    assert jnp.allclose(y, y_ref, atol=1e-3), float(jnp.max(jnp.abs(y - y_ref)))
    print("KERNEL_OK")
</pallas_src>

<mosaic_0001>
module attributes {stable_mosaic.version = 11 : i64} {
  func.func @kernel(%arg0: i32, %arg1: memref<1x64x48xf32, #tpu.memory_space<vmem>>, %arg2: memref<3x48x96xf32, #tpu.memory_space<vmem>>, %arg3: memref<3x24x96xf32, #tpu.memory_space<vmem>>, %arg4: memref<3x1x96xf32, #tpu.memory_space<vmem>>, %arg5: memref<8x24xf32, #tpu.memory_space<vmem>>, %arg6: memref<1x1xf32, #tpu.memory_space<vmem>>, %arg7: memref<1x1x64xf32, #tpu.memory_space<vmem>>, %arg8: memref<64x48xf32, #tpu.memory_space<vmem>>, %arg9: memref<64x48xf32, #tpu.memory_space<vmem>>, %arg10: memref<64x96xf32, #tpu.memory_space<vmem>>) attributes {dimension_semantics = [#tpu.dimension_semantics<parallel>], iteration_bounds = array<i64: 1>, scalar_prefetch = 0 : i64, scratch_operands = 3 : i64, tpu.core_type = #tpu.core_type<tc>, window_params = [{transform_indices = @transform_0, window_bounds = array<i64: 1, 64, 48>}, {pipeline_mode = #tpu.pipeline_mode<synchronous>, transform_indices = @transform_1, window_bounds = array<i64: 3, 48, 96>}, {pipeline_mode = #tpu.pipeline_mode<synchronous>, transform_indices = @transform_2, window_bounds = array<i64: 3, 24, 96>}, {pipeline_mode = #tpu.pipeline_mode<synchronous>, transform_indices = @transform_3, window_bounds = array<i64: 3, 1, 96>}, {pipeline_mode = #tpu.pipeline_mode<synchronous>, transform_indices = @transform_4, window_bounds = array<i64: 8, 24>}, {pipeline_mode = #tpu.pipeline_mode<synchronous>, transform_indices = @transform_5, window_bounds = array<i64: 1, 1>}, {transform_indices = @transform_6, window_bounds = array<i64: 1, 1, 64>}]} {
    %c0 = arith.constant 0 : index
    %c0_0 = arith.constant 0 : index
    %c0_1 = arith.constant 0 : index
    %0 = vector.load %arg1[%c0, %c0_0, %c0_1] : memref<1x64x48xf32, #tpu.memory_space<vmem>>, vector<1x64x48xf32>
    %1 = vector.shape_cast %0 : vector<1x64x48xf32> to vector<64x48xf32>
    %c0_2 = arith.constant 0 : index
    %c0_3 = arith.constant 0 : index
    %c0_4 = arith.constant 0 : index
    %2 = vector.load %arg2[%c0_2, %c0_3, %c0_4] : memref<3x48x96xf32, #tpu.memory_space<vmem>>, vector<1x48x96xf32>
    %3 = vector.shape_cast %2 : vector<1x48x96xf32> to vector<48x96xf32>
    %cst = arith.constant dense<0.000000e+00> : vector<64x96xf32>
    %4 = tpu.matmul %1, %3, %cst {dimension_numbers = #tpu.dot_dimension_numbers<[1], [0], [0], [1], [0, 0, 1, 1], [], []>} : vector<64x48xf32>, vector<48x96xf32>, vector<64x96xf32> -> vector<64x96xf32>
    %c0_5 = arith.constant 0 : index
    %c0_6 = arith.constant 0 : index
    %c0_7 = arith.constant 0 : index
    %5 = vector.load %arg4[%c0_5, %c0_6, %c0_7] : memref<3x1x96xf32, #tpu.memory_space<vmem>>, vector<1x1x96xf32>
    %6 = vector.shape_cast %5 : vector<1x1x96xf32> to vector<1x96xf32>
    %7 = vector.broadcast %6 : vector<1x96xf32> to vector<64x96xf32>
    %8 = arith.addf %4, %7 : vector<64x96xf32>
    %c0_8 = arith.constant 0 : index
    %c0_9 = arith.constant 0 : index
    %9 = vector.load %arg10[%c0_8, %c0_9] : memref<64x96xf32, #tpu.memory_space<vmem>>, vector<64x96xf32>
    tpu.vector_store %arg10[%c0_8, %c0_9], %8 {strides = array<i32>} : memref<64x96xf32, #tpu.memory_space<vmem>>, vector<64x96xf32>,
    %c0_10 = arith.constant 0 : index
    %c0_11 = arith.constant 0 : index
    %c0_12 = arith.constant 0 : index
    %10 = vector.load %arg3[%c0_10, %c0_11, %c0_12] : memref<3x24x96xf32, #tpu.memory_space<vmem>>, vector<1x24x96xf32>
    %11 = vector.shape_cast %10 : vector<1x24x96xf32> to vector<24x96xf32>
    %cst_13 = arith.constant 0.000000e+00 : f32
    %12 = vector.broadcast %cst_13 : f32 to vector<8x24xf32>
    %cst_14 = arith.constant 0.000000e+00 : f32
    %13 = vector.broadcast %cst_14 : f32 to vector<8x24xf32>
    %c0_i32 = arith.constant 0 : i32
    %c8_i32 = arith.constant 8 : i32
    %14 = arith.muli %c0_i32, %c8_i32 : i32
    %15 = tpu.assume_multiple %14, 8 : i32
    %c7_i32 = arith.constant 7 : i32
    %16 = arith.subi %c7_i32, %c0_i32 : i32
    %c8_i32_15 = arith.constant 8 : i32
    %17 = arith.muli %16, %c8_i32_15 : i32
    %18 = tpu.assume_multiple %17, 8 : i32
    %cst_16 = arith.constant dense<0.000000e+00> : vector<8x96xf32>
    %19 = tpu.matmul %12, %11, %cst_16 {dimension_numbers = #tpu.dot_dimension_numbers<[1], [0], [0], [1], [0, 0, 1, 1], [], []>} : vector<8x24xf32>, vector<24x96xf32>, vector<8x96xf32> -> vector<8x96xf32>
    %20 = arith.index_cast %15 : i32 to index
    %c0_17 = arith.constant 0 : index
    %21 = vector.load %arg10[%20, %c0_17] : memref<64x96xf32, #tpu.memory_space<vmem>>, vector<8x96xf32>
    %22 = arith.addf %19, %21 : vector<8x96xf32>
    %23 = vector.extract_strided_slice %22 {offsets = [0, 0], sizes = [8, 72], strides = [1, 1]} : vector<8x96xf32> to vector<8x72xf32>
    %cst_18 = arith.constant 5.000000e-01 : f32
    %24 = vector.broadcast %cst_18 : f32 to vector<8x72xf32>
    %25 = arith.mulf %24, %23 : vector<8x72xf32>
    %26 = math.tanh %25 : vector<8x72xf32>
    %cst_19 = arith.constant 5.000000e-01 : f32
    %27 = vector.broadcast %cst_19 : f32 to vector<8x72xf32>
    %28 = arith.mulf %27, %26 : vector<8x72xf32>
    %cst_20 = arith.constant 5.000000e-01 : f32
    %29 = vector.broadcast %cst_20 : f32 to vector<8x72xf32>
    %30 = arith.addf %28, %29 : vector<8x72xf32>
    %31 = vector.extract_strided_slice %22 {offsets = [0, 72], sizes = [8, 24], strides = [1, 1]} : vector<8x96xf32> to vector<8x24xf32>
    %32 = math.tanh %31 : vector<8x24xf32>
    %33 = vector.extract_strided_slice %30 {offsets = [0, 24], sizes = [8, 24], strides = [1, 1]} : vector<8x72xf32> to vector<8x24xf32>
    %34 = arith.mulf %33, %13 : vector<8x24xf32>
    %35 = vector.extract_strided_slice %30 {offsets = [0, 0], sizes = [8, 24], strides = [1, 1]} : vector<8x72xf32> to vector<8x24xf32>
    %36 = arith.mulf %35, %32 : vector<8x24xf32>
    %37 = arith.addf %34, %36 : vector<8x24xf32>
    %38 = vector.extract_strided_slice %30 {offsets = [0, 48], sizes = [8, 24], strides = [1, 1]} : vector<8x72xf32> to vector<8x24xf32>
    %39 = math.tanh %37 : vector<8x24xf32>
    %40 = arith.mulf %38, %39 : vector<8x24xf32>
    %41 = arith.index_cast %15 : i32 to index
    %c0_21 = arith.constant 0 : index
    %42 = vector.load %arg8[%41, %c0_21] : memref<64x48xf32, #tpu.memory_space<vmem>>, vector<8x24xf32>
    tpu.vector_store %arg8[%41, %c0_21], %40 {strides = array<i32>} : memref<64x48xf32, #tpu.memory_space<vmem>>, vector<8x24xf32>,
    %43 = vector.extract_strided_slice %40 {offsets = [0, 12], sizes = [8, 12], strides = [1, 1]} : vector<8x24xf32> to vector<8x12xf32>
    %44 = vector.extract_strided_slice %40 {offsets = [0, 0], sizes = [8, 12], strides = [1, 1]} : vector<8x24xf32> to vector<8x12xf32>
    %45 = tpu.concatenate %43, %44 in 1 : vector<8x12xf32>, vector<8x12xf32> -> vector<8x24xf32>
    %46 = arith.index_cast %18 : i32 to index
    %c24 = arith.constant 24 : index
    %47 = vector.load %arg8[%46, %c24] : memref<64x48xf32, #tpu.memory_space<vmem>>, vector<8x24xf32>
    tpu.vector_store %arg8[%46, %c24], %45 {strides = array<i32>} : memref<64x48xf32, #tpu.memory_space<vmem>>, vector<8x24xf32>,
    %c1_i32 = arith.constant 1 : i32
    %c8_i32_22 = arith.constant 8 : i32
    %48 = arith.muli %c1_i32, %c8_i32_22 : i32
    %49 = tpu.assume_multiple %48, 8 : i32
    %c7_i32_23 = arith.constant 7 : i32
    %50 = arith.subi %c7_i32_23, %c1_i32 : i32
    %c8_i32_24 = arith.constant 8 : i32
    %51 = arith.muli %50, %c8_i32_24 : i32
    %52 = tpu.assume_multiple %51, 8 : i32
    %cst_25 = arith.constant dense<0.000000e+00> : vector<8x96xf32>
    %53 = tpu.matmul %40, %11, %cst_25 {dimension_numbers = #tpu.dot_dimension_numbers<[1], [0], [0], [1], [0, 0, 1, 1], [], []>} : vector<8x24xf32>, vector<24x96xf32>, vector<8x96xf32> -> vector<8x96xf32>
    %54 = arith.index_cast %49 : i32 to index
    %c0_26 = arith.constant 0 : index
    %55 = vector.load %arg10[%54, %c0_26] : memref<64x96xf32, #tpu.memory_space<vmem>>, vector<8x96xf32>
    %56 = arith.addf %53, %55 : vector<8x96xf32>
    %57 = vector.extract_strided_slice %56 {offsets = [0, 0], sizes = [8, 72], strides = [1, 1]} : vector<8x96xf32> to vector<8x72xf32>
    %cst_27 = arith.constant 5.000000e-01 : f32
    %58 = vector.broadcast %cst_27 : f32 to vector<8x72xf32>
    %59 = arith.mulf %58, %57 : vector<8x72xf32>
    %60 = math.tanh %59 : vector<8x72xf32>
    %cst_28 = arith.constant 5.000000e-01 : f32
    %61 = vector.broadcast %cst_28 : f32 to vector<8x72xf32>
    %62 = arith.mulf %61, %60 : vector<8x72xf32>
    %cst_29 = arith.constant 5.000000e-01 : f32
    %63 = vector.broadcast %cst_29 : f32 to vector<8x72xf32>
    %64 = arith.addf %62, %63 : vector<8x72xf32>
    %65 = vector.extract_strided_slice %56 {offsets = [0, 72], sizes = [8, 24], strides = [1, 1]} : vector<8x96xf32> to vector<8x24xf32>
    %66 = math.tanh %65 : vector<8x24xf32>
    %67 = vector.extract_strided_slice %64 {offsets = [0, 24], sizes = [8, 24], strides = [1, 1]} : vector<8x72xf32> to vector<8x24xf32>
    %68 = arith.mulf %67, %37 : vector<8x24xf32>
    %69 = vector.extract_strided_slice %64 {offsets = [0, 0], sizes = [8, 24], strides = [1, 1]} : vector<8x72xf32> to vector<8x24xf32>
    %70 = arith.mulf %69, %66 : vector<8x24xf32>
    %71 = arith.addf %68, %70 : vector<8x24xf32>
    %72 = vector.extract_strided_slice %64 {offsets = [0, 48], sizes = [8, 24], strides = [1, 1]} : vector<8x72xf32> to vector<8x24xf32>
    %73 = math.tanh %71 : vector<8x24xf32>
    %74 = arith.mulf %72, %73 : vector<8x24xf32>
    %75 = arith.index_cast %49 : i32 to index
    %c0_30 = arith.constant 0 : index
    %76 = vector.load %arg8[%75, %c0_30] : memref<64x48xf32, #tpu.memory_space<vmem>>, vector<8x24xf32>
    tpu.vector_store %arg8[%75, %c0_30], %74 {strides = array<i32>} : memref<64x48xf32, #tpu.memory_space<vmem>>, vector<8x24xf32>,
    %77 = vector.extract_strided_slice %74 {offsets = [0, 12], sizes = [8, 12], strides = [1, 1]} : vector<8x24xf32> to vector<8x12xf32>
    %78 = vector.extract_strided_slice %74 {offsets = [0, 0], sizes = [8, 12], strides = [1, 1]} : vector<8x24xf32> to vector<8x12xf32>
    %79 = tpu.concatenate %77, %78 in 1 : vector<8x12xf32>, vector<8x12xf32> -> vector<8x24xf32>
    %80 = arith.index_cast %52 : i32 to index
    %c24_31 = arith.constant 24 : index
    %81 = vector.load %arg8[%80, %c24_31] : memref<64x48xf32, #tpu.memory_space<vmem>>, vector<8x24xf32>
    tpu.vector_store %arg8[%80, %c24_31], %79 {strides = array<i32>} : memref<64x48xf32, #tpu.memory_space<vmem>>, vector<8x24xf32>,
    %c2_i32 = arith.constant 2 : i32
    %c8_i32_32 = arith.constant 8 : i32
    %82 = arith.muli %c2_i32, %c8_i32_32 : i32
    %83 = tpu.assume_multiple %82, 8 : i32
    %c7_i32_33 = arith.constant 7 : i32
    %84 = arith.subi %c7_i32_33, %c2_i32 : i32
    %c8_i32_34 = arith.constant 8 : i32
    %85 = arith.muli %84, %c8_i32_34 : i32
    %86 = tpu.assume_multiple %85, 8 : i32
    %cst_35 = arith.constant dense<0.000000e+00> : vector<8x96xf32>
    %87 = tpu.matmul %74, %11, %cst_35 {dimension_numbers = #tpu.dot_dimension_numbers<[1], [0], [0], [1], [0, 0, 1, 1], [], []>} : vector<8x24xf32>, vector<24x96xf32>, vector<8x96xf32> -> vector<8x96xf32>
    %88 = arith.index_cast %83 : i32 to index
    %c0_36 = arith.constant 0 : index
    %89 = vector.load %arg10[%88, %c0_36] : memref<64x96xf32, #tpu.memory_space<vmem>>, vector<8x96xf32>
    %90 = arith.addf %87, %89 : vector<8x96xf32>
    %91 = vector.extract_strided_slice %90 {offsets = [0, 0], sizes = [8, 72], strides = [1, 1]} : vector<8x96xf32> to vector<8x72xf32>
    %cst_37 = arith.constant 5.000000e-01 : f32
    %92 = vector.broadcast %cst_37 : f32 to vector<8x72xf32>
    %93 = arith.mulf %92, %91 : vector<8x72xf32>
    %94 = math.tanh %93 : vector<8x72xf32>
    %cst_38 = arith.constant 5.000000e-01 : f32
    %95 = vector.broadcast %cst_38 : f32 to vector<8x72xf32>
    %96 = arith.mulf %95, %94 : vector<8x72xf32>
    %cst_39 = arith.constant 5.000000e-01 : f32
    %97 = vector.broadcast %cst_39 : f32 to vector<8x72xf32>
    %98 = arith.addf %96, %97 : vector<8x72xf32>
    %99 = vector.extract_strided_slice %90 {offsets = [0, 72], sizes = [8, 24], strides = [1, 1]} : vector<8x96xf32> to vector<8x24xf32>
    %100 = math.tanh %99 : vector<8x24xf32>
    %101 = vector.extract_strided_slice %98 {offsets = [0, 24], sizes = [8, 24], strides = [1, 1]} : vector<8x72xf32> to vector<8x24xf32>
    %102 = arith.mulf %101, %71 : vector<8x24xf32>
    %103 = vector.extract_strided_slice %98 {offsets = [0, 0], sizes = [8, 24], strides = [1, 1]} : vector<8x72xf32> to vector<8x24xf32>
    %104 = arith.mulf %103, %100 : vector<8x24xf32>
    %105 = arith.addf %102, %104 : vector<8x24xf32>
    %106 = vector.extract_strided_slice %98 {offsets = [0, 48], sizes = [8, 24], strides = [1, 1]} : vector<8x72xf32> to vector<8x24xf32>
    %107 = math.tanh %105 : vector<8x24xf32>
    %108 = arith.mulf %106, %107 : vector<8x24xf32>
    %109 = arith.index_cast %83 : i32 to index
    %c0_40 = arith.constant 0 : index
    %110 = vector.load %arg8[%109, %c0_40] : memref<64x48xf32, #tpu.memory_space<vmem>>, vector<8x24xf32>
    tpu.vector_store %arg8[%109, %c0_40], %108 {strides = array<i32>} : memref<64x48xf32, #tpu.memory_space<vmem>>, vector<8x24xf32>,
    %111 = vector.extract_strided_slice %108 {offsets = [0, 12], sizes = [8, 12], strides = [1, 1]} : vector<8x24xf32> to vector<8x12xf32>
    %112 = vector.extract_strided_slice %108 {offsets = [0, 0], sizes = [8, 12], strides = [1, 1]} : vector<8x24xf32> to vector<8x12xf32>
    %113 = tpu.concatenate %111, %112 in 1 : vector<8x12xf32>, vector<8x12xf32> -> vector<8x24xf32>
    %114 = arith.index_cast %86 : i32 to index
    %c24_41 = arith.constant 24 : index
    %115 = vector.load %arg8[%114, %c24_41] : memref<64x48xf32, #tpu.memory_space<vmem>>, vector<8x24xf32>
    tpu.vector_store %arg8[%114, %c24_41], %113 {strides = array<i32>} : memref<64x48xf32, #tpu.memory_space<vmem>>, vector<8x24xf32>,
    %c3_i32 = arith.constant 3 : i32
    %c8_i32_42 = arith.constant 8 : i32
    %116 = arith.muli %c3_i32, %c8_i32_42 : i32
    %117 = tpu.assume_multiple %116, 8 : i32
    %c7_i32_43 = arith.constant 7 : i32
    %118 = arith.subi %c7_i32_43, %c3_i32 : i32
    %c8_i32_44 = arith.constant 8 : i32
    %119 = arith.muli %118, %c8_i32_44 : i32
    %120 = tpu.assume_multiple %119, 8 : i32
    %cst_45 = arith.constant dense<0.000000e+00> : vector<8x96xf32>
    %121 = tpu.matmul %108, %11, %cst_45 {dimension_numbers = #tpu.dot_dimension_numbers<[1], [0], [0], [1], [0, 0, 1, 1], [], []>} : vector<8x24xf32>, vector<24x96xf32>, vector<8x96xf32> -> vector<8x96xf32>
    %122 = arith.index_cast %117 : i32 to index
    %c0_46 = arith.constant 0 : index
    %123 = vector.load %arg10[%122, %c0_46] : memref<64x96xf32, #tpu.memory_space<vmem>>, vector<8x96xf32>
    %124 = arith.addf %121, %123 : vector<8x96xf32>
    %125 = vector.extract_strided_slice %124 {offsets = [0, 0], sizes = [8, 72], strides = [1, 1]} : vector<8x96xf32> to vector<8x72xf32>
    %cst_47 = arith.constant 5.000000e-01 : f32
    %126 = vector.broadcast %cst_47 : f32 to vector<8x72xf32>
    %127 = arith.mulf %126, %125 : vector<8x72xf32>
    %128 = math.tanh %127 : vector<8x72xf32>
    %cst_48 = arith.constant 5.000000e-01 : f32
    %129 = vector.broadcast %cst_48 : f32 to vector<8x72xf32>
    %130 = arith.mulf %129, %128 : vector<8x72xf32>
    %cst_49 = arith.constant 5.000000e-01 : f32
    %131 = vector.broadcast %cst_49 : f32 to vector<8x72xf32>
    %132 = arith.addf %130, %131 : vector<8x72xf32>
    %133 = vector.extract_strided_slice %124 {offsets = [0, 72], sizes = [8, 24], strides = [1, 1]} : vector<8x96xf32> to vector<8x24xf32>
    %134 = math.tanh %133 : vector<8x24xf32>
    %135 = vector.extract_strided_slice %132 {offsets = [0, 24], sizes = [8, 24], strides = [1, 1]} : vector<8x72xf32> to vector<8x24xf32>
    %136 = arith.mulf %135, %105 : vector<8x24xf32>
    %137 = vector.extract_strided_slice %132 {offsets = [0, 0], sizes = [8, 24], strides = [1, 1]} : vector<8x72xf32> to vector<8x24xf32>
    %138 = arith.mulf %137, %134 : vector<8x24xf32>
    %139 = arith.addf %136, %138 : vector<8x24xf32>
    %140 = vector.extract_strided_slice %132 {offsets = [0, 48], sizes = [8, 24], strides = [1, 1]} : vector<8x72xf32> to vector<8x24xf32>
    %141 = math.tanh %139 : vector<8x24xf32>
    %142 = arith.mulf %140, %141 : vector<8x24xf32>
    %143 = arith.index_cast %117 : i32 to index
    %c0_50 = arith.constant 0 : index
    %144 = vector.load %arg8[%143, %c0_50] : memref<64x48xf32, #tpu.memory_space<vmem>>, vector<8x24xf32>
    tpu.vector_store %arg8[%143, %c0_50], %142 {strides = array<i32>} : memref<64x48xf32, #tpu.memory_space<vmem>>, vector<8x24xf32>,
    %145 = vector.extract_strided_slice %142 {offsets = [0, 12], sizes = [8, 12], strides = [1, 1]} : vector<8x24xf32> to vector<8x12xf32>
    %146 = vector.extract_strided_slice %142 {offsets = [0, 0], sizes = [8, 12], strides = [1, 1]} : vector<8x24xf32> to vector<8x12xf32>
    %147 = tpu.concatenate %145, %146 in 1 : vector<8x12xf32>, vector<8x12xf32> -> vector<8x24xf32>
    %148 = arith.index_cast %120 : i32 to index
    %c24_51 = arith.constant 24 : index
    %149 = vector.load %arg8[%148, %c24_51] : memref<64x48xf32, #tpu.memory_space<vmem>>, vector<8x24xf32>
    tpu.vector_store %arg8[%148, %c24_51], %147 {strides = array<i32>} : memref<64x48xf32, #tpu.memory_space<vmem>>, vector<8x24xf32>,
    %c4_i32 = arith.constant 4 : i32
    %c8_i32_52 = arith.constant 8 : i32
    %150 = arith.muli %c4_i32, %c8_i32_52 : i32
    %151 = tpu.assume_multiple %150, 8 : i32
    %c7_i32_53 = arith.constant 7 : i32
    %152 = arith.subi %c7_i32_53, %c4_i32 : i32
    %c8_i32_54 = arith.constant 8 : i32
    %153 = arith.muli %152, %c8_i32_54 : i32
    %154 = tpu.assume_multiple %153, 8 : i32
    %cst_55 = arith.constant dense<0.000000e+00> : vector<8x96xf32>
    %155 = tpu.matmul %142, %11, %cst_55 {dimension_numbers = #tpu.dot_dimension_numbers<[1], [0], [0], [1], [0, 0, 1, 1], [], []>} : vector<8x24xf32>, vector<24x96xf32>, vector<8x96xf32> -> vector<8x96xf32>
    %156 = arith.index_cast %151 : i32 to index
    %c0_56 = arith.constant 0 : index
    %157 = vector.load %arg10[%156, %c0_56] : memref<64x96xf32, #tpu.memory_space<vmem>>, vector<8x96xf32>
    %158 = arith.addf %155, %157 : vector<8x96xf32>
    %159 = vector.extract_strided_slice %158 {offsets = [0, 0], sizes = [8, 72], strides = [1, 1]} : vector<8x96xf32> to vector<8x72xf32>
    %cst_57 = arith.constant 5.000000e-01 : f32
    %160 = vector.broadcast %cst_57 : f32 to vector<8x72xf32>
    %161 = arith.mulf %160, %159 : vector<8x72xf32>
    %162 = math.tanh %161 : vector<8x72xf32>
    %cst_58 = arith.constant 5.000000e-01 : f32
    %163 = vector.broadcast %cst_58 : f32 to vector<8x72xf32>
    %164 = arith.mulf %163, %162 : vector<8x72xf32>
    %cst_59 = arith.constant 5.000000e-01 : f32
    %165 = vector.broadcast %cst_59 : f32 to vector<8x72xf32>
    %166 = arith.addf %164, %165 : vector<8x72xf32>
    %167 = vector.extract_strided_slice %158 {offsets = [0, 72], sizes = [8, 24], strides = [1, 1]} : vector<8x96xf32> to vector<8x24xf32>
    %168 = math.tanh %167 : vector<8x24xf32>
    %169 = vector.extract_strided_slice %166 {offsets = [0, 24], sizes = [8, 24], strides = [1, 1]} : vector<8x72xf32> to vector<8x24xf32>
    %170 = arith.mulf %169, %139 : vector<8x24xf32>
    %171 = vector.extract_strided_slice %166 {offsets = [0, 0], sizes = [8, 24], strides = [1, 1]} : vector<8x72xf32> to vector<8x24xf32>
    %172 = arith.mulf %171, %168 : vector<8x24xf32>
    %173 = arith.addf %170, %172 : vector<8x24xf32>
    %174 = vector.extract_strided_slice %166 {offsets = [0, 48], sizes = [8, 24], strides = [1, 1]} : vector<8x72xf32> to vector<8x24xf32>
    %175 = math.tanh %173 : vector<8x24xf32>
    %176 = arith.mulf %174, %175 : vector<8x24xf32>
    %177 = arith.index_cast %151 : i32 to index
    %c0_60 = arith.constant 0 : index
    %178 = vector.load %arg8[%177, %c0_60] : memref<64x48xf32, #tpu.memory_space<vmem>>, vector<8x24xf32>
    tpu.vector_store %arg8[%177, %c0_60], %176 {strides = array<i32>} : memref<64x48xf32, #tpu.memory_space<vmem>>, vector<8x24xf32>,
    %179 = vector.extract_strided_slice %176 {offsets = [0, 12], sizes = [8, 12], strides = [1, 1]} : vector<8x24xf32> to vector<8x12xf32>
    %180 = vector.extract_strided_slice %176 {offsets = [0, 0], sizes = [8, 12], strides = [1, 1]} : vector<8x24xf32> to vector<8x12xf32>
    %181 = tpu.concatenate %179, %180 in 1 : vector<8x12xf32>, vector<8x12xf32> -> vector<8x24xf32>
    %182 = arith.index_cast %154 : i32 to index
    %c24_61 = arith.constant 24 : index
    %183 = vector.load %arg8[%182, %c24_61] : memref<64x48xf32, #tpu.memory_space<vmem>>, vector<8x24xf32>
    tpu.vector_store %arg8[%182, %c24_61], %181 {strides = array<i32>} : memref<64x48xf32, #tpu.memory_space<vmem>>, vector<8x24xf32>,
    %c5_i32 = arith.constant 5 : i32
    %c8_i32_62 = arith.constant 8 : i32
    %184 = arith.muli %c5_i32, %c8_i32_62 : i32
    %185 = tpu.assume_multiple %184, 8 : i32
    %c7_i32_63 = arith.constant 7 : i32
    %186 = arith.subi %c7_i32_63, %c5_i32 : i32
    %c8_i32_64 = arith.constant 8 : i32
    %187 = arith.muli %186, %c8_i32_64 : i32
    %188 = tpu.assume_multiple %187, 8 : i32
    %cst_65 = arith.constant dense<0.000000e+00> : vector<8x96xf32>
    %189 = tpu.matmul %176, %11, %cst_65 {dimension_numbers = #tpu.dot_dimension_numbers<[1], [0], [0], [1], [0, 0, 1, 1], [], []>} : vector<8x24xf32>, vector<24x96xf32>, vector<8x96xf32> -> vector<8x96xf32>
    %190 = arith.index_cast %185 : i32 to index
    %c0_66 = arith.constant 0 : index
    %191 = vector.load %arg10[%190, %c0_66] : memref<64x96xf32, #tpu.memory_space<vmem>>, vector<8x96xf32>
    %192 = arith.addf %189, %191 : vector<8x96xf32>
    %193 = vector.extract_strided_slice %192 {offsets = [0, 0], sizes = [8, 72], strides = [1, 1]} : vector<8x96xf32> to vector<8x72xf32>
    %cst_67 = arith.constant 5.000000e-01 : f32
    %194 = vector.broadcast %cst_67 : f32 to vector<8x72xf32>
    %195 = arith.mulf %194, %193 : vector<8x72xf32>
    %196 = math.tanh %195 : vector<8x72xf32>
    %cst_68 = arith.constant 5.000000e-01 : f32
    %197 = vector.broadcast %cst_68 : f32 to vector<8x72xf32>
    %198 = arith.mulf %197, %196 : vector<8x72xf32>
    %cst_69 = arith.constant 5.000000e-01 : f32
    %199 = vector.broadcast %cst_69 : f32 to vector<8x72xf32>
    %200 = arith.addf %198, %199 : vector<8x72xf32>
    %201 = vector.extract_strided_slice %192 {offsets = [0, 72], sizes = [8, 24], strides = [1, 1]} : vector<8x96xf32> to vector<8x24xf32>
    %202 = math.tanh %201 : vector<8x24xf32>
    %203 = vector.extract_strided_slice %200 {offsets = [0, 24], sizes = [8, 24], strides = [1, 1]} : vector<8x72xf32> to vector<8x24xf32>
    %204 = arith.mulf %203, %173 : vector<8x24xf32>
    %205 = vector.extract_strided_slice %200 {offsets = [0, 0], sizes = [8, 24], strides = [1, 1]} : vector<8x72xf32> to vector<8x24xf32>
    %206 = arith.mulf %205, %202 : vector<8x24xf32>
    %207 = arith.addf %204, %206 : vector<8x24xf32>
    %208 = vector.extract_strided_slice %200 {offsets = [0, 48], sizes = [8, 24], strides = [1, 1]} : vector<8x72xf32> to vector<8x24xf32>
    %209 = math.tanh %207 : vector<8x24xf32>
    %210 = arith.mulf %208, %209 : vector<8x24xf32>
    %211 = arith.index_cast %185 : i32 to index
    %c0_70 = arith.constant 0 : index
    %212 = vector.load %arg8[%211, %c0_70] : memref<64x48xf32, #tpu.memory_space<vmem>>, vector<8x24xf32>
    tpu.vector_store %arg8[%211, %c0_70], %210 {strides = array<i32>} : memref<64x48xf32, #tpu.memory_space<vmem>>, vector<8x24xf32>,
    %213 = vector.extract_strided_slice %210 {offsets = [0, 12], sizes = [8, 12], strides = [1, 1]} : vector<8x24xf32> to vector<8x12xf32>
    %214 = vector.extract_strided_slice %210 {offsets = [0, 0], sizes = [8, 12], strides = [1, 1]} : vector<8x24xf32> to vector<8x12xf32>
    %215 = tpu.concatenate %213, %214 in 1 : vector<8x12xf32>, vector<8x12xf32> -> vector<8x24xf32>
    %216 = arith.index_cast %188 : i32 to index
    %c24_71 = arith.constant 24 : index
    %217 = vector.load %arg8[%216, %c24_71] : memref<64x48xf32, #tpu.memory_space<vmem>>, vector<8x24xf32>
    tpu.vector_store %arg8[%216, %c24_71], %215 {strides = array<i32>} : memref<64x48xf32, #tpu.memory_space<vmem>>, vector<8x24xf32>,
    %c6_i32 = arith.constant 6 : i32
    %c8_i32_72 = arith.constant 8 : i32
    %218 = arith.muli %c6_i32, %c8_i32_72 : i32
    %219 = tpu.assume_multiple %218, 8 : i32
    %c7_i32_73 = arith.constant 7 : i32
    %220 = arith.subi %c7_i32_73, %c6_i32 : i32
    %c8_i32_74 = arith.constant 8 : i32
    %221 = arith.muli %220, %c8_i32_74 : i32
    %222 = tpu.assume_multiple %221, 8 : i32
    %cst_75 = arith.constant dense<0.000000e+00> : vector<8x96xf32>
    %223 = tpu.matmul %210, %11, %cst_75 {dimension_numbers = #tpu.dot_dimension_numbers<[1], [0], [0], [1], [0, 0, 1, 1], [], []>} : vector<8x24xf32>, vector<24x96xf32>, vector<8x96xf32> -> vector<8x96xf32>
    %224 = arith.index_cast %219 : i32 to index
    %c0_76 = arith.constant 0 : index
    %225 = vector.load %arg10[%224, %c0_76] : memref<64x96xf32, #tpu.memory_space<vmem>>, vector<8x96xf32>
    %226 = arith.addf %223, %225 : vector<8x96xf32>
    %227 = vector.extract_strided_slice %226 {offsets = [0, 0], sizes = [8, 72], strides = [1, 1]} : vector<8x96xf32> to vector<8x72xf32>
    %cst_77 = arith.constant 5.000000e-01 : f32
    %228 = vector.broadcast %cst_77 : f32 to vector<8x72xf32>
    %229 = arith.mulf %228, %227 : vector<8x72xf32>
    %230 = math.tanh %229 : vector<8x72xf32>
    %cst_78 = arith.constant 5.000000e-01 : f32
    %231 = vector.broadcast %cst_78 : f32 to vector<8x72xf32>
    %232 = arith.mulf %231, %230 : vector<8x72xf32>
    %cst_79 = arith.constant 5.000000e-01 : f32
    %233 = vector.broadcast %cst_79 : f32 to vector<8x72xf32>
    %234 = arith.addf %232, %233 : vector<8x72xf32>
    %235 = vector.extract_strided_slice %226 {offsets = [0, 72], sizes = [8, 24], strides = [1, 1]} : vector<8x96xf32> to vector<8x24xf32>
    %236 = math.tanh %235 : vector<8x24xf32>
    %237 = vector.extract_strided_slice %234 {offsets = [0, 24], sizes = [8, 24], strides = [1, 1]} : vector<8x72xf32> to vector<8x24xf32>
    %238 = arith.mulf %237, %207 : vector<8x24xf32>
    %239 = vector.extract_strided_slice %234 {offsets = [0, 0], sizes = [8, 24], strides = [1, 1]} : vector<8x72xf32> to vector<8x24xf32>
    %240 = arith.mulf %239, %236 : vector<8x24xf32>
    %241 = arith.addf %238, %240 : vector<8x24xf32>
    %242 = vector.extract_strided_slice %234 {offsets = [0, 48], sizes = [8, 24], strides = [1, 1]} : vector<8x72xf32> to vector<8x24xf32>
    %243 = math.tanh %241 : vector<8x24xf32>
    %244 = arith.mulf %242, %243 : vector<8x24xf32>
    %245 = arith.index_cast %219 : i32 to index
    %c0_80 = arith.constant 0 : index
    %246 = vector.load %arg8[%245, %c0_80] : memref<64x48xf32, #tpu.memory_space<vmem>>, vector<8x24xf32>
    tpu.vector_store %arg8[%245, %c0_80], %244 {strides = array<i32>} : memref<64x48xf32, #tpu.memory_space<vmem>>, vector<8x24xf32>,
    %247 = vector.extract_strided_slice %244 {offsets = [0, 12], sizes = [8, 12], strides = [1, 1]} : vector<8x24xf32> to vector<8x12xf32>
    %248 = vector.extract_strided_slice %244 {offsets = [0, 0], sizes = [8, 12], strides = [1, 1]} : vector<8x24xf32> to vector<8x12xf32>
    %249 = tpu.concatenate %247, %248 in 1 : vector<8x12xf32>, vector<8x12xf32> -> vector<8x24xf32>
    %250 = arith.index_cast %222 : i32 to index
    %c24_81 = arith.constant 24 : index
    %251 = vector.load %arg8[%250, %c24_81] : memref<64x48xf32, #tpu.memory_space<vmem>>, vector<8x24xf32>
    tpu.vector_store %arg8[%250, %c24_81], %249 {strides = array<i32>} : memref<64x48xf32, #tpu.memory_space<vmem>>, vector<8x24xf32>,
    %c7_i32_82 = arith.constant 7 : i32
    %c8_i32_83 = arith.constant 8 : i32
    %252 = arith.muli %c7_i32_82, %c8_i32_83 : i32
    %253 = tpu.assume_multiple %252, 8 : i32
    %c7_i32_84 = arith.constant 7 : i32
    %254 = arith.subi %c7_i32_84, %c7_i32_82 : i32
    %c8_i32_85 = arith.constant 8 : i32
    %255 = arith.muli %254, %c8_i32_85 : i32
    %256 = tpu.assume_multiple %255, 8 : i32
    %cst_86 = arith.constant dense<0.000000e+00> : vector<8x96xf32>
    %257 = tpu.matmul %244, %11, %cst_86 {dimension_numbers = #tpu.dot_dimension_numbers<[1], [0], [0], [1], [0, 0, 1, 1], [], []>} : vector<8x24xf32>, vector<24x96xf32>, vector<8x96xf32> -> vector<8x96xf32>
    %258 = arith.index_cast %253 : i32 to index
    %c0_87 = arith.constant 0 : index
    %259 = vector.load %arg10[%258, %c0_87] : memref<64x96xf32, #tpu.memory_space<vmem>>, vector<8x96xf32>
    %260 = arith.addf %257, %259 : vector<8x96xf32>
    %261 = vector.extract_strided_slice %260 {offsets = [0, 0], sizes = [8, 72], strides = [1, 1]} : vector<8x96xf32> to vector<8x72xf32>
    %cst_88 = arith.constant 5.000000e-01 : f32
    %262 = vector.broadcast %cst_88 : f32 to vector<8x72xf32>
    %263 = arith.mulf %262, %261 : vector<8x72xf32>
    %264 = math.tanh %263 : vector<8x72xf32>
    %cst_89 = arith.constant 5.000000e-01 : f32
    %265 = vector.broadcast %cst_89 : f32 to vector<8x72xf32>
    %266 = arith.mulf %265, %264 : vector<8x72xf32>
    %cst_90 = arith.constant 5.000000e-01 : f32
    %267 = vector.broadcast %cst_90 : f32 to vector<8x72xf32>
    %268 = arith.addf %266, %267 : vector<8x72xf32>
    %269 = vector.extract_strided_slice %260 {offsets = [0, 72], sizes = [8, 24], strides = [1, 1]} : vector<8x96xf32> to vector<8x24xf32>
    %270 = math.tanh %269 : vector<8x24xf32>
    %271 = vector.extract_strided_slice %268 {offsets = [0, 24], sizes = [8, 24], strides = [1, 1]} : vector<8x72xf32> to vector<8x24xf32>
    %272 = arith.mulf %271, %241 : vector<8x24xf32>
    %273 = vector.extract_strided_slice %268 {offsets = [0, 0], sizes = [8, 24], strides = [1, 1]} : vector<8x72xf32> to vector<8x24xf32>
    %274 = arith.mulf %273, %270 : vector<8x24xf32>
    %275 = arith.addf %272, %274 : vector<8x24xf32>
    %276 = vector.extract_strided_slice %268 {offsets = [0, 48], sizes = [8, 24], strides = [1, 1]} : vector<8x72xf32> to vector<8x24xf32>
    %277 = math.tanh %275 : vector<8x24xf32>
    %278 = arith.mulf %276, %277 : vector<8x24xf32>
    %279 = arith.index_cast %253 : i32 to index
    %c0_91 = arith.constant 0 : index
    %280 = vector.load %arg8[%279, %c0_91] : memref<64x48xf32, #tpu.memory_space<vmem>>, vector<8x24xf32>
    tpu.vector_store %arg8[%279, %c0_91], %278 {strides = array<i32>} : memref<64x48xf32, #tpu.memory_space<vmem>>, vector<8x24xf32>,
    %281 = vector.extract_strided_slice %278 {offsets = [0, 12], sizes = [8, 12], strides = [1, 1]} : vector<8x24xf32> to vector<8x12xf32>
    %282 = vector.extract_strided_slice %278 {offsets = [0, 0], sizes = [8, 12], strides = [1, 1]} : vector<8x24xf32> to vector<8x12xf32>
    %283 = tpu.concatenate %281, %282 in 1 : vector<8x12xf32>, vector<8x12xf32> -> vector<8x24xf32>
    %284 = arith.index_cast %256 : i32 to index
    %c24_92 = arith.constant 24 : index
    %285 = vector.load %arg8[%284, %c24_92] : memref<64x48xf32, #tpu.memory_space<vmem>>, vector<8x24xf32>
    tpu.vector_store %arg8[%284, %c24_92], %283 {strides = array<i32>} : memref<64x48xf32, #tpu.memory_space<vmem>>, vector<8x24xf32>,
    %c8_i32_93 = arith.constant 8 : i32
    %c0_94 = arith.constant 0 : index
    %c0_95 = arith.constant 0 : index
    %286 = vector.load %arg8[%c0_94, %c0_95] : memref<64x48xf32, #tpu.memory_space<vmem>>, vector<64x48xf32>
    %c1 = arith.constant 1 : index
    %c0_96 = arith.constant 0 : index
    %c0_97 = arith.constant 0 : index
    %287 = vector.load %arg2[%c1, %c0_96, %c0_97] : memref<3x48x96xf32, #tpu.memory_space<vmem>>, vector<1x48x96xf32>
    %288 = vector.shape_cast %287 : vector<1x48x96xf32> to vector<48x96xf32>
    %cst_98 = arith.constant dense<0.000000e+00> : vector<64x96xf32>
    %289 = tpu.matmul %286, %288, %cst_98 {dimension_numbers = #tpu.dot_dimension_numbers<[1], [0], [0], [1], [0, 0, 1, 1], [], []>} : vector<64x48xf32>, vector<48x96xf32>, vector<64x96xf32> -> vector<64x96xf32>
    %c1_99 = arith.constant 1 : index
    %c0_100 = arith.constant 0 : index
    %c0_101 = arith.constant 0 : index
    %290 = vector.load %arg4[%c1_99, %c0_100, %c0_101] : memref<3x1x96xf32, #tpu.memory_space<vmem>>, vector<1x1x96xf32>
    %291 = vector.shape_cast %290 : vector<1x1x96xf32> to vector<1x96xf32>
    %292 = vector.broadcast %291 : vector<1x96xf32> to vector<64x96xf32>
    %293 = arith.addf %289, %292 : vector<64x96xf32>
    %c0_102 = arith.constant 0 : index
    %c0_103 = arith.constant 0 : index
    %294 = vector.load %arg10[%c0_102, %c0_103] : memref<64x96xf32, #tpu.memory_space<vmem>>, vector<64x96xf32>
    tpu.vector_store %arg10[%c0_102, %c0_103], %293 {strides = array<i32>} : memref<64x96xf32, #tpu.memory_space<vmem>>, vector<64x96xf32>,
    %c1_104 = arith.constant 1 : index
    %c0_105 = arith.constant 0 : index
    %c0_106 = arith.constant 0 : index
    %295 = vector.load %arg3[%c1_104, %c0_105, %c0_106] : memref<3x24x96xf32, #tpu.memory_space<vmem>>, vector<1x24x96xf32>
    %296 = vector.shape_cast %295 : vector<1x24x96xf32> to vector<24x96xf32>
    %cst_107 = arith.constant 0.000000e+00 : f32
    %297 = vector.broadcast %cst_107 : f32 to vector<8x24xf32>
    %cst_108 = arith.constant 0.000000e+00 : f32
    %298 = vector.broadcast %cst_108 : f32 to vector<8x24xf32>
    %c0_i32_109 = arith.constant 0 : i32
    %c8_i32_110 = arith.constant 8 : i32
    %299 = arith.muli %c0_i32_109, %c8_i32_110 : i32
    %300 = tpu.assume_multiple %299, 8 : i32
    %c7_i32_111 = arith.constant 7 : i32
    %301 = arith.subi %c7_i32_111, %c0_i32_109 : i32
    %c8_i32_112 = arith.constant 8 : i32
    %302 = arith.muli %301, %c8_i32_112 : i32
    %303 = tpu.assume_multiple %302, 8 : i32
    %cst_113 = arith.constant dense<0.000000e+00> : vector<8x96xf32>
    %304 = tpu.matmul %297, %296, %cst_113 {dimension_numbers = #tpu.dot_dimension_numbers<[1], [0], [0], [1], [0, 0, 1, 1], [], []>} : vector<8x24xf32>, vector<24x96xf32>, vector<8x96xf32> -> vector<8x96xf32>
    %305 = arith.index_cast %300 : i32 to index
    %c0_114 = arith.constant 0 : index
    %306 = vector.load %arg10[%305, %c0_114] : memref<64x96xf32, #tpu.memory_space<vmem>>, vector<8x96xf32>
    %307 = arith.addf %304, %306 : vector<8x96xf32>
    %308 = vector.extract_strided_slice %307 {offsets = [0, 0], sizes = [8, 72], strides = [1, 1]} : vector<8x96xf32> to vector<8x72xf32>
    %cst_115 = arith.constant 5.000000e-01 : f32
    %309 = vector.broadcast %cst_115 : f32 to vector<8x72xf32>
    %310 = arith.mulf %309, %308 : vector<8x72xf32>
    %311 = math.tanh %310 : vector<8x72xf32>
    %cst_116 = arith.constant 5.000000e-01 : f32
    %312 = vector.broadcast %cst_116 : f32 to vector<8x72xf32>
    %313 = arith.mulf %312, %311 : vector<8x72xf32>
    %cst_117 = arith.constant 5.000000e-01 : f32
    %314 = vector.broadcast %cst_117 : f32 to vector<8x72xf32>
    %315 = arith.addf %313, %314 : vector<8x72xf32>
    %316 = vector.extract_strided_slice %307 {offsets = [0, 72], sizes = [8, 24], strides = [1, 1]} : vector<8x96xf32> to vector<8x24xf32>
    %317 = math.tanh %316 : vector<8x24xf32>
    %318 = vector.extract_strided_slice %315 {offsets = [0, 24], sizes = [8, 24], strides = [1, 1]} : vector<8x72xf32> to vector<8x24xf32>
    %319 = arith.mulf %318, %298 : vector<8x24xf32>
    %320 = vector.extract_strided_slice %315 {offsets = [0, 0], sizes = [8, 24], strides = [1, 1]} : vector<8x72xf32> to vector<8x24xf32>
    %321 = arith.mulf %320, %317 : vector<8x24xf32>
    %322 = arith.addf %319, %321 : vector<8x24xf32>
    %323 = vector.extract_strided_slice %315 {offsets = [0, 48], sizes = [8, 24], strides = [1, 1]} : vector<8x72xf32> to vector<8x24xf32>
    %324 = math.tanh %322 : vector<8x24xf32>
    %325 = arith.mulf %323, %324 : vector<8x24xf32>
    %326 = arith.index_cast %300 : i32 to index
    %c0_118 = arith.constant 0 : index
    %327 = vector.load %arg9[%326, %c0_118] : memref<64x48xf32, #tpu.memory_space<vmem>>, vector<8x24xf32>
    tpu.vector_store %arg9[%326, %c0_118], %325 {strides = array<i32>} : memref<64x48xf32, #tpu.memory_space<vmem>>, vector<8x24xf32>,
    %328 = vector.extract_strided_slice %325 {offsets = [0, 12], sizes = [8, 12], strides = [1, 1]} : vector<8x24xf32> to vector<8x12xf32>
    %329 = vector.extract_strided_slice %325 {offsets = [0, 0], sizes = [8, 12], strides = [1, 1]} : vector<8x24xf32> to vector<8x12xf32>
    %330 = tpu.concatenate %328, %329 in 1 : vector<8x12xf32>, vector<8x12xf32> -> vector<8x24xf32>
    %331 = arith.index_cast %303 : i32 to index
    %c24_119 = arith.constant 24 : index
    %332 = vector.load %arg9[%331, %c24_119] : memref<64x48xf32, #tpu.memory_space<vmem>>, vector<8x24xf32>
    tpu.vector_store %arg9[%331, %c24_119], %330 {strides = array<i32>} : memref<64x48xf32, #tpu.memory_space<vmem>>, vector<8x24xf32>,
    %c1_i32_120 = arith.constant 1 : i32
    %c8_i32_121 = arith.constant 8 : i32
    %333 = arith.muli %c1_i32_120, %c8_i32_121 : i32
    %334 = tpu.assume_multiple %333, 8 : i32
    %c7_i32_122 = arith.constant 7 : i32
    %335 = arith.subi %c7_i32_122, %c1_i32_120 : i32
    %c8_i32_123 = arith.constant 8 : i32
    %336 = arith.muli %335, %c8_i32_123 : i32
    %337 = tpu.assume_multiple %336, 8 : i32
    %cst_124 = arith.constant dense<0.000000e+00> : vector<8x96xf32>
    %338 = tpu.matmul %325, %296, %cst_124 {dimension_numbers = #tpu.dot_dimension_numbers<[1], [0], [0], [1], [0, 0, 1, 1], [], []>} : vector<8x24xf32>, vector<24x96xf32>, vector<8x96xf32> -> vector<8x96xf32>
    %339 = arith.index_cast %334 : i32 to index
    %c0_125 = arith.constant 0 : index
    %340 = vector.load %arg10[%339, %c0_125] : memref<64x96xf32, #tpu.memory_space<vmem>>, vector<8x96xf32>
    %341 = arith.addf %338, %340 : vector<8x96xf32>
    %342 = vector.extract_strided_slice %341 {offsets = [0, 0], sizes = [8, 72], strides = [1, 1]} : vector<8x96xf32> to vector<8x72xf32>
    %cst_126 = arith.constant 5.000000e-01 : f32
    %343 = vector.broadcast %cst_126 : f32 to vector<8x72xf32>
    %344 = arith.mulf %343, %342 : vector<8x72xf32>
    %345 = math.tanh %344 : vector<8x72xf32>
    %cst_127 = arith.constant 5.000000e-01 : f32
    %346 = vector.broadcast %cst_127 : f32 to vector<8x72xf32>
    %347 = arith.mulf %346, %345 : vector<8x72xf32>
    %cst_128 = arith.constant 5.000000e-01 : f32
    %348 = vector.broadcast %cst_128 : f32 to vector<8x72xf32>
    %349 = arith.addf %347, %348 : vector<8x72xf32>
    %350 = vector.extract_strided_slice %341 {offsets = [0, 72], sizes = [8, 24], strides = [1, 1]} : vector<8x96xf32> to vector<8x24xf32>
    %351 = math.tanh %350 : vector<8x24xf32>
    %352 = vector.extract_strided_slice %349 {offsets = [0, 24], sizes = [8, 24], strides = [1, 1]} : vector<8x72xf32> to vector<8x24xf32>
    %353 = arith.mulf %352, %322 : vector<8x24xf32>
    %354 = vector.extract_strided_slice %349 {offsets = [0, 0], sizes = [8, 24], strides = [1, 1]} : vector<8x72xf32> to vector<8x24xf32>
    %355 = arith.mulf %354, %351 : vector<8x24xf32>
    %356 = arith.addf %353, %355 : vector<8x24xf32>
    %357 = vector.extract_strided_slice %349 {offsets = [0, 48], sizes = [8, 24], strides = [1, 1]} : vector<8x72xf32> to vector<8x24xf32>
    %358 = math.tanh %356 : vector<8x24xf32>
    %359 = arith.mulf %357, %358 : vector<8x24xf32>
    %360 = arith.index_cast %334 : i32 to index
    %c0_129 = arith.constant 0 : index
    %361 = vector.load %arg9[%360, %c0_129] : memref<64x48xf32, #tpu.memory_space<vmem>>, vector<8x24xf32>
    tpu.vector_store %arg9[%360, %c0_129], %359 {strides = array<i32>} : memref<64x48xf32, #tpu.memory_space<vmem>>, vector<8x24xf32>,
    %362 = vector.extract_strided_slice %359 {offsets = [0, 12], sizes = [8, 12], strides = [1, 1]} : vector<8x24xf32> to vector<8x12xf32>
    %363 = vector.extract_strided_slice %359 {offsets = [0, 0], sizes = [8, 12], strides = [1, 1]} : vector<8x24xf32> to vector<8x12xf32>
    %364 = tpu.concatenate %362, %363 in 1 : vector<8x12xf32>, vector<8x12xf32> -> vector<8x24xf32>
    %365 = arith.index_cast %337 : i32 to index
    %c24_130 = arith.constant 24 : index
    %366 = vector.load %arg9[%365, %c24_130] : memref<64x48xf32, #tpu.memory_space<vmem>>, vector<8x24xf32>
    tpu.vector_store %arg9[%365, %c24_130], %364 {strides = array<i32>} : memref<64x48xf32, #tpu.memory_space<vmem>>, vector<8x24xf32>,
    %c2_i32_131 = arith.constant 2 : i32
    %c8_i32_132 = arith.constant 8 : i32
    %367 = arith.muli %c2_i32_131, %c8_i32_132 : i32
    %368 = tpu.assume_multiple %367, 8 : i32
    %c7_i32_133 = arith.constant 7 : i32
    %369 = arith.subi %c7_i32_133, %c2_i32_131 : i32
    %c8_i32_134 = arith.constant 8 : i32
    %370 = arith.muli %369, %c8_i32_134 : i32
    %371 = tpu.assume_multiple %370, 8 : i32
    %cst_135 = arith.constant dense<0.000000e+00> : vector<8x96xf32>
    %372 = tpu.matmul %359, %296, %cst_135 {dimension_numbers = #tpu.dot_dimension_numbers<[1], [0], [0], [1], [0, 0, 1, 1], [], []>} : vector<8x24xf32>, vector<24x96xf32>, vector<8x96xf32> -> vector<8x96xf32>
    %373 = arith.index_cast %368 : i32 to index
    %c0_136 = arith.constant 0 : index
    %374 = vector.load %arg10[%373, %c0_136] : memref<64x96xf32, #tpu.memory_space<vmem>>, vector<8x96xf32>
    %375 = arith.addf %372, %374 : vector<8x96xf32>
    %376 = vector.extract_strided_slice %375 {offsets = [0, 0], sizes = [8, 72], strides = [1, 1]} : vector<8x96xf32> to vector<8x72xf32>
    %cst_137 = arith.constant 5.000000e-01 : f32
    %377 = vector.broadcast %cst_137 : f32 to vector<8x72xf32>
    %378 = arith.mulf %377, %376 : vector<8x72xf32>
    %379 = math.tanh %378 : vector<8x72xf32>
    %cst_138 = arith.constant 5.000000e-01 : f32
    %380 = vector.broadcast %cst_138 : f32 to vector<8x72xf32>
    %381 = arith.mulf %380, %379 : vector<8x72xf32>
    %cst_139 = arith.constant 5.000000e-01 : f32
    %382 = vector.broadcast %cst_139 : f32 to vector<8x72xf32>
    %383 = arith.addf %381, %382 : vector<8x72xf32>
    %384 = vector.extract_strided_slice %375 {offsets = [0, 72], sizes = [8, 24], strides = [1, 1]} : vector<8x96xf32> to vector<8x24xf32>
    %385 = math.tanh %384 : vector<8x24xf32>
    %386 = vector.extract_strided_slice %383 {offsets = [0, 24], sizes = [8, 24], strides = [1, 1]} : vector<8x72xf32> to vector<8x24xf32>
    %387 = arith.mulf %386, %356 : vector<8x24xf32>
    %388 = vector.extract_strided_slice %383 {offsets = [0, 0], sizes = [8, 24], strides = [1, 1]} : vector<8x72xf32> to vector<8x24xf32>
    %389 = arith.mulf %388, %385 : vector<8x24xf32>
    %390 = arith.addf %387, %389 : vector<8x24xf32>
    %391 = vector.extract_strided_slice %383 {offsets = [0, 48], sizes = [8, 24], strides = [1, 1]} : vector<8x72xf32> to vector<8x24xf32>
    %392 = math.tanh %390 : vector<8x24xf32>
    %393 = arith.mulf %391, %392 : vector<8x24xf32>
    %394 = arith.index_cast %368 : i32 to index
    %c0_140 = arith.constant 0 : index
    %395 = vector.load %arg9[%394, %c0_140] : memref<64x48xf32, #tpu.memory_space<vmem>>, vector<8x24xf32>
    tpu.vector_store %arg9[%394, %c0_140], %393 {strides = array<i32>} : memref<64x48xf32, #tpu.memory_space<vmem>>, vector<8x24xf32>,
    %396 = vector.extract_strided_slice %393 {offsets = [0, 12], sizes = [8, 12], strides = [1, 1]} : vector<8x24xf32> to vector<8x12xf32>
    %397 = vector.extract_strided_slice %393 {offsets = [0, 0], sizes = [8, 12], strides = [1, 1]} : vector<8x24xf32> to vector<8x12xf32>
    %398 = tpu.concatenate %396, %397 in 1 : vector<8x12xf32>, vector<8x12xf32> -> vector<8x24xf32>
    %399 = arith.index_cast %371 : i32 to index
    %c24_141 = arith.constant 24 : index
    %400 = vector.load %arg9[%399, %c24_141] : memref<64x48xf32, #tpu.memory_space<vmem>>, vector<8x24xf32>
    tpu.vector_store %arg9[%399, %c24_141], %398 {strides = array<i32>} : memref<64x48xf32, #tpu.memory_space<vmem>>, vector<8x24xf32>,
    %c3_i32_142 = arith.constant 3 : i32
    %c8_i32_143 = arith.constant 8 : i32
    %401 = arith.muli %c3_i32_142, %c8_i32_143 : i32
    %402 = tpu.assume_multiple %401, 8 : i32
    %c7_i32_144 = arith.constant 7 : i32
    %403 = arith.subi %c7_i32_144, %c3_i32_142 : i32
    %c8_i32_145 = arith.constant 8 : i32
    %404 = arith.muli %403, %c8_i32_145 : i32
    %405 = tpu.assume_multiple %404, 8 : i32
    %cst_146 = arith.constant dense<0.000000e+00> : vector<8x96xf32>
    %406 = tpu.matmul %393, %296, %cst_146 {dimension_numbers = #tpu.dot_dimension_numbers<[1], [0], [0], [1], [0, 0, 1, 1], [], []>} : vector<8x24xf32>, vector<24x96xf32>, vector<8x96xf32> -> vector<8x96xf32>
    %407 = arith.index_cast %402 : i32 to index
    %c0_147 = arith.constant 0 : index
    %408 = vector.load %arg10[%407, %c0_147] : memref<64x96xf32, #tpu.memory_space<vmem>>, vector<8x96xf32>
    %409 = arith.addf %406, %408 : vector<8x96xf32>
    %410 = vector.extract_strided_slice %409 {offsets = [0, 0], sizes = [8, 72], strides = [1, 1]} : vector<8x96xf32> to vector<8x72xf32>
    %cst_148 = arith.constant 5.000000e-01 : f32
    %411 = vector.broadcast %cst_148 : f32 to vector<8x72xf32>
    %412 = arith.mulf %411, %410 : vector<8x72xf32>
    %413 = math.tanh %412 : vector<8x72xf32>
    %cst_149 = arith.constant 5.000000e-01 : f32
    %414 = vector.broadcast %cst_149 : f32 to vector<8x72xf32>
    %415 = arith.mulf %414, %413 : vector<8x72xf32>
    %cst_150 = arith.constant 5.000000e-01 : f32
    %416 = vector.broadcast %cst_150 : f32 to vector<8x72xf32>
    %417 = arith.addf %415, %416 : vector<8x72xf32>
    %418 = vector.extract_strided_slice %409 {offsets = [0, 72], sizes = [8, 24], strides = [1, 1]} : vector<8x96xf32> to vector<8x24xf32>
    %419 = math.tanh %418 : vector<8x24xf32>
    %420 = vector.extract_strided_slice %417 {offsets = [0, 24], sizes = [8, 24], strides = [1, 1]} : vector<8x72xf32> to vector<8x24xf32>
    %421 = arith.mulf %420, %390 : vector<8x24xf32>
    %422 = vector.extract_strided_slice %417 {offsets = [0, 0], sizes = [8, 24], strides = [1, 1]} : vector<8x72xf32> to vector<8x24xf32>
    %423 = arith.mulf %422, %419 : vector<8x24xf32>
    %424 = arith.addf %421, %423 : vector<8x24xf32>
    %425 = vector.extract_strided_slice %417 {offsets = [0, 48], sizes = [8, 24], strides = [1, 1]} : vector<8x72xf32> to vector<8x24xf32>
    %426 = math.tanh %424 : vector<8x24xf32>
    %427 = arith.mulf %425, %426 : vector<8x24xf32>
    %428 = arith.index_cast %402 : i32 to index
    %c0_151 = arith.constant 0 : index
    %429 = vector.load %arg9[%428, %c0_151] : memref<64x48xf32, #tpu.memory_space<vmem>>, vector<8x24xf32>
    tpu.vector_store %arg9[%428, %c0_151], %427 {strides = array<i32>} : memref<64x48xf32, #tpu.memory_space<vmem>>, vector<8x24xf32>,
    %430 = vector.extract_strided_slice %427 {offsets = [0, 12], sizes = [8, 12], strides = [1, 1]} : vector<8x24xf32> to vector<8x12xf32>
    %431 = vector.extract_strided_slice %427 {offsets = [0, 0], sizes = [8, 12], strides = [1, 1]} : vector<8x24xf32> to vector<8x12xf32>
    %432 = tpu.concatenate %430, %431 in 1 : vector<8x12xf32>, vector<8x12xf32> -> vector<8x24xf32>
    %433 = arith.index_cast %405 : i32 to index
    %c24_152 = arith.constant 24 : index
    %434 = vector.load %arg9[%433, %c24_152] : memref<64x48xf32, #tpu.memory_space<vmem>>, vector<8x24xf32>
    tpu.vector_store %arg9[%433, %c24_152], %432 {strides = array<i32>} : memref<64x48xf32, #tpu.memory_space<vmem>>, vector<8x24xf32>,
    %c4_i32_153 = arith.constant 4 : i32
    %c8_i32_154 = arith.constant 8 : i32
    %435 = arith.muli %c4_i32_153, %c8_i32_154 : i32
    %436 = tpu.assume_multiple %435, 8 : i32
    %c7_i32_155 = arith.constant 7 : i32
    %437 = arith.subi %c7_i32_155, %c4_i32_153 : i32
    %c8_i32_156 = arith.constant 8 : i32
    %438 = arith.muli %437, %c8_i32_156 : i32
    %439 = tpu.assume_multiple %438, 8 : i32
    %cst_157 = arith.constant dense<0.000000e+00> : vector<8x96xf32>
    %440 = tpu.matmul %427, %296, %cst_157 {dimension_numbers = #tpu.dot_dimension_numbers<[1], [0], [0], [1], [0, 0, 1, 1], [], []>} : vector<8x24xf32>, vector<24x96xf32>, vector<8x96xf32> -> vector<8x96xf32>
    %441 = arith.index_cast %436 : i32 to index
    %c0_158 = arith.constant 0 : index
    %442 = vector.load %arg10[%441, %c0_158] : memref<64x96xf32, #tpu.memory_space<vmem>>, vector<8x96xf32>
    %443 = arith.addf %440, %442 : vector<8x96xf32>
    %444 = vector.extract_strided_slice %443 {offsets = [0, 0], sizes = [8, 72], strides = [1, 1]} : vector<8x96xf32> to vector<8x72xf32>
    %cst_159 = arith.constant 5.000000e-01 : f32
    %445 = vector.broadcast %cst_159 : f32 to vector<8x72xf32>
    %446 = arith.mulf %445, %444 : vector<8x72xf32>
    %447 = math.tanh %446 : vector<8x72xf32>
    %cst_160 = arith.constant 5.000000e-01 : f32
    %448 = vector.broadcast %cst_160 : f32 to vector<8x72xf32>
    %449 = arith.mulf %448, %447 : vector<8x72xf32>
    %cst_161 = arith.constant 5.000000e-01 : f32
    %450 = vector.broadcast %cst_161 : f32 to vector<8x72xf32>
    %451 = arith.addf %449, %450 : vector<8x72xf32>
    %452 = vector.extract_strided_slice %443 {offsets = [0, 72], sizes = [8, 24], strides = [1, 1]} : vector<8x96xf32> to vector<8x24xf32>
    %453 = math.tanh %452 : vector<8x24xf32>
    %454 = vector.extract_strided_slice %451 {offsets = [0, 24], sizes = [8, 24], strides = [1, 1]} : vector<8x72xf32> to vector<8x24xf32>
    %455 = arith.mulf %454, %424 : vector<8x24xf32>
    %456 = vector.extract_strided_slice %451 {offsets = [0, 0], sizes = [8, 24], strides = [1, 1]} : vector<8x72xf32> to vector<8x24xf32>
    %457 = arith.mulf %456, %453 : vector<8x24xf32>
    %458 = arith.addf %455, %457 : vector<8x24xf32>
    %459 = vector.extract_strided_slice %451 {offsets = [0, 48], sizes = [8, 24], strides = [1, 1]} : vector<8x72xf32> to vector<8x24xf32>
    %460 = math.tanh %458 : vector<8x24xf32>
    %461 = arith.mulf %459, %460 : vector<8x24xf32>
    %462 = arith.index_cast %436 : i32 to index
    %c0_162 = arith.constant 0 : index
    %463 = vector.load %arg9[%462, %c0_162] : memref<64x48xf32, #tpu.memory_space<vmem>>, vector<8x24xf32>
    tpu.vector_store %arg9[%462, %c0_162], %461 {strides = array<i32>} : memref<64x48xf32, #tpu.memory_space<vmem>>, vector<8x24xf32>,
    %464 = vector.extract_strided_slice %461 {offsets = [0, 12], sizes = [8, 12], strides = [1, 1]} : vector<8x24xf32> to vector<8x12xf32>
    %465 = vector.extract_strided_slice %461 {offsets = [0, 0], sizes = [8, 12], strides = [1, 1]} : vector<8x24xf32> to vector<8x12xf32>
    %466 = tpu.concatenate %464, %465 in 1 : vector<8x12xf32>, vector<8x12xf32> -> vector<8x24xf32>
    %467 = arith.index_cast %439 : i32 to index
    %c24_163 = arith.constant 24 : index
    %468 = vector.load %arg9[%467, %c24_163] : memref<64x48xf32, #tpu.memory_space<vmem>>, vector<8x24xf32>
    tpu.vector_store %arg9[%467, %c24_163], %466 {strides = array<i32>} : memref<64x48xf32, #tpu.memory_space<vmem>>, vector<8x24xf32>,
    %c5_i32_164 = arith.constant 5 : i32
    %c8_i32_165 = arith.constant 8 : i32
    %469 = arith.muli %c5_i32_164, %c8_i32_165 : i32
    %470 = tpu.assume_multiple %469, 8 : i32
    %c7_i32_166 = arith.constant 7 : i32
    %471 = arith.subi %c7_i32_166, %c5_i32_164 : i32
    %c8_i32_167 = arith.constant 8 : i32
    %472 = arith.muli %471, %c8_i32_167 : i32
    %473 = tpu.assume_multiple %472, 8 : i32
    %cst_168 = arith.constant dense<0.000000e+00> : vector<8x96xf32>
    %474 = tpu.matmul %461, %296, %cst_168 {dimension_numbers = #tpu.dot_dimension_numbers<[1], [0], [0], [1], [0, 0, 1, 1], [], []>} : vector<8x24xf32>, vector<24x96xf32>, vector<8x96xf32> -> vector<8x96xf32>
    %475 = arith.index_cast %470 : i32 to index
    %c0_169 = arith.constant 0 : index
    %476 = vector.load %arg10[%475, %c0_169] : memref<64x96xf32, #tpu.memory_space<vmem>>, vector<8x96xf32>
    %477 = arith.addf %474, %476 : vector<8x96xf32>
    %478 = vector.extract_strided_slice %477 {offsets = [0, 0], sizes = [8, 72], strides = [1, 1]} : vector<8x96xf32> to vector<8x72xf32>
    %cst_170 = arith.constant 5.000000e-01 : f32
    %479 = vector.broadcast %cst_170 : f32 to vector<8x72xf32>
    %480 = arith.mulf %479, %478 : vector<8x72xf32>
    %481 = math.tanh %480 : vector<8x72xf32>
    %cst_171 = arith.constant 5.000000e-01 : f32
    %482 = vector.broadcast %cst_171 : f32 to vector<8x72xf32>
    %483 = arith.mulf %482, %481 : vector<8x72xf32>
    %cst_172 = arith.constant 5.000000e-01 : f32
    %484 = vector.broadcast %cst_172 : f32 to vector<8x72xf32>
    %485 = arith.addf %483, %484 : vector<8x72xf32>
    %486 = vector.extract_strided_slice %477 {offsets = [0, 72], sizes = [8, 24], strides = [1, 1]} : vector<8x96xf32> to vector<8x24xf32>
    %487 = math.tanh %486 : vector<8x24xf32>
    %488 = vector.extract_strided_slice %485 {offsets = [0, 24], sizes = [8, 24], strides = [1, 1]} : vector<8x72xf32> to vector<8x24xf32>
    %489 = arith.mulf %488, %458 : vector<8x24xf32>
    %490 = vector.extract_strided_slice %485 {offsets = [0, 0], sizes = [8, 24], strides = [1, 1]} : vector<8x72xf32> to vector<8x24xf32>
    %491 = arith.mulf %490, %487 : vector<8x24xf32>
    %492 = arith.addf %489, %491 : vector<8x24xf32>
    %493 = vector.extract_strided_slice %485 {offsets = [0, 48], sizes = [8, 24], strides = [1, 1]} : vector<8x72xf32> to vector<8x24xf32>
    %494 = math.tanh %492 : vector<8x24xf32>
    %495 = arith.mulf %493, %494 : vector<8x24xf32>
    %496 = arith.index_cast %470 : i32 to index
    %c0_173 = arith.constant 0 : index
    %497 = vector.load %arg9[%496, %c0_173] : memref<64x48xf32, #tpu.memory_space<vmem>>, vector<8x24xf32>
    tpu.vector_store %arg9[%496, %c0_173], %495 {strides = array<i32>} : memref<64x48xf32, #tpu.memory_space<vmem>>, vector<8x24xf32>,
    %498 = vector.extract_strided_slice %495 {offsets = [0, 12], sizes = [8, 12], strides = [1, 1]} : vector<8x24xf32> to vector<8x12xf32>
    %499 = vector.extract_strided_slice %495 {offsets = [0, 0], sizes = [8, 12], strides = [1, 1]} : vector<8x24xf32> to vector<8x12xf32>
    %500 = tpu.concatenate %498, %499 in 1 : vector<8x12xf32>, vector<8x12xf32> -> vector<8x24xf32>
    %501 = arith.index_cast %473 : i32 to index
    %c24_174 = arith.constant 24 : index
    %502 = vector.load %arg9[%501, %c24_174] : memref<64x48xf32, #tpu.memory_space<vmem>>, vector<8x24xf32>
    tpu.vector_store %arg9[%501, %c24_174], %500 {strides = array<i32>} : memref<64x48xf32, #tpu.memory_space<vmem>>, vector<8x24xf32>,
    %c6_i32_175 = arith.constant 6 : i32
    %c8_i32_176 = arith.constant 8 : i32
    %503 = arith.muli %c6_i32_175, %c8_i32_176 : i32
    %504 = tpu.assume_multiple %503, 8 : i32
    %c7_i32_177 = arith.constant 7 : i32
    %505 = arith.subi %c7_i32_177, %c6_i32_175 : i32
    %c8_i32_178 = arith.constant 8 : i32
    %506 = arith.muli %505, %c8_i32_178 : i32
    %507 = tpu.assume_multiple %506, 8 : i32
    %cst_179 = arith.constant dense<0.000000e+00> : vector<8x96xf32>
    %508 = tpu.matmul %495, %296, %cst_179 {dimension_numbers = #tpu.dot_dimension_numbers<[1], [0], [0], [1], [0, 0, 1, 1], [], []>} : vector<8x24xf32>, vector<24x96xf32>, vector<8x96xf32> -> vector<8x96xf32>
    %509 = arith.index_cast %504 : i32 to index
    %c0_180 = arith.constant 0 : index
    %510 = vector.load %arg10[%509, %c0_180] : memref<64x96xf32, #tpu.memory_space<vmem>>, vector<8x96xf32>
    %511 = arith.addf %508, %510 : vector<8x96xf32>
    %512 = vector.extract_strided_slice %511 {offsets = [0, 0], sizes = [8, 72], strides = [1, 1]} : vector<8x96xf32> to vector<8x72xf32>
    %cst_181 = arith.constant 5.000000e-01 : f32
    %513 = vector.broadcast %cst_181 : f32 to vector<8x72xf32>
    %514 = arith.mulf %513, %512 : vector<8x72xf32>
    %515 = math.tanh %514 : vector<8x72xf32>
    %cst_182 = arith.constant 5.000000e-01 : f32
    %516 = vector.broadcast %cst_182 : f32 to vector<8x72xf32>
    %517 = arith.mulf %516, %515 : vector<8x72xf32>
    %cst_183 = arith.constant 5.000000e-01 : f32
    %518 = vector.broadcast %cst_183 : f32 to vector<8x72xf32>
    %519 = arith.addf %517, %518 : vector<8x72xf32>
    %520 = vector.extract_strided_slice %511 {offsets = [0, 72], sizes = [8, 24], strides = [1, 1]} : vector<8x96xf32> to vector<8x24xf32>
    %521 = math.tanh %520 : vector<8x24xf32>
    %522 = vector.extract_strided_slice %519 {offsets = [0, 24], sizes = [8, 24], strides = [1, 1]} : vector<8x72xf32> to vector<8x24xf32>
    %523 = arith.mulf %522, %492 : vector<8x24xf32>
    %524 = vector.extract_strided_slice %519 {offsets = [0, 0], sizes = [8, 24], strides = [1, 1]} : vector<8x72xf32> to vector<8x24xf32>
    %525 = arith.mulf %524, %521 : vector<8x24xf32>
    %526 = arith.addf %523, %525 : vector<8x24xf32>
    %527 = vector.extract_strided_slice %519 {offsets = [0, 48], sizes = [8, 24], strides = [1, 1]} : vector<8x72xf32> to vector<8x24xf32>
    %528 = math.tanh %526 : vector<8x24xf32>
    %529 = arith.mulf %527, %528 : vector<8x24xf32>
    %530 = arith.index_cast %504 : i32 to index
    %c0_184 = arith.constant 0 : index
    %531 = vector.load %arg9[%530, %c0_184] : memref<64x48xf32, #tpu.memory_space<vmem>>, vector<8x24xf32>
    tpu.vector_store %arg9[%530, %c0_184], %529 {strides = array<i32>} : memref<64x48xf32, #tpu.memory_space<vmem>>, vector<8x24xf32>,
    %532 = vector.extract_strided_slice %529 {offsets = [0, 12], sizes = [8, 12], strides = [1, 1]} : vector<8x24xf32> to vector<8x12xf32>
    %533 = vector.extract_strided_slice %529 {offsets = [0, 0], sizes = [8, 12], strides = [1, 1]} : vector<8x24xf32> to vector<8x12xf32>
    %534 = tpu.concatenate %532, %533 in 1 : vector<8x12xf32>, vector<8x12xf32> -> vector<8x24xf32>
    %535 = arith.index_cast %507 : i32 to index
    %c24_185 = arith.constant 24 : index
    %536 = vector.load %arg9[%535, %c24_185] : memref<64x48xf32, #tpu.memory_space<vmem>>, vector<8x24xf32>
    tpu.vector_store %arg9[%535, %c24_185], %534 {strides = array<i32>} : memref<64x48xf32, #tpu.memory_space<vmem>>, vector<8x24xf32>,
    %c7_i32_186 = arith.constant 7 : i32
    %c8_i32_187 = arith.constant 8 : i32
    %537 = arith.muli %c7_i32_186, %c8_i32_187 : i32
    %538 = tpu.assume_multiple %537, 8 : i32
    %c7_i32_188 = arith.constant 7 : i32
    %539 = arith.subi %c7_i32_188, %c7_i32_186 : i32
    %c8_i32_189 = arith.constant 8 : i32
    %540 = arith.muli %539, %c8_i32_189 : i32
    %541 = tpu.assume_multiple %540, 8 : i32
    %cst_190 = arith.constant dense<0.000000e+00> : vector<8x96xf32>
    %542 = tpu.matmul %529, %296, %cst_190 {dimension_numbers = #tpu.dot_dimension_numbers<[1], [0], [0], [1], [0, 0, 1, 1], [], []>} : vector<8x24xf32>, vector<24x96xf32>, vector<8x96xf32> -> vector<8x96xf32>
    %543 = arith.index_cast %538 : i32 to index
    %c0_191 = arith.constant 0 : index
    %544 = vector.load %arg10[%543, %c0_191] : memref<64x96xf32, #tpu.memory_space<vmem>>, vector<8x96xf32>
    %545 = arith.addf %542, %544 : vector<8x96xf32>
    %546 = vector.extract_strided_slice %545 {offsets = [0, 0], sizes = [8, 72], strides = [1, 1]} : vector<8x96xf32> to vector<8x72xf32>
    %cst_192 = arith.constant 5.000000e-01 : f32
    %547 = vector.broadcast %cst_192 : f32 to vector<8x72xf32>
    %548 = arith.mulf %547, %546 : vector<8x72xf32>
    %549 = math.tanh %548 : vector<8x72xf32>
    %cst_193 = arith.constant 5.000000e-01 : f32
    %550 = vector.broadcast %cst_193 : f32 to vector<8x72xf32>
    %551 = arith.mulf %550, %549 : vector<8x72xf32>
    %cst_194 = arith.constant 5.000000e-01 : f32
    %552 = vector.broadcast %cst_194 : f32 to vector<8x72xf32>
    %553 = arith.addf %551, %552 : vector<8x72xf32>
    %554 = vector.extract_strided_slice %545 {offsets = [0, 72], sizes = [8, 24], strides = [1, 1]} : vector<8x96xf32> to vector<8x24xf32>
    %555 = math.tanh %554 : vector<8x24xf32>
    %556 = vector.extract_strided_slice %553 {offsets = [0, 24], sizes = [8, 24], strides = [1, 1]} : vector<8x72xf32> to vector<8x24xf32>
    %557 = arith.mulf %556, %526 : vector<8x24xf32>
    %558 = vector.extract_strided_slice %553 {offsets = [0, 0], sizes = [8, 24], strides = [1, 1]} : vector<8x72xf32> to vector<8x24xf32>
    %559 = arith.mulf %558, %555 : vector<8x24xf32>
    %560 = arith.addf %557, %559 : vector<8x24xf32>
    %561 = vector.extract_strided_slice %553 {offsets = [0, 48], sizes = [8, 24], strides = [1, 1]} : vector<8x72xf32> to vector<8x24xf32>
    %562 = math.tanh %560 : vector<8x24xf32>
    %563 = arith.mulf %561, %562 : vector<8x24xf32>
    %564 = arith.index_cast %538 : i32 to index
    %c0_195 = arith.constant 0 : index
    %565 = vector.load %arg9[%564, %c0_195] : memref<64x48xf32, #tpu.memory_space<vmem>>, vector<8x24xf32>
    tpu.vector_store %arg9[%564, %c0_195], %563 {strides = array<i32>} : memref<64x48xf32, #tpu.memory_space<vmem>>, vector<8x24xf32>,
    %566 = vector.extract_strided_slice %563 {offsets = [0, 12], sizes = [8, 12], strides = [1, 1]} : vector<8x24xf32> to vector<8x12xf32>
    %567 = vector.extract_strided_slice %563 {offsets = [0, 0], sizes = [8, 12], strides = [1, 1]} : vector<8x24xf32> to vector<8x12xf32>
    %568 = tpu.concatenate %566, %567 in 1 : vector<8x12xf32>, vector<8x12xf32> -> vector<8x24xf32>
    %569 = arith.index_cast %541 : i32 to index
    %c24_196 = arith.constant 24 : index
    %570 = vector.load %arg9[%569, %c24_196] : memref<64x48xf32, #tpu.memory_space<vmem>>, vector<8x24xf32>
    tpu.vector_store %arg9[%569, %c24_196], %568 {strides = array<i32>} : memref<64x48xf32, #tpu.memory_space<vmem>>, vector<8x24xf32>,
    %c8_i32_197 = arith.constant 8 : i32
    %c0_198 = arith.constant 0 : index
    %c0_199 = arith.constant 0 : index
    %571 = vector.load %arg9[%c0_198, %c0_199] : memref<64x48xf32, #tpu.memory_space<vmem>>, vector<64x48xf32>
    %c2 = arith.constant 2 : index
    %c0_200 = arith.constant 0 : index
    %c0_201 = arith.constant 0 : index
    %572 = vector.load %arg2[%c2, %c0_200, %c0_201] : memref<3x48x96xf32, #tpu.memory_space<vmem>>, vector<1x48x96xf32>
    %573 = vector.shape_cast %572 : vector<1x48x96xf32> to vector<48x96xf32>
    %cst_202 = arith.constant dense<0.000000e+00> : vector<64x96xf32>
    %574 = tpu.matmul %571, %573, %cst_202 {dimension_numbers = #tpu.dot_dimension_numbers<[1], [0], [0], [1], [0, 0, 1, 1], [], []>} : vector<64x48xf32>, vector<48x96xf32>, vector<64x96xf32> -> vector<64x96xf32>
    %c2_203 = arith.constant 2 : index
    %c0_204 = arith.constant 0 : index
    %c0_205 = arith.constant 0 : index
    %575 = vector.load %arg4[%c2_203, %c0_204, %c0_205] : memref<3x1x96xf32, #tpu.memory_space<vmem>>, vector<1x1x96xf32>
    %576 = vector.shape_cast %575 : vector<1x1x96xf32> to vector<1x96xf32>
    %577 = vector.broadcast %576 : vector<1x96xf32> to vector<64x96xf32>
    %578 = arith.addf %574, %577 : vector<64x96xf32>
    %c0_206 = arith.constant 0 : index
    %c0_207 = arith.constant 0 : index
    %579 = vector.load %arg10[%c0_206, %c0_207] : memref<64x96xf32, #tpu.memory_space<vmem>>, vector<64x96xf32>
    tpu.vector_store %arg10[%c0_206, %c0_207], %578 {strides = array<i32>} : memref<64x96xf32, #tpu.memory_space<vmem>>, vector<64x96xf32>,
    %c2_208 = arith.constant 2 : index
    %c0_209 = arith.constant 0 : index
    %c0_210 = arith.constant 0 : index
    %580 = vector.load %arg3[%c2_208, %c0_209, %c0_210] : memref<3x24x96xf32, #tpu.memory_space<vmem>>, vector<1x24x96xf32>
    %581 = vector.shape_cast %580 : vector<1x24x96xf32> to vector<24x96xf32>
    %cst_211 = arith.constant 0.000000e+00 : f32
    %582 = vector.broadcast %cst_211 : f32 to vector<8x24xf32>
    %cst_212 = arith.constant 0.000000e+00 : f32
    %583 = vector.broadcast %cst_212 : f32 to vector<8x24xf32>
    %c0_i32_213 = arith.constant 0 : i32
    %c8_i32_214 = arith.constant 8 : i32
    %584 = arith.muli %c0_i32_213, %c8_i32_214 : i32
    %585 = tpu.assume_multiple %584, 8 : i32
    %c7_i32_215 = arith.constant 7 : i32
    %586 = arith.subi %c7_i32_215, %c0_i32_213 : i32
    %c8_i32_216 = arith.constant 8 : i32
    %587 = arith.muli %586, %c8_i32_216 : i32
    %588 = tpu.assume_multiple %587, 8 : i32
    %cst_217 = arith.constant dense<0.000000e+00> : vector<8x96xf32>
    %589 = tpu.matmul %582, %581, %cst_217 {dimension_numbers = #tpu.dot_dimension_numbers<[1], [0], [0], [1], [0, 0, 1, 1], [], []>} : vector<8x24xf32>, vector<24x96xf32>, vector<8x96xf32> -> vector<8x96xf32>
    %590 = arith.index_cast %585 : i32 to index
    %c0_218 = arith.constant 0 : index
    %591 = vector.load %arg10[%590, %c0_218] : memref<64x96xf32, #tpu.memory_space<vmem>>, vector<8x96xf32>
    %592 = arith.addf %589, %591 : vector<8x96xf32>
    %593 = vector.extract_strided_slice %592 {offsets = [0, 0], sizes = [8, 72], strides = [1, 1]} : vector<8x96xf32> to vector<8x72xf32>
    %cst_219 = arith.constant 5.000000e-01 : f32
    %594 = vector.broadcast %cst_219 : f32 to vector<8x72xf32>
    %595 = arith.mulf %594, %593 : vector<8x72xf32>
    %596 = math.tanh %595 : vector<8x72xf32>
    %cst_220 = arith.constant 5.000000e-01 : f32
    %597 = vector.broadcast %cst_220 : f32 to vector<8x72xf32>
    %598 = arith.mulf %597, %596 : vector<8x72xf32>
    %cst_221 = arith.constant 5.000000e-01 : f32
    %599 = vector.broadcast %cst_221 : f32 to vector<8x72xf32>
    %600 = arith.addf %598, %599 : vector<8x72xf32>
    %601 = vector.extract_strided_slice %592 {offsets = [0, 72], sizes = [8, 24], strides = [1, 1]} : vector<8x96xf32> to vector<8x24xf32>
    %602 = math.tanh %601 : vector<8x24xf32>
    %603 = vector.extract_strided_slice %600 {offsets = [0, 24], sizes = [8, 24], strides = [1, 1]} : vector<8x72xf32> to vector<8x24xf32>
    %604 = arith.mulf %603, %583 : vector<8x24xf32>
    %605 = vector.extract_strided_slice %600 {offsets = [0, 0], sizes = [8, 24], strides = [1, 1]} : vector<8x72xf32> to vector<8x24xf32>
    %606 = arith.mulf %605, %602 : vector<8x24xf32>
    %607 = arith.addf %604, %606 : vector<8x24xf32>
    %608 = vector.extract_strided_slice %600 {offsets = [0, 48], sizes = [8, 24], strides = [1, 1]} : vector<8x72xf32> to vector<8x24xf32>
    %609 = math.tanh %607 : vector<8x24xf32>
    %610 = arith.mulf %608, %609 : vector<8x24xf32>
    %611 = vector.extract_strided_slice %610 {offsets = [0, 0], sizes = [8, 12], strides = [1, 1]} : vector<8x24xf32> to vector<8x12xf32>
    %612 = arith.index_cast %585 : i32 to index
    %c0_222 = arith.constant 0 : index
    %613 = vector.load %arg8[%612, %c0_222] : memref<64x48xf32, #tpu.memory_space<vmem>>, vector<8x12xf32>
    tpu.vector_store %arg8[%612, %c0_222], %611 {strides = array<i32>} : memref<64x48xf32, #tpu.memory_space<vmem>>, vector<8x12xf32>,
    %614 = vector.extract_strided_slice %610 {offsets = [0, 12], sizes = [8, 12], strides = [1, 1]} : vector<8x24xf32> to vector<8x12xf32>
    %615 = arith.index_cast %588 : i32 to index
    %c12 = arith.constant 12 : index
    %616 = vector.load %arg8[%615, %c12] : memref<64x48xf32, #tpu.memory_space<vmem>>, vector<8x12xf32>
    tpu.vector_store %arg8[%615, %c12], %614 {strides = array<i32>} : memref<64x48xf32, #tpu.memory_space<vmem>>, vector<8x12xf32>,
    %c1_i32_223 = arith.constant 1 : i32
    %c8_i32_224 = arith.constant 8 : i32
    %617 = arith.muli %c1_i32_223, %c8_i32_224 : i32
    %618 = tpu.assume_multiple %617, 8 : i32
    %c7_i32_225 = arith.constant 7 : i32
    %619 = arith.subi %c7_i32_225, %c1_i32_223 : i32
    %c8_i32_226 = arith.constant 8 : i32
    %620 = arith.muli %619, %c8_i32_226 : i32
    %621 = tpu.assume_multiple %620, 8 : i32
    %cst_227 = arith.constant dense<0.000000e+00> : vector<8x96xf32>
    %622 = tpu.matmul %610, %581, %cst_227 {dimension_numbers = #tpu.dot_dimension_numbers<[1], [0], [0], [1], [0, 0, 1, 1], [], []>} : vector<8x24xf32>, vector<24x96xf32>, vector<8x96xf32> -> vector<8x96xf32>
    %623 = arith.index_cast %618 : i32 to index
    %c0_228 = arith.constant 0 : index
    %624 = vector.load %arg10[%623, %c0_228] : memref<64x96xf32, #tpu.memory_space<vmem>>, vector<8x96xf32>
    %625 = arith.addf %622, %624 : vector<8x96xf32>
    %626 = vector.extract_strided_slice %625 {offsets = [0, 0], sizes = [8, 72], strides = [1, 1]} : vector<8x96xf32> to vector<8x72xf32>
    %cst_229 = arith.constant 5.000000e-01 : f32
    %627 = vector.broadcast %cst_229 : f32 to vector<8x72xf32>
    %628 = arith.mulf %627, %626 : vector<8x72xf32>
    %629 = math.tanh %628 : vector<8x72xf32>
    %cst_230 = arith.constant 5.000000e-01 : f32
    %630 = vector.broadcast %cst_230 : f32 to vector<8x72xf32>
    %631 = arith.mulf %630, %629 : vector<8x72xf32>
    %cst_231 = arith.constant 5.000000e-01 : f32
    %632 = vector.broadcast %cst_231 : f32 to vector<8x72xf32>
    %633 = arith.addf %631, %632 : vector<8x72xf32>
    %634 = vector.extract_strided_slice %625 {offsets = [0, 72], sizes = [8, 24], strides = [1, 1]} : vector<8x96xf32> to vector<8x24xf32>
    %635 = math.tanh %634 : vector<8x24xf32>
    %636 = vector.extract_strided_slice %633 {offsets = [0, 24], sizes = [8, 24], strides = [1, 1]} : vector<8x72xf32> to vector<8x24xf32>
    %637 = arith.mulf %636, %607 : vector<8x24xf32>
    %638 = vector.extract_strided_slice %633 {offsets = [0, 0], sizes = [8, 24], strides = [1, 1]} : vector<8x72xf32> to vector<8x24xf32>
    %639 = arith.mulf %638, %635 : vector<8x24xf32>
    %640 = arith.addf %637, %639 : vector<8x24xf32>
    %641 = vector.extract_strided_slice %633 {offsets = [0, 48], sizes = [8, 24], strides = [1, 1]} : vector<8x72xf32> to vector<8x24xf32>
    %642 = math.tanh %640 : vector<8x24xf32>
    %643 = arith.mulf %641, %642 : vector<8x24xf32>
    %644 = vector.extract_strided_slice %643 {offsets = [0, 0], sizes = [8, 12], strides = [1, 1]} : vector<8x24xf32> to vector<8x12xf32>
    %645 = arith.index_cast %618 : i32 to index
    %c0_232 = arith.constant 0 : index
    %646 = vector.load %arg8[%645, %c0_232] : memref<64x48xf32, #tpu.memory_space<vmem>>, vector<8x12xf32>
    tpu.vector_store %arg8[%645, %c0_232], %644 {strides = array<i32>} : memref<64x48xf32, #tpu.memory_space<vmem>>, vector<8x12xf32>,
    %647 = vector.extract_strided_slice %643 {offsets = [0, 12], sizes = [8, 12], strides = [1, 1]} : vector<8x24xf32> to vector<8x12xf32>
    %648 = arith.index_cast %621 : i32 to index
    %c12_233 = arith.constant 12 : index
    %649 = vector.load %arg8[%648, %c12_233] : memref<64x48xf32, #tpu.memory_space<vmem>>, vector<8x12xf32>
    tpu.vector_store %arg8[%648, %c12_233], %647 {strides = array<i32>} : memref<64x48xf32, #tpu.memory_space<vmem>>, vector<8x12xf32>,
    %c2_i32_234 = arith.constant 2 : i32
    %c8_i32_235 = arith.constant 8 : i32
    %650 = arith.muli %c2_i32_234, %c8_i32_235 : i32
    %651 = tpu.assume_multiple %650, 8 : i32
    %c7_i32_236 = arith.constant 7 : i32
    %652 = arith.subi %c7_i32_236, %c2_i32_234 : i32
    %c8_i32_237 = arith.constant 8 : i32
    %653 = arith.muli %652, %c8_i32_237 : i32
    %654 = tpu.assume_multiple %653, 8 : i32
    %cst_238 = arith.constant dense<0.000000e+00> : vector<8x96xf32>
    %655 = tpu.matmul %643, %581, %cst_238 {dimension_numbers = #tpu.dot_dimension_numbers<[1], [0], [0], [1], [0, 0, 1, 1], [], []>} : vector<8x24xf32>, vector<24x96xf32>, vector<8x96xf32> -> vector<8x96xf32>
    %656 = arith.index_cast %651 : i32 to index
    %c0_239 = arith.constant 0 : index
    %657 = vector.load %arg10[%656, %c0_239] : memref<64x96xf32, #tpu.memory_space<vmem>>, vector<8x96xf32>
    %658 = arith.addf %655, %657 : vector<8x96xf32>
    %659 = vector.extract_strided_slice %658 {offsets = [0, 0], sizes = [8, 72], strides = [1, 1]} : vector<8x96xf32> to vector<8x72xf32>
    %cst_240 = arith.constant 5.000000e-01 : f32
    %660 = vector.broadcast %cst_240 : f32 to vector<8x72xf32>
    %661 = arith.mulf %660, %659 : vector<8x72xf32>
    %662 = math.tanh %661 : vector<8x72xf32>
    %cst_241 = arith.constant 5.000000e-01 : f32
    %663 = vector.broadcast %cst_241 : f32 to vector<8x72xf32>
    %664 = arith.mulf %663, %662 : vector<8x72xf32>
    %cst_242 = arith.constant 5.000000e-01 : f32
    %665 = vector.broadcast %cst_242 : f32 to vector<8x72xf32>
    %666 = arith.addf %664, %665 : vector<8x72xf32>
    %667 = vector.extract_strided_slice %658 {offsets = [0, 72], sizes = [8, 24], strides = [1, 1]} : vector<8x96xf32> to vector<8x24xf32>
    %668 = math.tanh %667 : vector<8x24xf32>
    %669 = vector.extract_strided_slice %666 {offsets = [0, 24], sizes = [8, 24], strides = [1, 1]} : vector<8x72xf32> to vector<8x24xf32>
    %670 = arith.mulf %669, %640 : vector<8x24xf32>
    %671 = vector.extract_strided_slice %666 {offsets = [0, 0], sizes = [8, 24], strides = [1, 1]} : vector<8x72xf32> to vector<8x24xf32>
    %672 = arith.mulf %671, %668 : vector<8x24xf32>
    %673 = arith.addf %670, %672 : vector<8x24xf32>
    %674 = vector.extract_strided_slice %666 {offsets = [0, 48], sizes = [8, 24], strides = [1, 1]} : vector<8x72xf32> to vector<8x24xf32>
    %675 = math.tanh %673 : vector<8x24xf32>
    %676 = arith.mulf %674, %675 : vector<8x24xf32>
    %677 = vector.extract_strided_slice %676 {offsets = [0, 0], sizes = [8, 12], strides = [1, 1]} : vector<8x24xf32> to vector<8x12xf32>
    %678 = arith.index_cast %651 : i32 to index
    %c0_243 = arith.constant 0 : index
    %679 = vector.load %arg8[%678, %c0_243] : memref<64x48xf32, #tpu.memory_space<vmem>>, vector<8x12xf32>
    tpu.vector_store %arg8[%678, %c0_243], %677 {strides = array<i32>} : memref<64x48xf32, #tpu.memory_space<vmem>>, vector<8x12xf32>,
    %680 = vector.extract_strided_slice %676 {offsets = [0, 12], sizes = [8, 12], strides = [1, 1]} : vector<8x24xf32> to vector<8x12xf32>
    %681 = arith.index_cast %654 : i32 to index
    %c12_244 = arith.constant 12 : index
    %682 = vector.load %arg8[%681, %c12_244] : memref<64x48xf32, #tpu.memory_space<vmem>>, vector<8x12xf32>
    tpu.vector_store %arg8[%681, %c12_244], %680 {strides = array<i32>} : memref<64x48xf32, #tpu.memory_space<vmem>>, vector<8x12xf32>,
    %c3_i32_245 = arith.constant 3 : i32
    %c8_i32_246 = arith.constant 8 : i32
    %683 = arith.muli %c3_i32_245, %c8_i32_246 : i32
    %684 = tpu.assume_multiple %683, 8 : i32
    %c7_i32_247 = arith.constant 7 : i32
    %685 = arith.subi %c7_i32_247, %c3_i32_245 : i32
    %c8_i32_248 = arith.constant 8 : i32
    %686 = arith.muli %685, %c8_i32_248 : i32
    %687 = tpu.assume_multiple %686, 8 : i32
    %cst_249 = arith.constant dense<0.000000e+00> : vector<8x96xf32>
    %688 = tpu.matmul %676, %581, %cst_249 {dimension_numbers = #tpu.dot_dimension_numbers<[1], [0], [0], [1], [0, 0, 1, 1], [], []>} : vector<8x24xf32>, vector<24x96xf32>, vector<8x96xf32> -> vector<8x96xf32>
    %689 = arith.index_cast %684 : i32 to index
    %c0_250 = arith.constant 0 : index
    %690 = vector.load %arg10[%689, %c0_250] : memref<64x96xf32, #tpu.memory_space<vmem>>, vector<8x96xf32>
    %691 = arith.addf %688, %690 : vector<8x96xf32>
    %692 = vector.extract_strided_slice %691 {offsets = [0, 0], sizes = [8, 72], strides = [1, 1]} : vector<8x96xf32> to vector<8x72xf32>
    %cst_251 = arith.constant 5.000000e-01 : f32
    %693 = vector.broadcast %cst_251 : f32 to vector<8x72xf32>
    %694 = arith.mulf %693, %692 : vector<8x72xf32>
    %695 = math.tanh %694 : vector<8x72xf32>
    %cst_252 = arith.constant 5.000000e-01 : f32
    %696 = vector.broadcast %cst_252 : f32 to vector<8x72xf32>
    %697 = arith.mulf %696, %695 : vector<8x72xf32>
    %cst_253 = arith.constant 5.000000e-01 : f32
    %698 = vector.broadcast %cst_253 : f32 to vector<8x72xf32>
    %699 = arith.addf %697, %698 : vector<8x72xf32>
    %700 = vector.extract_strided_slice %691 {offsets = [0, 72], sizes = [8, 24], strides = [1, 1]} : vector<8x96xf32> to vector<8x24xf32>
    %701 = math.tanh %700 : vector<8x24xf32>
    %702 = vector.extract_strided_slice %699 {offsets = [0, 24], sizes = [8, 24], strides = [1, 1]} : vector<8x72xf32> to vector<8x24xf32>
    %703 = arith.mulf %702, %673 : vector<8x24xf32>
    %704 = vector.extract_strided_slice %699 {offsets = [0, 0], sizes = [8, 24], strides = [1, 1]} : vector<8x72xf32> to vector<8x24xf32>
    %705 = arith.mulf %704, %701 : vector<8x24xf32>
    %706 = arith.addf %703, %705 : vector<8x24xf32>
    %707 = vector.extract_strided_slice %699 {offsets = [0, 48], sizes = [8, 24], strides = [1, 1]} : vector<8x72xf32> to vector<8x24xf32>
    %708 = math.tanh %706 : vector<8x24xf32>
    %709 = arith.mulf %707, %708 : vector<8x24xf32>
    %710 = vector.extract_strided_slice %709 {offsets = [0, 0], sizes = [8, 12], strides = [1, 1]} : vector<8x24xf32> to vector<8x12xf32>
    %711 = arith.index_cast %684 : i32 to index
    %c0_254 = arith.constant 0 : index
    %712 = vector.load %arg8[%711, %c0_254] : memref<64x48xf32, #tpu.memory_space<vmem>>, vector<8x12xf32>
    tpu.vector_store %arg8[%711, %c0_254], %710 {strides = array<i32>} : memref<64x48xf32, #tpu.memory_space<vmem>>, vector<8x12xf32>,
    %713 = vector.extract_strided_slice %709 {offsets = [0, 12], sizes = [8, 12], strides = [1, 1]} : vector<8x24xf32> to vector<8x12xf32>
    %714 = arith.index_cast %687 : i32 to index
    %c12_255 = arith.constant 12 : index
    %715 = vector.load %arg8[%714, %c12_255] : memref<64x48xf32, #tpu.memory_space<vmem>>, vector<8x12xf32>
    tpu.vector_store %arg8[%714, %c12_255], %713 {strides = array<i32>} : memref<64x48xf32, #tpu.memory_space<vmem>>, vector<8x12xf32>,
    %c4_i32_256 = arith.constant 4 : i32
    %c8_i32_257 = arith.constant 8 : i32
    %716 = arith.muli %c4_i32_256, %c8_i32_257 : i32
    %717 = tpu.assume_multiple %716, 8 : i32
    %c7_i32_258 = arith.constant 7 : i32
    %718 = arith.subi %c7_i32_258, %c4_i32_256 : i32
    %c8_i32_259 = arith.constant 8 : i32
    %719 = arith.muli %718, %c8_i32_259 : i32
    %720 = tpu.assume_multiple %719, 8 : i32
    %cst_260 = arith.constant dense<0.000000e+00> : vector<8x96xf32>
    %721 = tpu.matmul %709, %581, %cst_260 {dimension_numbers = #tpu.dot_dimension_numbers<[1], [0], [0], [1], [0, 0, 1, 1], [], []>} : vector<8x24xf32>, vector<24x96xf32>, vector<8x96xf32> -> vector<8x96xf32>
    %722 = arith.index_cast %717 : i32 to index
    %c0_261 = arith.constant 0 : index
    %723 = vector.load %arg10[%722, %c0_261] : memref<64x96xf32, #tpu.memory_space<vmem>>, vector<8x96xf32>
    %724 = arith.addf %721, %723 : vector<8x96xf32>
    %725 = vector.extract_strided_slice %724 {offsets = [0, 0], sizes = [8, 72], strides = [1, 1]} : vector<8x96xf32> to vector<8x72xf32>
    %cst_262 = arith.constant 5.000000e-01 : f32
    %726 = vector.broadcast %cst_262 : f32 to vector<8x72xf32>
    %727 = arith.mulf %726, %725 : vector<8x72xf32>
    %728 = math.tanh %727 : vector<8x72xf32>
    %cst_263 = arith.constant 5.000000e-01 : f32
    %729 = vector.broadcast %cst_263 : f32 to vector<8x72xf32>
    %730 = arith.mulf %729, %728 : vector<8x72xf32>
    %cst_264 = arith.constant 5.000000e-01 : f32
    %731 = vector.broadcast %cst_264 : f32 to vector<8x72xf32>
    %732 = arith.addf %730, %731 : vector<8x72xf32>
    %733 = vector.extract_strided_slice %724 {offsets = [0, 72], sizes = [8, 24], strides = [1, 1]} : vector<8x96xf32> to vector<8x24xf32>
    %734 = math.tanh %733 : vector<8x24xf32>
    %735 = vector.extract_strided_slice %732 {offsets = [0, 24], sizes = [8, 24], strides = [1, 1]} : vector<8x72xf32> to vector<8x24xf32>
    %736 = arith.mulf %735, %706 : vector<8x24xf32>
    %737 = vector.extract_strided_slice %732 {offsets = [0, 0], sizes = [8, 24], strides = [1, 1]} : vector<8x72xf32> to vector<8x24xf32>
    %738 = arith.mulf %737, %734 : vector<8x24xf32>
    %739 = arith.addf %736, %738 : vector<8x24xf32>
    %740 = vector.extract_strided_slice %732 {offsets = [0, 48], sizes = [8, 24], strides = [1, 1]} : vector<8x72xf32> to vector<8x24xf32>
    %741 = math.tanh %739 : vector<8x24xf32>
    %742 = arith.mulf %740, %741 : vector<8x24xf32>
    %743 = vector.extract_strided_slice %742 {offsets = [0, 0], sizes = [8, 12], strides = [1, 1]} : vector<8x24xf32> to vector<8x12xf32>
    %744 = arith.index_cast %717 : i32 to index
    %c0_265 = arith.constant 0 : index
    %745 = vector.load %arg8[%744, %c0_265] : memref<64x48xf32, #tpu.memory_space<vmem>>, vector<8x12xf32>
    tpu.vector_store %arg8[%744, %c0_265], %743 {strides = array<i32>} : memref<64x48xf32, #tpu.memory_space<vmem>>, vector<8x12xf32>,
    %746 = vector.extract_strided_slice %742 {offsets = [0, 12], sizes = [8, 12], strides = [1, 1]} : vector<8x24xf32> to vector<8x12xf32>
    %747 = arith.index_cast %720 : i32 to index
    %c12_266 = arith.constant 12 : index
    %748 = vector.load %arg8[%747, %c12_266] : memref<64x48xf32, #tpu.memory_space<vmem>>, vector<8x12xf32>
    tpu.vector_store %arg8[%747, %c12_266], %746 {strides = array<i32>} : memref<64x48xf32, #tpu.memory_space<vmem>>, vector<8x12xf32>,
    %c5_i32_267 = arith.constant 5 : i32
    %c8_i32_268 = arith.constant 8 : i32
    %749 = arith.muli %c5_i32_267, %c8_i32_268 : i32
    %750 = tpu.assume_multiple %749, 8 : i32
    %c7_i32_269 = arith.constant 7 : i32
    %751 = arith.subi %c7_i32_269, %c5_i32_267 : i32
    %c8_i32_270 = arith.constant 8 : i32
    %752 = arith.muli %751, %c8_i32_270 : i32
    %753 = tpu.assume_multiple %752, 8 : i32
    %cst_271 = arith.constant dense<0.000000e+00> : vector<8x96xf32>
    %754 = tpu.matmul %742, %581, %cst_271 {dimension_numbers = #tpu.dot_dimension_numbers<[1], [0], [0], [1], [0, 0, 1, 1], [], []>} : vector<8x24xf32>, vector<24x96xf32>, vector<8x96xf32> -> vector<8x96xf32>
    %755 = arith.index_cast %750 : i32 to index
    %c0_272 = arith.constant 0 : index
    %756 = vector.load %arg10[%755, %c0_272] : memref<64x96xf32, #tpu.memory_space<vmem>>, vector<8x96xf32>
    %757 = arith.addf %754, %756 : vector<8x96xf32>
    %758 = vector.extract_strided_slice %757 {offsets = [0, 0], sizes = [8, 72], strides = [1, 1]} : vector<8x96xf32> to vector<8x72xf32>
    %cst_273 = arith.constant 5.000000e-01 : f32
    %759 = vector.broadcast %cst_273 : f32 to vector<8x72xf32>
    %760 = arith.mulf %759, %758 : vector<8x72xf32>
    %761 = math.tanh %760 : vector<8x72xf32>
    %cst_274 = arith.constant 5.000000e-01 : f32
    %762 = vector.broadcast %cst_274 : f32 to vector<8x72xf32>
    %763 = arith.mulf %762, %761 : vector<8x72xf32>
    %cst_275 = arith.constant 5.000000e-01 : f32
    %764 = vector.broadcast %cst_275 : f32 to vector<8x72xf32>
    %765 = arith.addf %763, %764 : vector<8x72xf32>
    %766 = vector.extract_strided_slice %757 {offsets = [0, 72], sizes = [8, 24], strides = [1, 1]} : vector<8x96xf32> to vector<8x24xf32>
    %767 = math.tanh %766 : vector<8x24xf32>
    %768 = vector.extract_strided_slice %765 {offsets = [0, 24], sizes = [8, 24], strides = [1, 1]} : vector<8x72xf32> to vector<8x24xf32>
    %769 = arith.mulf %768, %739 : vector<8x24xf32>
    %770 = vector.extract_strided_slice %765 {offsets = [0, 0], sizes = [8, 24], strides = [1, 1]} : vector<8x72xf32> to vector<8x24xf32>
    %771 = arith.mulf %770, %767 : vector<8x24xf32>
    %772 = arith.addf %769, %771 : vector<8x24xf32>
    %773 = vector.extract_strided_slice %765 {offsets = [0, 48], sizes = [8, 24], strides = [1, 1]} : vector<8x72xf32> to vector<8x24xf32>
    %774 = math.tanh %772 : vector<8x24xf32>
    %775 = arith.mulf %773, %774 : vector<8x24xf32>
    %776 = vector.extract_strided_slice %775 {offsets = [0, 0], sizes = [8, 12], strides = [1, 1]} : vector<8x24xf32> to vector<8x12xf32>
    %777 = arith.index_cast %750 : i32 to index
    %c0_276 = arith.constant 0 : index
    %778 = vector.load %arg8[%777, %c0_276] : memref<64x48xf32, #tpu.memory_space<vmem>>, vector<8x12xf32>
    tpu.vector_store %arg8[%777, %c0_276], %776 {strides = array<i32>} : memref<64x48xf32, #tpu.memory_space<vmem>>, vector<8x12xf32>,
    %779 = vector.extract_strided_slice %775 {offsets = [0, 12], sizes = [8, 12], strides = [1, 1]} : vector<8x24xf32> to vector<8x12xf32>
    %780 = arith.index_cast %753 : i32 to index
    %c12_277 = arith.constant 12 : index
    %781 = vector.load %arg8[%780, %c12_277] : memref<64x48xf32, #tpu.memory_space<vmem>>, vector<8x12xf32>
    tpu.vector_store %arg8[%780, %c12_277], %779 {strides = array<i32>} : memref<64x48xf32, #tpu.memory_space<vmem>>, vector<8x12xf32>,
    %c6_i32_278 = arith.constant 6 : i32
    %c8_i32_279 = arith.constant 8 : i32
    %782 = arith.muli %c6_i32_278, %c8_i32_279 : i32
    %783 = tpu.assume_multiple %782, 8 : i32
    %c7_i32_280 = arith.constant 7 : i32
    %784 = arith.subi %c7_i32_280, %c6_i32_278 : i32
    %c8_i32_281 = arith.constant 8 : i32
    %785 = arith.muli %784, %c8_i32_281 : i32
    %786 = tpu.assume_multiple %785, 8 : i32
    %cst_282 = arith.constant dense<0.000000e+00> : vector<8x96xf32>
    %787 = tpu.matmul %775, %581, %cst_282 {dimension_numbers = #tpu.dot_dimension_numbers<[1], [0], [0], [1], [0, 0, 1, 1], [], []>} : vector<8x24xf32>, vector<24x96xf32>, vector<8x96xf32> -> vector<8x96xf32>
    %788 = arith.index_cast %783 : i32 to index
    %c0_283 = arith.constant 0 : index
    %789 = vector.load %arg10[%788, %c0_283] : memref<64x96xf32, #tpu.memory_space<vmem>>, vector<8x96xf32>
    %790 = arith.addf %787, %789 : vector<8x96xf32>
    %791 = vector.extract_strided_slice %790 {offsets = [0, 0], sizes = [8, 72], strides = [1, 1]} : vector<8x96xf32> to vector<8x72xf32>
    %cst_284 = arith.constant 5.000000e-01 : f32
    %792 = vector.broadcast %cst_284 : f32 to vector<8x72xf32>
    %793 = arith.mulf %792, %791 : vector<8x72xf32>
    %794 = math.tanh %793 : vector<8x72xf32>
    %cst_285 = arith.constant 5.000000e-01 : f32
    %795 = vector.broadcast %cst_285 : f32 to vector<8x72xf32>
    %796 = arith.mulf %795, %794 : vector<8x72xf32>
    %cst_286 = arith.constant 5.000000e-01 : f32
    %797 = vector.broadcast %cst_286 : f32 to vector<8x72xf32>
    %798 = arith.addf %796, %797 : vector<8x72xf32>
    %799 = vector.extract_strided_slice %790 {offsets = [0, 72], sizes = [8, 24], strides = [1, 1]} : vector<8x96xf32> to vector<8x24xf32>
    %800 = math.tanh %799 : vector<8x24xf32>
    %801 = vector.extract_strided_slice %798 {offsets = [0, 24], sizes = [8, 24], strides = [1, 1]} : vector<8x72xf32> to vector<8x24xf32>
    %802 = arith.mulf %801, %772 : vector<8x24xf32>
    %803 = vector.extract_strided_slice %798 {offsets = [0, 0], sizes = [8, 24], strides = [1, 1]} : vector<8x72xf32> to vector<8x24xf32>
    %804 = arith.mulf %803, %800 : vector<8x24xf32>
    %805 = arith.addf %802, %804 : vector<8x24xf32>
    %806 = vector.extract_strided_slice %798 {offsets = [0, 48], sizes = [8, 24], strides = [1, 1]} : vector<8x72xf32> to vector<8x24xf32>
    %807 = math.tanh %805 : vector<8x24xf32>
    %808 = arith.mulf %806, %807 : vector<8x24xf32>
    %809 = vector.extract_strided_slice %808 {offsets = [0, 0], sizes = [8, 12], strides = [1, 1]} : vector<8x24xf32> to vector<8x12xf32>
    %810 = arith.index_cast %783 : i32 to index
    %c0_287 = arith.constant 0 : index
    %811 = vector.load %arg8[%810, %c0_287] : memref<64x48xf32, #tpu.memory_space<vmem>>, vector<8x12xf32>
    tpu.vector_store %arg8[%810, %c0_287], %809 {strides = array<i32>} : memref<64x48xf32, #tpu.memory_space<vmem>>, vector<8x12xf32>,
    %812 = vector.extract_strided_slice %808 {offsets = [0, 12], sizes = [8, 12], strides = [1, 1]} : vector<8x24xf32> to vector<8x12xf32>
    %813 = arith.index_cast %786 : i32 to index
    %c12_288 = arith.constant 12 : index
    %814 = vector.load %arg8[%813, %c12_288] : memref<64x48xf32, #tpu.memory_space<vmem>>, vector<8x12xf32>
    tpu.vector_store %arg8[%813, %c12_288], %812 {strides = array<i32>} : memref<64x48xf32, #tpu.memory_space<vmem>>, vector<8x12xf32>,
    %c7_i32_289 = arith.constant 7 : i32
    %c8_i32_290 = arith.constant 8 : i32
    %815 = arith.muli %c7_i32_289, %c8_i32_290 : i32
    %816 = tpu.assume_multiple %815, 8 : i32
    %c7_i32_291 = arith.constant 7 : i32
    %817 = arith.subi %c7_i32_291, %c7_i32_289 : i32
    %c8_i32_292 = arith.constant 8 : i32
    %818 = arith.muli %817, %c8_i32_292 : i32
    %819 = tpu.assume_multiple %818, 8 : i32
    %cst_293 = arith.constant dense<0.000000e+00> : vector<8x96xf32>
    %820 = tpu.matmul %808, %581, %cst_293 {dimension_numbers = #tpu.dot_dimension_numbers<[1], [0], [0], [1], [0, 0, 1, 1], [], []>} : vector<8x24xf32>, vector<24x96xf32>, vector<8x96xf32> -> vector<8x96xf32>
    %821 = arith.index_cast %816 : i32 to index
    %c0_294 = arith.constant 0 : index
    %822 = vector.load %arg10[%821, %c0_294] : memref<64x96xf32, #tpu.memory_space<vmem>>, vector<8x96xf32>
    %823 = arith.addf %820, %822 : vector<8x96xf32>
    %824 = vector.extract_strided_slice %823 {offsets = [0, 0], sizes = [8, 72], strides = [1, 1]} : vector<8x96xf32> to vector<8x72xf32>
    %cst_295 = arith.constant 5.000000e-01 : f32
    %825 = vector.broadcast %cst_295 : f32 to vector<8x72xf32>
    %826 = arith.mulf %825, %824 : vector<8x72xf32>
    %827 = math.tanh %826 : vector<8x72xf32>
    %cst_296 = arith.constant 5.000000e-01 : f32
    %828 = vector.broadcast %cst_296 : f32 to vector<8x72xf32>
    %829 = arith.mulf %828, %827 : vector<8x72xf32>
    %cst_297 = arith.constant 5.000000e-01 : f32
    %830 = vector.broadcast %cst_297 : f32 to vector<8x72xf32>
    %831 = arith.addf %829, %830 : vector<8x72xf32>
    %832 = vector.extract_strided_slice %823 {offsets = [0, 72], sizes = [8, 24], strides = [1, 1]} : vector<8x96xf32> to vector<8x24xf32>
    %833 = math.tanh %832 : vector<8x24xf32>
    %834 = vector.extract_strided_slice %831 {offsets = [0, 24], sizes = [8, 24], strides = [1, 1]} : vector<8x72xf32> to vector<8x24xf32>
    %835 = arith.mulf %834, %805 : vector<8x24xf32>
    %836 = vector.extract_strided_slice %831 {offsets = [0, 0], sizes = [8, 24], strides = [1, 1]} : vector<8x72xf32> to vector<8x24xf32>
    %837 = arith.mulf %836, %833 : vector<8x24xf32>
    %838 = arith.addf %835, %837 : vector<8x24xf32>
    %839 = vector.extract_strided_slice %831 {offsets = [0, 48], sizes = [8, 24], strides = [1, 1]} : vector<8x72xf32> to vector<8x24xf32>
    %840 = math.tanh %838 : vector<8x24xf32>
    %841 = arith.mulf %839, %840 : vector<8x24xf32>
    %842 = vector.extract_strided_slice %841 {offsets = [0, 0], sizes = [8, 12], strides = [1, 1]} : vector<8x24xf32> to vector<8x12xf32>
    %843 = arith.index_cast %816 : i32 to index
    %c0_298 = arith.constant 0 : index
    %844 = vector.load %arg8[%843, %c0_298] : memref<64x48xf32, #tpu.memory_space<vmem>>, vector<8x12xf32>
    tpu.vector_store %arg8[%843, %c0_298], %842 {strides = array<i32>} : memref<64x48xf32, #tpu.memory_space<vmem>>, vector<8x12xf32>,
    %845 = vector.extract_strided_slice %841 {offsets = [0, 12], sizes = [8, 12], strides = [1, 1]} : vector<8x24xf32> to vector<8x12xf32>
    %846 = arith.index_cast %819 : i32 to index
    %c12_299 = arith.constant 12 : index
    %847 = vector.load %arg8[%846, %c12_299] : memref<64x48xf32, #tpu.memory_space<vmem>>, vector<8x12xf32>
    tpu.vector_store %arg8[%846, %c12_299], %845 {strides = array<i32>} : memref<64x48xf32, #tpu.memory_space<vmem>>, vector<8x12xf32>,
    %c8_i32_300 = arith.constant 8 : i32
    %c0_301 = arith.constant 0 : index
    %c0_302 = arith.constant 0 : index
    %848 = vector.load %arg8[%c0_301, %c0_302] : memref<64x48xf32, #tpu.memory_space<vmem>>, vector<64x24xf32>
    %c0_303 = arith.constant 0 : index
    %c0_304 = arith.constant 0 : index
    %849 = vector.load %arg5[%c0_303, %c0_304] : memref<8x24xf32, #tpu.memory_space<vmem>>, vector<8x24xf32>
    %cst_305 = arith.constant dense<0.000000e+00> : vector<8x64xf32>
    %850 = tpu.matmul %849, %848, %cst_305 {dimension_numbers = #tpu.dot_dimension_numbers<[1], [1], [0], [0], [0, 0, 1, 0], [], []>} : vector<8x24xf32>, vector<64x24xf32>, vector<8x64xf32> -> vector<8x64xf32>
    %851 = vector.extract_strided_slice %850 {offsets = [0, 0], sizes = [1, 64], strides = [1, 1]} : vector<8x64xf32> to vector<1x64xf32>
    %c0_306 = arith.constant 0 : index
    %c0_307 = arith.constant 0 : index
    %852 = vector.load %arg6[%c0_306, %c0_307] : memref<1x1xf32, #tpu.memory_space<vmem>>, vector<1x1xf32>
    %853 = vector.extract %852[0, 0] : f32 from vector<1x1xf32>
    %854 = vector.broadcast %853 : f32 to vector<1x64xf32>
    %855 = arith.addf %851, %854 : vector<1x64xf32>
    %856 = arith.negf %855 : vector<1x64xf32>
    %857 = math.exp %856 : vector<1x64xf32>
    %cst_308 = arith.constant 1.000000e+00 : f32
    %858 = vector.broadcast %cst_308 : f32 to vector<1x64xf32>
    %859 = arith.addf %858, %857 : vector<1x64xf32>
    %860 = arith.divf %858, %859 : vector<1x64xf32>
    %c0_309 = arith.constant 0 : index
    %c0_310 = arith.constant 0 : index
    %c0_311 = arith.constant 0 : index
    %861 = vector.load %arg7[%c0_309, %c0_310, %c0_311] : memref<1x1x64xf32, #tpu.memory_space<vmem>>, vector<1x1x64xf32>
    %862 = vector.shape_cast %861 : vector<1x1x64xf32> to vector<1x64xf32>
    %863 = vector.shape_cast %860 : vector<1x64xf32> to vector<1x1x64xf32>
    tpu.vector_store %arg7[%c0_309, %c0_310, %c0_311], %863 {strides = array<i32>} : memref<1x1x64xf32, #tpu.memory_space<vmem>>, vector<1x1x64xf32>,
    return
  }
  func.func @transform_0(%arg0: i32) -> (i32, i32, i32) {
    %c0_i32 = arith.constant 0 : i32
    %c0_i32_0 = arith.constant 0 : i32
    %c0_i32_1 = arith.constant 0 : i32
    return %arg0, %c0_i32, %c0_i32_0 : i32, i32, i32
  }
  func.func @transform_1(%arg0: i32) -> (i32, i32, i32) {
    %c0_i32 = arith.constant 0 : i32
    %c0_i32_0 = arith.constant 0 : i32
    %c0_i32_1 = arith.constant 0 : i32
    %c0_i32_2 = arith.constant 0 : i32
    return %c0_i32, %c0_i32_0, %c0_i32_1 : i32, i32, i32
  }
  func.func @transform_2(%arg0: i32) -> (i32, i32, i32) {
    %c0_i32 = arith.constant 0 : i32
    %c0_i32_0 = arith.constant 0 : i32
    %c0_i32_1 = arith.constant 0 : i32
    %c0_i32_2 = arith.constant 0 : i32
    return %c0_i32, %c0_i32_0, %c0_i32_1 : i32, i32, i32
  }
  func.func @transform_3(%arg0: i32) -> (i32, i32, i32) {
    %c0_i32 = arith.constant 0 : i32
    %c0_i32_0 = arith.constant 0 : i32
    %c0_i32_1 = arith.constant 0 : i32
    %c0_i32_2 = arith.constant 0 : i32
    return %c0_i32, %c0_i32_0, %c0_i32_1 : i32, i32, i32
  }
  func.func @transform_4(%arg0: i32) -> (i32, i32) {
    %c0_i32 = arith.constant 0 : i32
    %c0_i32_0 = arith.constant 0 : i32
    %c0_i32_1 = arith.constant 0 : i32
    return %c0_i32, %c0_i32_0 : i32, i32
  }
  func.func @transform_5(%arg0: i32) -> (i32, i32) {
    %c0_i32 = arith.constant 0 : i32
    %c0_i32_0 = arith.constant 0 : i32
    %c0_i32_1 = arith.constant 0 : i32
    return %c0_i32, %c0_i32_0 : i32, i32
  }
  func.func @transform_6(%arg0: i32) -> (i32, i32, i32) {
    %c0_i32 = arith.constant 0 : i32
    %c0_i32_0 = arith.constant 0 : i32
    %c0_i32_1 = arith.constant 0 : i32
    return %arg0, %c0_i32, %c0_i32_0 : i32, i32, i32
  }
}

</mosaic_0001>

<llo_original>
// kernel: tpu_custom_call.1
$region0: #{tpu_custom_call.1}
  #allocation0 [shape = 'u32[]', space=smem, size = 0x4, offset = 0x4, fixed_abs, tag = 'smem constant byte address 0x4 - core index']
  #allocation1 [shape = 'u32[144,128]{1,0:T(1,128)}', space=vmem, size = 0x12000, scoped, tag = 'internal scratch']
  #allocation2 [shape = 'f32[64,48]{1,0:T(8,128)}', space=vmem, size = 0x8000, scoped, tag = 'scratch operand']
  #allocation3 [shape = 'f32[64,48]{1,0:T(8,128)}', space=vmem, size = 0x8000, scoped, tag = 'scratch operand']
  #allocation4 [shape = 'f32[64,96]{1,0:T(8,128)}', space=vmem, size = 0x8000, scoped, tag = 'scratch operand']
  #allocation5 [shape = 'f32[1,1]{1,0:T(1,128)S(1)}', space=vmem, size = 0x200, scoped, tag = 'scoped memory for tpu_custom_call.1']
  %s0 = inlined_call_operand.vmem [shape: f32[1,64,48], index: 0, kind: input, shape index: {}]
  %s1 = inlined_call_operand.hbm [shape: f32[3,48,96], index: 1, kind: input, shape index: {}]
  %s2 = inlined_call_operand.vmem [shape: f32[3,24,96], index: 2, kind: input, shape index: {}]
  %s3 = inlined_call_operand.vmem [shape: f32[3,1,96], index: 3, kind: input, shape index: {}]
  %s4 = inlined_call_operand.vmem [shape: f32[8,24], index: 4, kind: input, shape index: {}]
  %s5 = inlined_call_operand.<no memory space> [shape: f32[1,1], index: 5, kind: input, shape index: {}]
  %s6 = inlined_call_operand.hbm [shape: f32[1,1,64], index: 6, kind: output, shape index: {}]
  %s7 = sld [smem:[#allocation0]]
  $region38: #{tpu_custom_call.1} parent=0
    _
  %s9 = ssub.s32 1, %s7
  %s10 = scalar_select 0, %s9, %s7
  %v11 = vstv %s5
  %12 = vst [vmem:[#allocation5] sm:$0x1] %v11
  $region1: #{tpu_custom_call.1} parent=0
    #allocation6 [shape = 'u8[73728]{0}', space=vmem, size = 0x12000, scoped, tag = 'input window, operand 1, single buffered']
    #allocation7 [shape = 's32[1]{0}', space=sflag, size = 0x4, scoped, tag = 'scoped memory for tpu_custom_call.1']
    #allocation8 [shape = 's32[1]{0}', space=sflag, size = 0x4, scoped, tag = 'scoped memory for tpu_custom_call.1']
    #allocation9 [shape = 'u8[512]{0}', space=vmem, size = 0x400, scoped, tag = 'output window, operand 0, single buffered']
    %13 = vsyncpa [#allocation7], 0
    %14 = vsyncpa [#allocation8], 0
    // Predicated region
    $region2: #{tpu_custom_call.1} parent=1 // pred_check
      _
    $region3: #{tpu_custom_call.1} parent=1 // pred_check_branch
      %16 = sbr.rel (0) target = $region5
    $region4: #{tpu_custom_call.1} parent=1 // pred_region
      _
    $region5: #{tpu_custom_call.1} parent=1 // pred_fallthru
      _
    // Predicated region
    $region6: #{tpu_custom_call.1} parent=1 // pred_check
      _
    $region7: #{tpu_custom_call.1} parent=1 // pred_check_branch
      %18 = sbr.rel (0) target = $region9
    $region8: #{tpu_custom_call.1} parent=1 // pred_region
      %s20 = ssub.s32 2304, 2304
      %21 = vsyncadd [#allocation7], %s20
      %s22 = sshll.u32 [#allocation6], 4
      %s23 = int_to_ptr.vmem [resolvable:$true] %s22
      %28 = dma.hbm_to_vmem [thread:$0]  %s1, 2304, %s23, [#allocation7], 128, 128, 8
    $region9: #{tpu_custom_call.1} parent=1 // pred_fallthru
      _
    // Predicated region
    $region10: #{tpu_custom_call.1} parent=1 // pred_check
      _
    $region11: #{tpu_custom_call.1} parent=1 // pred_check_branch
      %30 = sbr.rel (0) target = $region13
    $region12: #{tpu_custom_call.1} parent=1 // pred_region
      _
    $region13: #{tpu_custom_call.1} parent=1 // pred_fallthru
      _
    // Predicated region
    $region14: #{tpu_custom_call.1} parent=1 // pred_check
      _
    $region15: #{tpu_custom_call.1} parent=1 // pred_check_branch
      %32 = sbr.rel (0) target = $region17
    $region16: #{tpu_custom_call.1} parent=1 // pred_region
      _
    $region17: #{tpu_custom_call.1} parent=1 // pred_fallthru
      _
    // Predicated region
    $region18: #{tpu_custom_call.1} parent=1 // pred_check
      _
    $region19: #{tpu_custom_call.1} parent=1 // pred_check_branch
      %34 = sbr.rel (0) target = $region21
    $region20: #{tpu_custom_call.1} parent=1 // pred_region
      _
    $region21: #{tpu_custom_call.1} parent=1 // pred_fallthru
      _
    // Predicated region
    $region22: #{tpu_custom_call.1} parent=1 // pred_check
      _
    $region23: #{tpu_custom_call.1} parent=1 // pred_check_branch
      %36 = sbr.rel (0) target = $region25
    $region24: #{tpu_custom_call.1} parent=1 // pred_region
      _
    $region25: #{tpu_custom_call.1} parent=1 // pred_fallthru
      _
    // Predicated region
    $region26: #{tpu_custom_call.1} parent=1 // pred_check
      _
    $region27: #{tpu_custom_call.1} parent=1 // pred_check_branch
      %38 = sbr.rel (0) target = $region29
    $region28: #{tpu_custom_call.1} parent=1 // pred_region
      %39 = dma.done [#allocation7], 2304
    $region29: #{tpu_custom_call.1} parent=1 // pred_fallthru
      _
    %v40 = vld [vmem:[%s0] sm:$0xff]
    %v41 = vld [vmem:[%s0 + $0x8] sm:$0xff]
    %v42 = vld [vmem:[%s0 + $0x10] sm:$0xff]
    %v43 = vld [vmem:[%s0 + $0x18] sm:$0xff]
    %v44 = vld [vmem:[%s0 + $0x20] sm:$0xff]
    %v45 = vld [vmem:[%s0 + $0x28] sm:$0xff]
    %v46 = vld [vmem:[%s0 + $0x30] sm:$0xff]
    %v47 = vld [vmem:[%s0 + $0x38] sm:$0xff]
    %v48 = vld [vmem:[#allocation6] sm:$0xff]
    %v49 = vld [vmem:[#allocation6 + $0x8] sm:$0xff]
    %v50 = vld [vmem:[#allocation6 + $0x10] sm:$0xff]
    %v51 = vld [vmem:[#allocation6 + $0x18] sm:$0xff]
    %v52 = vld [vmem:[#allocation6 + $0x20] sm:$0xff]
    %v53 = vld [vmem:[#allocation6 + $0x28] sm:$0xff]
    %v54 = vld [vmem:[%s3] sm:$0x1]
    %v56 = vlaneseq
    %v57 = vshrl.u32 %v56, 7
    %v58 = vsub.s32 0, %v57
    %v59 = vrot.slane %v54, %v58
    %vm61 = vcmask 392192
    %v63 = vsel %vm61, %v40, 0
    %v66 = vsel %vm61, %v41, 0
    %v69 = vsel %vm61, %v42, 0
    %v72 = vsel %vm61, %v43, 0
    %v75 = vsel %vm61, %v44, 0
    %v78 = vsel %vm61, %v45, 0
    %v81 = vsel %vm61, %v46, 0
    %v84 = vsel %vm61, %v47, 0
    %86 = vmatprep.subr.mxu0 0.0
    %87 = vmatpush1.msra.mxu0 %v48
    %88 = vmatprep.subr.mxu0 0.0
    %89 = vmatpush1.msra.mxu0 %v49
    %90 = vmatprep.subr.mxu0 0.0
    %91 = vmatpush1.msra.mxu0 %v50
    %92 = vmatprep.subr.mxu0 0.0
    %93 = vmatpush1.msra.mxu0 %v51
    %94 = vmatprep.subr.mxu0 0.0
    %95 = vmatpush1.msra.mxu0 %v52
    %96 = vmatprep.subr.mxu0 0.0
    %97 = vmatpush1.msra.mxu0 %v53
    %98 = vmatprep.subr.mxu0 0.0
    %99 = vmatpush1.msra.mxu0 0.0
    %100 = vmatprep.subr.mxu0 0.0
    %101 = vmatpush1.msra.mxu0 0.0
    %102 = vmatprep.subr.mxu0 0.0
    %103 = vmatpush1.msra.mxu0 0.0
    %104 = vmatprep.subr.mxu0 0.0
    %105 = vmatpush1.msra.mxu0 0.0
    %106 = vmatprep.subr.mxu0 0.0
    %107 = vmatpush1.msra.mxu0 0.0
    %108 = vmatprep.subr.mxu0 0.0
    %109 = vmatpush1.msra.mxu0 0.0
    %110 = vmatprep.subr.mxu0 0.0
    %111 = vmatpush1.msra.mxu0 0.0
    %112 = vmatprep.subr.mxu0 0.0
    %113 = vmatpush1.msra.mxu0 0.0
    %114 = vmatprep.subr.mxu0 0.0
    %115 = vmatpush1.msra.mxu0 0.0
    %116 = vmatprep.subr.mxu0 0.0
    %117 = vmatpush1.msra.mxu0 0.0
    %118 = vmatprep.subr.mxu0 0.0
    %119 = vmatpush1.msra.mxu0 0.0
    %120 = vmatprep.subr.mxu0 0.0
    %121 = vmatpush1.msra.mxu0 0.0
    %122 = vmatprep.subr.mxu0 0.0
    %123 = vmatpush1.msra.mxu0 0.0
    %124 = vmatprep.subr.mxu0 0.0
    %125 = vmatpush1.msra.mxu0 0.0
    %126 = vmatprep.subr.mxu0 0.0
    %127 = vmatpush1.msra.mxu0 0.0
    %128 = vmatprep.subr.mxu0 0.0
    %129 = vmatpush1.msra.mxu0 0.0
    %130 = vmatprep.subr.mxu0 0.0
    %131 = vmatpush1.msra.mxu0 0.0
    %132 = vmatprep.subr.mxu0 0.0
    %133 = vmatpush1.msra.mxu0 0.0
    %134 = vmatprep.subr.mxu0 0.0
    %135 = vmatpush1.msra.mxu0 0.0
    %136 = vmatprep.subr.mxu0 0.0
    %137 = vmatpush1.msra.mxu0 0.0
    %138 = vmatprep.subr.mxu0 0.0
    %139 = vmatpush1.msra.mxu0 0.0
    %140 = vmatprep.subr.mxu0 0.0
    %141 = vmatpush1.msra.mxu0 0.0
    %142 = vmatprep.subr.mxu0 0.0
    %143 = vmatpush1.msra.mxu0 0.0
    %144 = vmatprep.subr.mxu0 0.0
    %145 = vmatpush1.msra.mxu0 0.0
    %146 = vmatprep.subr.mxu0 0.0
    %147 = vmatpush1.msra.mxu0 0.0
    %148 = vmatprep.subr.mxu0 0.0
    %149 = vmatpush1.msra.mxu0 0.0
    %150 = vmatprep.mubr.f32.mxu0 0.0
    %151 = vmatmul.mubr.f32.gmra.mrb[0].mxu0 %v63
    %v152 = vpop.f32.mrb[0].mxu0
    %v153 = vadd.f32 %v59, %v152
    %v154 = vpop.f32.mrb[0].mxu0
    %155 = vmatprep.mubr.f32.mxu0 0.0
    %156 = vmatmul.mubr.f32.gmra.mrb[0].mxu0 %v66
    %v157 = vpop.f32.mrb[0].mxu0
    %v158 = vadd.f32 %v59, %v157
    %v159 = vpop.f32.mrb[0].mxu0
    %160 = vmatprep.mubr.f32.mxu0 0.0
    %161 = vmatmul.mubr.f32.gmra.mrb[0].mxu0 %v69
    %v162 = vpop.f32.mrb[0].mxu0
    %v163 = vadd.f32 %v59, %v162
    %v164 = vpop.f32.mrb[0].mxu0
    %165 = vmatprep.mubr.f32.mxu0 0.0
    %166 = vmatmul.mubr.f32.gmra.mrb[0].mxu0 %v72
    %v167 = vpop.f32.mrb[0].mxu0
    %v168 = vadd.f32 %v59, %v167
    %v169 = vpop.f32.mrb[0].mxu0
    %170 = vmatprep.mubr.f32.mxu0 0.0
    %171 = vmatmul.mubr.f32.gmra.mrb[0].mxu0 %v75
    %v172 = vpop.f32.mrb[0].mxu0
    %v173 = vadd.f32 %v59, %v172
    %v174 = vpop.f32.mrb[0].mxu0
    %175 = vmatprep.mubr.f32.mxu0 0.0
    %176 = vmatmul.mubr.f32.gmra.mrb[0].mxu0 %v78
    %v177 = vpop.f32.mrb[0].mxu0
    %v178 = vadd.f32 %v59, %v177
    %v179 = vpop.f32.mrb[0].mxu0
    %180 = vmatprep.mubr.f32.mxu0 0.0
    %181 = vmatmul.mubr.f32.gmra.mrb[0].mxu0 %v81
    %v182 = vpop.f32.mrb[0].mxu0
    %v183 = vadd.f32 %v59, %v182
    %v184 = vpop.f32.mrb[0].mxu0
    %185 = vmatprep.mubr.f32.mxu0 0.0
    %186 = vmatmul.mubr.f32.gmra.mrb[0].mxu0 %v84
    %v187 = vpop.f32.mrb[0].mxu0
    %v188 = vadd.f32 %v59, %v187
    %v189 = vpop.f32.mrb[0].mxu0
    %190 = vdwg.mxu0
    %vm191 = vcmask 785408
    %192 = vst.msk [vmem:[#allocation4] sm:$0xff] %vm191, %v153
    %193 = vst.msk [vmem:[#allocation4 + $0x8] sm:$0xff] %vm191, %v158
    %194 = vst.msk [vmem:[#allocation4 + $0x10] sm:$0xff] %vm191, %v163
    %195 = vst.msk [vmem:[#allocation4 + $0x18] sm:$0xff] %vm191, %v168
    %196 = vst.msk [vmem:[#allocation4 + $0x20] sm:$0xff] %vm191, %v173
    %197 = vst.msk [vmem:[#allocation4 + $0x28] sm:$0xff] %vm191, %v178
    %198 = vst.msk [vmem:[#allocation4 + $0x30] sm:$0xff] %vm191, %v183
    %199 = vst.msk [vmem:[#allocation4 + $0x38] sm:$0xff] %vm191, %v188
    %v200 = vld [vmem:[%s2] sm:$0xff]
    %v201 = vld [vmem:[%s2 + $0x8] sm:$0xff]
    %v202 = vld [vmem:[%s2 + $0x10] sm:$0xff]
    %v203 = vld [vmem:[#allocation4] sm:$0xff]
    %vm204 = vcmask 195584
    %v206 = vsel %vm204, 0.0, 0
    %208 = vmatprep.subr.mxu0 0.0
    %209 = vmatpush1.msra.mxu0 %v200
    %210 = vmatprep.subr.mxu0 0.0
    %211 = vmatpush1.msra.mxu0 %v201
    %212 = vmatprep.subr.mxu0 0.0
    %213 = vmatpush1.msra.mxu0 %v202
    %214 = vmatprep.subr.mxu0 0.0
    %215 = vmatpush1.msra.mxu0 0.0
    %216 = vmatprep.subr.mxu0 0.0
    %217 = vmatpush1.msra.mxu0 0.0
    %218 = vmatprep.subr.mxu0 0.0
    %219 = vmatpush1.msra.mxu0 0.0
    %220 = vmatprep.subr.mxu0 0.0
    %221 = vmatpush1.msra.mxu0 0.0
    %222 = vmatprep.subr.mxu0 0.0
    %223 = vmatpush1.msra.mxu0 0.0
    %224 = vmatprep.subr.mxu0 0.0
    %225 = vmatpush1.msra.mxu0 0.0
    %226 = vmatprep.subr.mxu0 0.0
    %227 = vmatpush1.msra.mxu0 0.0
    %228 = vmatprep.subr.mxu0 0.0
    %229 = vmatpush1.msra.mxu0 0.0
    %230 = vmatprep.subr.mxu0 0.0
    %231 = vmatpush1.msra.mxu0 0.0
    %232 = vmatprep.subr.mxu0 0.0
    %233 = vmatpush1.msra.mxu0 0.0
    %234 = vmatprep.subr.mxu0 0.0
    %235 = vmatpush1.msra.mxu0 0.0
    %236 = vmatprep.subr.mxu0 0.0
    %237 = vmatpush1.msra.mxu0 0.0
    %238 = vmatprep.subr.mxu0 0.0
    %239 = vmatpush1.msra.mxu0 0.0
    %240 = vmatprep.subr.mxu0 0.0
    %241 = vmatpush1.msra.mxu0 0.0
    %242 = vmatprep.subr.mxu0 0.0
    %243 = vmatpush1.msra.mxu0 0.0
    %244 = vmatprep.subr.mxu0 0.0
    %245 = vmatpush1.msra.mxu0 0.0
    %246 = vmatprep.subr.mxu0 0.0
    %247 = vmatpush1.msra.mxu0 0.0
    %248 = vmatprep.subr.mxu0 0.0
    %249 = vmatpush1.msra.mxu0 0.0
    %250 = vmatprep.subr.mxu0 0.0
    %251 = vmatpush1.msra.mxu0 0.0
    %252 = vmatprep.subr.mxu0 0.0
    %253 = vmatpush1.msra.mxu0 0.0
    %254 = vmatprep.subr.mxu0 0.0
    %255 = vmatpush1.msra.mxu0 0.0
    %256 = vmatprep.subr.mxu0 0.0
    %257 = vmatpush1.msra.mxu0 0.0
    %258 = vmatprep.subr.mxu0 0.0
    %259 = vmatpush1.msra.mxu0 0.0
    %260 = vmatprep.subr.mxu0 0.0
    %261 = vmatpush1.msra.mxu0 0.0
    %262 = vmatprep.subr.mxu0 0.0
    %263 = vmatpush1.msra.mxu0 0.0
    %264 = vmatprep.subr.mxu0 0.0
    %265 = vmatpush1.msra.mxu0 0.0
    %266 = vmatprep.subr.mxu0 0.0
    %267 = vmatpush1.msra.mxu0 0.0
    %268 = vmatprep.subr.mxu0 0.0
    %269 = vmatpush1.msra.mxu0 0.0
    %270 = vmatprep.subr.mxu0 0.0
    %271 = vmatpush1.msra.mxu0 0.0
    %272 = vmatprep.mubr.f32.mxu0 0.0
    %273 = vmatmul.mubr.f32.gmra.mrb[0].mxu0 %v206
    %v274 = vpop.f32.mrb[0].mxu0
    %v275 = vadd.f32 %v203, %v274
    %v276 = vpop.f32.mrb[0].mxu0
    %277 = vdwg.mxu0
    %v278 = vmul.f32 %v275, 0.5
    %v279 = vtanh.pop %v278
    %v280 = vmul.f32 %v279, 0.5
    %v281 = vadd.f32 %v280, 0.5
    %v282 = vtanh.pop %v275
    %v283 = vmul.f32 %v281, 0.0
    %285 = vrot.lane.b32.xlu0 %v282, 56
    %v286 = vpop.permute.xlu0 %285
    %v288 = vmul.f32 %v281, %v286
    %290 = vrot.lane.b32.xlu0 %v288, 24
    %v291 = vpop.permute.xlu0 %290
    %v293 = vadd.f32 %v283, %v291
    %v294 = vtanh.pop %v293
    %296 = vrot.lane.b32.xlu0 %v294, 24
    %v297 = vpop.permute.xlu0 %296
    %v299 = vmul.f32 %v281, %v297
    %301 = vrot.lane.b32.xlu0 %v299, 80
    %v302 = vpop.permute.xlu0 %301
    %304 = vst.msk [vmem:[#allocation2] sm:$0xff] %vm204, %v302
    %305 = vrot.lane.b32.xlu0 %v299, 68
    %v306 = vpop.permute.xlu0 %305
    %308 = vrot.lane.b32.xlu0 %v299, 92
    %v309 = vpop.permute.xlu0 %308
    %vm311 = vcmask 97280
    %v312 = vsel %vm311, %v306, %v309
    %314 = vrot.lane.b32.xlu0 %v312, 24
    %v315 = vpop.permute.xlu0 %314
    %s317 = scalar_lea.vmem [#allocation2], 56
    %vm318 = vcmask 392384
    %319 = vst.msk [vmem:[%s317] sm:$0xff] %vm318, %v315
    %s320 = scalar_lea.vmem [#allocation4], 8
    %v321 = vld [vmem:[%s320] sm:$0xff]
    %v322 = vsel %vm204, %v302, 0
    %324 = vmatprep.subr.mxu0 0.0
    %325 = vmatpush1.msra.mxu0 %v200
    %326 = vmatprep.subr.mxu0 0.0
    %327 = vmatpush1.msra.mxu0 %v201
    %328 = vmatprep.subr.mxu0 0.0
    %329 = vmatpush1.msra.mxu0 %v202
    %330 = vmatprep.subr.mxu0 0.0
    %331 = vmatpush1.msra.mxu0 0.0
    %332 = vmatprep.subr.mxu0 0.0
    %333 = vmatpush1.msra.mxu0 0.0
    %334 = vmatprep.subr.mxu0 0.0
    %335 = vmatpush1.msra.mxu0 0.0
    %336 = vmatprep.subr.mxu0 0.0
    %337 = vmatpush1.msra.mxu0 0.0
    %338 = vmatprep.subr.mxu0 0.0
    %339 = vmatpush1.msra.mxu0 0.0
    %340 = vmatprep.subr.mxu0 0.0
    %341 = vmatpush1.msra.mxu0 0.0
    %342 = vmatprep.subr.mxu0 0.0
    %343 = vmatpush1.msra.mxu0 0.0
    %344 = vmatprep.subr.mxu0 0.0
    %345 = vmatpush1.msra.mxu0 0.0
    %346 = vmatprep.subr.mxu0 0.0
    %347 = vmatpush1.msra.mxu0 0.0
    %348 = vmatprep.subr.mxu0 0.0
    %349 = vmatpush1.msra.mxu0 0.0
    %350 = vmatprep.subr.mxu0 0.0
    %351 = vmatpush1.msra.mxu0 0.0
    %352 = vmatprep.subr.mxu0 0.0
    %353 = vmatpush1.msra.mxu0 0.0
    %354 = vmatprep.subr.mxu0 0.0
    %355 = vmatpush1.msra.mxu0 0.0
    %356 = vmatprep.subr.mxu0 0.0
    %357 = vmatpush1.msra.mxu0 0.0
    %358 = vmatprep.subr.mxu0 0.0
    %359 = vmatpush1.msra.mxu0 0.0
    %360 = vmatprep.subr.mxu0 0.0
    %361 = vmatpush1.msra.mxu0 0.0
    %362 = vmatprep.subr.mxu0 0.0
    %363 = vmatpush1.msra.mxu0 0.0
    %364 = vmatprep.subr.mxu0 0.0
    %365 = vmatpush1.msra.mxu0 0.0
    %366 = vmatprep.subr.mxu0 0.0
    %367 = vmatpush1.msra.mxu0 0.0
    %368 = vmatprep.subr.mxu0 0.0
    %369 = vmatpush1.msra.mxu0 0.0
    %370 = vmatprep.subr.mxu0 0.0
    %371 = vmatpush1.msra.mxu0 0.0
    %372 = vmatprep.subr.mxu0 0.0
    %373 = vmatpush1.msra.mxu0 0.0
    %374 = vmatprep.subr.mxu0 0.0
    %375 = vmatpush1.msra.mxu0 0.0
    %376 = vmatprep.subr.mxu0 0.0
    %377 = vmatpush1.msra.mxu0 0.0
    %378 = vmatprep.subr.mxu0 0.0
    %379 = vmatpush1.msra.mxu0 0.0
    %380 = vmatprep.subr.mxu0 0.0
    %381 = vmatpush1.msra.mxu0 0.0
    %382 = vmatprep.subr.mxu0 0.0
    %383 = vmatpush1.msra.mxu0 0.0
    %384 = vmatprep.subr.mxu0 0.0
    %385 = vmatpush1.msra.mxu0 0.0
    %386 = vmatprep.subr.mxu0 0.0
    %387 = vmatpush1.msra.mxu0 0.0
    %388 = vmatprep.mubr.f32.mxu0 0.0
    %389 = vmatmul.mubr.f32.gmra.mrb[0].mxu0 %v322
    %v390 = vpop.f32.mrb[0].mxu0
    %v391 = vadd.f32 %v321, %v390
    %v392 = vpop.f32.mrb[0].mxu0
    %393 = vdwg.mxu0
    %v394 = vmul.f32 %v391, 0.5
    %v395 = vtanh.pop %v394
    %v396 = vmul.f32 %v395, 0.5
    %v397 = vadd.f32 %v396, 0.5
    %v398 = vtanh.pop %v391
    %v399 = vmul.f32 %v397, %v293
    %401 = vrot.lane.b32.xlu0 %v398, 56
    %v402 = vpop.permute.xlu0 %401
    %v404 = vmul.f32 %v397, %v402
    %406 = vrot.lane.b32.xlu0 %v404, 24
    %v407 = vpop.permute.xlu0 %406
    %v409 = vadd.f32 %v399, %v407
    %v410 = vtanh.pop %v409
    %412 = vrot.lane.b32.xlu0 %v410, 24
    %v413 = vpop.permute.xlu0 %412
    %v415 = vmul.f32 %v397, %v413
    %417 = vrot.lane.b32.xlu0 %v415, 80
    %v418 = vpop.permute.xlu0 %417
    %s420 = scalar_lea.vmem [#allocation2], 8
    %421 = vst.msk [vmem:[%s420] sm:$0xff] %vm204, %v418
    %422 = vrot.lane.b32.xlu0 %v415, 68
    %v423 = vpop.permute.xlu0 %422
    %425 = vrot.lane.b32.xlu0 %v415, 92
    %v426 = vpop.permute.xlu0 %425
    %v428 = vsel %vm311, %v423, %v426
    %430 = vrot.lane.b32.xlu0 %v428, 24
    %v431 = vpop.permute.xlu0 %430
    %s433 = scalar_lea.vmem [#allocation2], 48
    %434 = vst.msk [vmem:[%s433] sm:$0xff] %vm318, %v431
    %s435 = scalar_lea.vmem [#allocation4], 16
    %v436 = vld [vmem:[%s435] sm:$0xff]
    %v437 = vsel %vm204, %v418, 0
    %439 = vmatprep.subr.mxu0 0.0
    %440 = vmatpush1.msra.mxu0 %v200
    %441 = vmatprep.subr.mxu0 0.0
    %442 = vmatpush1.msra.mxu0 %v201
    %443 = vmatprep.subr.mxu0 0.0
    %444 = vmatpush1.msra.mxu0 %v202
    %445 = vmatprep.subr.mxu0 0.0
    %446 = vmatpush1.msra.mxu0 0.0
    %447 = vmatprep.subr.mxu0 0.0
    %448 = vmatpush1.msra.mxu0 0.0
    %449 = vmatprep.subr.mxu0 0.0
    %450 = vmatpush1.msra.mxu0 0.0
    %451 = vmatprep.subr.mxu0 0.0
    %452 = vmatpush1.msra.mxu0 0.0
    %453 = vmatprep.subr.mxu0 0.0
    %454 = vmatpush1.msra.mxu0 0.0
    %455 = vmatprep.subr.mxu0 0.0
    %456 = vmatpush1.msra.mxu0 0.0
    %457 = vmatprep.subr.mxu0 0.0
    %458 = vmatpush1.msra.mxu0 0.0
    %459 = vmatprep.subr.mxu0 0.0
    %460 = vmatpush1.msra.mxu0 0.0
    %461 = vmatprep.subr.mxu0 0.0
    %462 = vmatpush1.msra.mxu0 0.0
    %463 = vmatprep.subr.mxu0 0.0
    %464 = vmatpush1.msra.mxu0 0.0
    %465 = vmatprep.subr.mxu0 0.0
    %466 = vmatpush1.msra.mxu0 0.0
    %467 = vmatprep.subr.mxu0 0.0
    %468 = vmatpush1.msra.mxu0 0.0
    %469 = vmatprep.subr.mxu0 0.0
    %470 = vmatpush1.msra.mxu0 0.0
    %471 = vmatprep.subr.mxu0 0.0
    %472 = vmatpush1.msra.mxu0 0.0
    %473 = vmatprep.subr.mxu0 0.0
    %474 = vmatpush1.msra.mxu0 0.0
    %475 = vmatprep.subr.mxu0 0.0
    %476 = vmatpush1.msra.mxu0 0.0
    %477 = vmatprep.subr.mxu0 0.0
    %478 = vmatpush1.msra.mxu0 0.0
    %479 = vmatprep.subr.mxu0 0.0
    %480 = vmatpush1.msra.mxu0 0.0
    %481 = vmatprep.subr.mxu0 0.0
    %482 = vmatpush1.msra.mxu0 0.0
    %483 = vmatprep.subr.mxu0 0.0
    %484 = vmatpush1.msra.mxu0 0.0
    %485 = vmatprep.subr.mxu0 0.0
    %486 = vmatpush1.msra.mxu0 0.0
    %487 = vmatprep.subr.mxu0 0.0
    %488 = vmatpush1.msra.mxu0 0.0
    %489 = vmatprep.subr.mxu0 0.0
    %490 = vmatpush1.msra.mxu0 0.0
    %491 = vmatprep.subr.mxu0 0.0
    %492 = vmatpush1.msra.mxu0 0.0
    %493 = vmatprep.subr.mxu0 0.0
    %494 = vmatpush1.msra.mxu0 0.0
    %495 = vmatprep.subr.mxu0 0.0
    %496 = vmatpush1.msra.mxu0 0.0
    %497 = vmatprep.subr.mxu0 0.0
    %498 = vmatpush1.msra.mxu0 0.0
    %499 = vmatprep.subr.mxu0 0.0
    %500 = vmatpush1.msra.mxu0 0.0
    %501 = vmatprep.subr.mxu0 0.0
    %502 = vmatpush1.msra.mxu0 0.0
    %503 = vmatprep.mubr.f32.mxu0 0.0
    %504 = vmatmul.mubr.f32.gmra.mrb[0].mxu0 %v437
    %v505 = vpop.f32.mrb[0].mxu0
    %v506 = vadd.f32 %v436, %v505
    %v507 = vpop.f32.mrb[0].mxu0
    %508 = vdwg.mxu0
    %v509 = vmul.f32 %v506, 0.5
    %v510 = vtanh.pop %v509
    %v511 = vmul.f32 %v510, 0.5
    %v512 = vadd.f32 %v511, 0.5
    %v513 = vtanh.pop %v506
    %v514 = vmul.f32 %v512, %v409
    %516 = vrot.lane.b32.xlu0 %v513, 56
    %v517 = vpop.permute.xlu0 %516
    %v519 = vmul.f32 %v512, %v517
    %521 = vrot.lane.b32.xlu0 %v519, 24
    %v522 = vpop.permute.xlu0 %521
    %v524 = vadd.f32 %v514, %v522
    %v525 = vtanh.pop %v524
    %527 = vrot.lane.b32.xlu0 %v525, 24
    %v528 = vpop.permute.xlu0 %527
    %v530 = vmul.f32 %v512, %v528
    %532 = vrot.lane.b32.xlu0 %v530, 80
    %v533 = vpop.permute.xlu0 %532
    %s535 = scalar_lea.vmem [#allocation2], 16
    %536 = vst.msk [vmem:[%s535] sm:$0xff] %vm204, %v533
    %537 = vrot.lane.b32.xlu0 %v530, 68
    %v538 = vpop.permute.xlu0 %537
    %540 = vrot.lane.b32.xlu0 %v530, 92
    %v541 = vpop.permute.xlu0 %540
    %v543 = vsel %vm311, %v538, %v541
    %545 = vrot.lane.b32.xlu0 %v543, 24
    %v546 = vpop.permute.xlu0 %545
    %s548 = scalar_lea.vmem [#allocation2], 40
    %549 = vst.msk [vmem:[%s548] sm:$0xff] %vm318, %v546
    %s550 = scalar_lea.vmem [#allocation4], 24
    %v551 = vld [vmem:[%s550] sm:$0xff]
    %v552 = vsel %vm204, %v533, 0
    %554 = vmatprep.subr.mxu0 0.0
    %555 = vmatpush1.msra.mxu0 %v200
    %556 = vmatprep.subr.mxu0 0.0
    %557 = vmatpush1.msra.mxu0 %v201
    %558 = vmatprep.subr.mxu0 0.0
    %559 = vmatpush1.msra.mxu0 %v202
    %560 = vmatprep.subr.mxu0 0.0
    %561 = vmatpush1.msra.mxu0 0.0
    %562 = vmatprep.subr.mxu0 0.0
    %563 = vmatpush1.msra.mxu0 0.0
    %564 = vmatprep.subr.mxu0 0.0
    %565 = vmatpush1.msra.mxu0 0.0
    %566 = vmatprep.subr.mxu0 0.0
    %567 = vmatpush1.msra.mxu0 0.0
    %568 = vmatprep.subr.mxu0 0.0
    %569 = vmatpush1.msra.mxu0 0.0
    %570 = vmatprep.subr.mxu0 0.0
    %571 = vmatpush1.msra.mxu0 0.0
    %572 = vmatprep.subr.mxu0 0.0
    %573 = vmatpush1.msra.mxu0 0.0
    %574 = vmatprep.subr.mxu0 0.0
    %575 = vmatpush1.msra.mxu0 0.0
    %576 = vmatprep.subr.mxu0 0.0
    %577 = vmatpush1.msra.mxu0 0.0
    %578 = vmatprep.subr.mxu0 0.0
    %579 = vmatpush1.msra.mxu0 0.0
    %580 = vmatprep.subr.mxu0 0.0
    %581 = vmatpush1.msra.mxu0 0.0
    %582 = vmatprep.subr.mxu0 0.0
    %583 = vmatpush1.msra.mxu0 0.0
    %584 = vmatprep.subr.mxu0 0.0
    %585 = vmatpush1.msra.mxu0 0.0
    %586 = vmatprep.subr.mxu0 0.0
    %587 = vmatpush1.msra.mxu0 0.0
    %588 = vmatprep.subr.mxu0 0.0
    %589 = vmatpush1.msra.mxu0 0.0
    %590 = vmatprep.subr.mxu0 0.0
    %591 = vmatpush1.msra.mxu0 0.0
    %592 = vmatprep.subr.mxu0 0.0
    %593 = vmatpush1.msra.mxu0 0.0
    %594 = vmatprep.subr.mxu0 0.0
    %595 = vmatpush1.msra.mxu0 0.0
    %596 = vmatprep.subr.mxu0 0.0
    %597 = vmatpush1.msra.mxu0 0.0
    %598 = vmatprep.subr.mxu0 0.0
    %599 = vmatpush1.msra.mxu0 0.0
    %600 = vmatprep.subr.mxu0 0.0
    %601 = vmatpush1.msra.mxu0 0.0
    %602 = vmatprep.subr.mxu0 0.0
    %603 = vmatpush1.msra.mxu0 0.0
    %604 = vmatprep.subr.mxu0 0.0
    %605 = vmatpush1.msra.mxu0 0.0
    %606 = vmatprep.subr.mxu0 0.0
    %607 = vmatpush1.msra.mxu0 0.0
    %608 = vmatprep.subr.mxu0 0.0
    %609 = vmatpush1.msra.mxu0 0.0
    %610 = vmatprep.subr.mxu0 0.0
    %611 = vmatpush1.msra.mxu0 0.0
    %612 = vmatprep.subr.mxu0 0.0
    %613 = vmatpush1.msra.mxu0 0.0
    %614 = vmatprep.subr.mxu0 0.0
    %615 = vmatpush1.msra.mxu0 0.0
    %616 = vmatprep.subr.mxu0 0.0
    %617 = vmatpush1.msra.mxu0 0.0
    %618 = vmatprep.mubr.f32.mxu0 0.0
    %619 = vmatmul.mubr.f32.gmra.mrb[0].mxu0 %v552
    %v620 = vpop.f32.mrb[0].mxu0
    %v621 = vadd.f32 %v551, %v620
    %v622 = vpop.f32.mrb[0].mxu0
    %623 = vdwg.mxu0
    %v624 = vmul.f32 %v621, 0.5
    %v625 = vtanh.pop %v624
    %v626 = vmul.f32 %v625, 0.5
    %v627 = vadd.f32 %v626, 0.5
    %v628 = vtanh.pop %v621
    %v629 = vmul.f32 %v627, %v524
    %631 = vrot.lane.b32.xlu0 %v628, 56
    %v632 = vpop.permute.xlu0 %631
    %v634 = vmul.f32 %v627, %v632
    %636 = vrot.lane.b32.xlu0 %v634, 24
    %v637 = vpop.permute.xlu0 %636
    %v639 = vadd.f32 %v629, %v637
    %v640 = vtanh.pop %v639
    %642 = vrot.lane.b32.xlu0 %v640, 24
    %v643 = vpop.permute.xlu0 %642
    %v645 = vmul.f32 %v627, %v643
    %647 = vrot.lane.b32.xlu0 %v645, 80
    %v648 = vpop.permute.xlu0 %647
    %s650 = scalar_lea.vmem [#allocation2], 24
    %651 = vst.msk [vmem:[%s650] sm:$0xff] %vm204, %v648
    %652 = vrot.lane.b32.xlu0 %v645, 68
    %v653 = vpop.permute.xlu0 %652
    %655 = vrot.lane.b32.xlu0 %v645, 92
    %v656 = vpop.permute.xlu0 %655
    %v658 = vsel %vm311, %v653, %v656
    %660 = vrot.lane.b32.xlu0 %v658, 24
    %v661 = vpop.permute.xlu0 %660
    %s663 = scalar_lea.vmem [#allocation2], 32
    %664 = vst.msk [vmem:[%s663] sm:$0xff] %vm318, %v661
    %s665 = scalar_lea.vmem [#allocation4], 32
    %v666 = vld [vmem:[%s665] sm:$0xff]
    %v667 = vsel %vm204, %v648, 0
    %669 = vmatprep.subr.mxu0 0.0
    %670 = vmatpush1.msra.mxu0 %v200
    %671 = vmatprep.subr.mxu0 0.0
    %672 = vmatpush1.msra.mxu0 %v201
    %673 = vmatprep.subr.mxu0 0.0
    %674 = vmatpush1.msra.mxu0 %v202
    %675 = vmatprep.subr.mxu0 0.0
    %676 = vmatpush1.msra.mxu0 0.0
    %677 = vmatprep.subr.mxu0 0.0
    %678 = vmatpush1.msra.mxu0 0.0
    %679 = vmatprep.subr.mxu0 0.0
    %680 = vmatpush1.msra.mxu0 0.0
    %681 = vmatprep.subr.mxu0 0.0
    %682 = vmatpush1.msra.mxu0 0.0
    %683 = vmatprep.subr.mxu0 0.0
    %684 = vmatpush1.msra.mxu0 0.0
    %685 = vmatprep.subr.mxu0 0.0
    %686 = vmatpush1.msra.mxu0 0.0
    %687 = vmatprep.subr.mxu0 0.0
    %688 = vmatpush1.msra.mxu0 0.0
    %689 = vmatprep.subr.mxu0 0.0
    %690 = vmatpush1.msra.mxu0 0.0
    %691 = vmatprep.subr.mxu0 0.0
    %692 = vmatpush1.msra.mxu0 0.0
    %693 = vmatprep.subr.mxu0 0.0
    %694 = vmatpush1.msra.mxu0 0.0
    %695 = vmatprep.subr.mxu0 0.0
    %696 = vmatpush1.msra.mxu0 0.0
    %697 = vmatprep.subr.mxu0 0.0
    %698 = vmatpush1.msra.mxu0 0.0
    %699 = vmatprep.subr.mxu0 0.0
    %700 = vmatpush1.msra.mxu0 0.0
    %701 = vmatprep.subr.mxu0 0.0
    %702 = vmatpush1.msra.mxu0 0.0
    %703 = vmatprep.subr.mxu0 0.0
    %704 = vmatpush1.msra.mxu0 0.0
    %705 = vmatprep.subr.mxu0 0.0
    %706 = vmatpush1.msra.mxu0 0.0
    %707 = vmatprep.subr.mxu0 0.0
    %708 = vmatpush1.msra.mxu0 0.0
    %709 = vmatprep.subr.mxu0 0.0
    %710 = vmatpush1.msra.mxu0 0.0
    %711 = vmatprep.subr.mxu0 0.0
    %712 = vmatpush1.msra.mxu0 0.0
    %713 = vmatprep.subr.mxu0 0.0
    %714 = vmatpush1.msra.mxu0 0.0
    %715 = vmatprep.subr.mxu0 0.0
    %716 = vmatpush1.msra.mxu0 0.0
    %717 = vmatprep.subr.mxu0 0.0
    %718 = vmatpush1.msra.mxu0 0.0
    %719 = vmatprep.subr.mxu0 0.0
    %720 = vmatpush1.msra.mxu0 0.0
    %721 = vmatprep.subr.mxu0 0.0
    %722 = vmatpush1.msra.mxu0 0.0
    %723 = vmatprep.subr.mxu0 0.0
    %724 = vmatpush1.msra.mxu0 0.0
    %725 = vmatprep.subr.mxu0 0.0
    %726 = vmatpush1.msra.mxu0 0.0
    %727 = vmatprep.subr.mxu0 0.0
    %728 = vmatpush1.msra.mxu0 0.0
    %729 = vmatprep.subr.mxu0 0.0
    %730 = vmatpush1.msra.mxu0 0.0
    %731 = vmatprep.subr.mxu0 0.0
    %732 = vmatpush1.msra.mxu0 0.0
    %733 = vmatprep.mubr.f32.mxu0 0.0
    %734 = vmatmul.mubr.f32.gmra.mrb[0].mxu0 %v667
    %v735 = vpop.f32.mrb[0].mxu0
    %v736 = vadd.f32 %v666, %v735
    %v737 = vpop.f32.mrb[0].mxu0
    %738 = vdwg.mxu0
    %v739 = vmul.f32 %v736, 0.5
    %v740 = vtanh.pop %v739
    %v741 = vmul.f32 %v740, 0.5
    %v742 = vadd.f32 %v741, 0.5
    %v743 = vtanh.pop %v736
    %v744 = vmul.f32 %v742, %v639
    %746 = vrot.lane.b32.xlu0 %v743, 56
    %v747 = vpop.permute.xlu0 %746
    %v749 = vmul.f32 %v742, %v747
    %751 = vrot.lane.b32.xlu0 %v749, 24
    %v752 = vpop.permute.xlu0 %751
    %v754 = vadd.f32 %v744, %v752
    %v755 = vtanh.pop %v754
    %757 = vrot.lane.b32.xlu0 %v755, 24
    %v758 = vpop.permute.xlu0 %757
    %v760 = vmul.f32 %v742, %v758
    %762 = vrot.lane.b32.xlu0 %v760, 80
    %v763 = vpop.permute.xlu0 %762
    %765 = vst.msk [vmem:[%s663] sm:$0xff] %vm204, %v763
    %766 = vrot.lane.b32.xlu0 %v760, 68
    %v767 = vpop.permute.xlu0 %766
    %769 = vrot.lane.b32.xlu0 %v760, 92
    %v770 = vpop.permute.xlu0 %769
    %v772 = vsel %vm311, %v767, %v770
    %774 = vrot.lane.b32.xlu0 %v772, 24
    %v775 = vpop.permute.xlu0 %774
    %777 = vst.msk [vmem:[%s650] sm:$0xff] %vm318, %v775
    %s778 = scalar_lea.vmem [#allocation4], 40
    %v779 = vld [vmem:[%s778] sm:$0xff]
    %v780 = vsel %vm204, %v763, 0
    %782 = vmatprep.subr.mxu0 0.0
    %783 = vmatpush1.msra.mxu0 %v200
    %784 = vmatprep.subr.mxu0 0.0
    %785 = vmatpush1.msra.mxu0 %v201
    %786 = vmatprep.subr.mxu0 0.0
    %787 = vmatpush1.msra.mxu0 %v202
    %788 = vmatprep.subr.mxu0 0.0
    %789 = vmatpush1.msra.mxu0 0.0
    %790 = vmatprep.subr.mxu0 0.0
    %791 = vmatpush1.msra.mxu0 0.0
    %792 = vmatprep.subr.mxu0 0.0
    %793 = vmatpush1.msra.mxu0 0.0
    %794 = vmatprep.subr.mxu0 0.0
    %795 = vmatpush1.msra.mxu0 0.0
    %796 = vmatprep.subr.mxu0 0.0
    %797 = vmatpush1.msra.mxu0 0.0
    %798 = vmatprep.subr.mxu0 0.0
    %799 = vmatpush1.msra.mxu0 0.0
    %800 = vmatprep.subr.mxu0 0.0
    %801 = vmatpush1.msra.mxu0 0.0
    %802 = vmatprep.subr.mxu0 0.0
    %803 = vmatpush1.msra.mxu0 0.0
    %804 = vmatprep.subr.mxu0 0.0
    %805 = vmatpush1.msra.mxu0 0.0
    %806 = vmatprep.subr.mxu0 0.0
    %807 = vmatpush1.msra.mxu0 0.0
    %808 = vmatprep.subr.mxu0 0.0
    %809 = vmatpush1.msra.mxu0 0.0
    %810 = vmatprep.subr.mxu0 0.0
    %811 = vmatpush1.msra.mxu0 0.0
    %812 = vmatprep.subr.mxu0 0.0
    %813 = vmatpush1.msra.mxu0 0.0
    %814 = vmatprep.subr.mxu0 0.0
    %815 = vmatpush1.msra.mxu0 0.0
    %816 = vmatprep.subr.mxu0 0.0
    %817 = vmatpush1.msra.mxu0 0.0
    %818 = vmatprep.subr.mxu0 0.0
    %819 = vmatpush1.msra.mxu0 0.0
    %820 = vmatprep.subr.mxu0 0.0
    %821 = vmatpush1.msra.mxu0 0.0
    %822 = vmatprep.subr.mxu0 0.0
    %823 = vmatpush1.msra.mxu0 0.0
    %824 = vmatprep.subr.mxu0 0.0
    %825 = vmatpush1.msra.mxu0 0.0
    %826 = vmatprep.subr.mxu0 0.0
    %827 = vmatpush1.msra.mxu0 0.0
    %828 = vmatprep.subr.mxu0 0.0
    %829 = vmatpush1.msra.mxu0 0.0
    %830 = vmatprep.subr.mxu0 0.0
    %831 = vmatpush1.msra.mxu0 0.0
    %832 = vmatprep.subr.mxu0 0.0
    %833 = vmatpush1.msra.mxu0 0.0
    %834 = vmatprep.subr.mxu0 0.0
    %835 = vmatpush1.msra.mxu0 0.0
    %836 = vmatprep.subr.mxu0 0.0
    %837 = vmatpush1.msra.mxu0 0.0
    %838 = vmatprep.subr.mxu0 0.0
    %839 = vmatpush1.msra.mxu0 0.0
    %840 = vmatprep.subr.mxu0 0.0
    %841 = vmatpush1.msra.mxu0 0.0
    %842 = vmatprep.subr.mxu0 0.0
    %843 = vmatpush1.msra.mxu0 0.0
    %844 = vmatprep.subr.mxu0 0.0
    %845 = vmatpush1.msra.mxu0 0.0
    %846 = vmatprep.mubr.f32.mxu0 0.0
    %847 = vmatmul.mubr.f32.gmra.mrb[0].mxu0 %v780
    %v848 = vpop.f32.mrb[0].mxu0
    %v849 = vadd.f32 %v779, %v848
    %v850 = vpop.f32.mrb[0].mxu0
    %851 = vdwg.mxu0
    %v852 = vmul.f32 %v849, 0.5
    %v853 = vtanh.pop %v852
    %v854 = vmul.f32 %v853, 0.5
    %v855 = vadd.f32 %v854, 0.5
    %v856 = vtanh.pop %v849
    %v857 = vmul.f32 %v855, %v754
    %859 = vrot.lane.b32.xlu0 %v856, 56
    %v860 = vpop.permute.xlu0 %859
    %v862 = vmul.f32 %v855, %v860
    %864 = vrot.lane.b32.xlu0 %v862, 24
    %v865 = vpop.permute.xlu0 %864
    %v867 = vadd.f32 %v857, %v865
    %v868 = vtanh.pop %v867
    %870 = vrot.lane.b32.xlu0 %v868, 24
    %v871 = vpop.permute.xlu0 %870
    %v873 = vmul.f32 %v855, %v871
    %875 = vrot.lane.b32.xlu0 %v873, 80
    %v876 = vpop.permute.xlu0 %875
    %878 = vst.msk [vmem:[%s548] sm:$0xff] %vm204, %v876
    %879 = vrot.lane.b32.xlu0 %v873, 68
    %v880 = vpop.permute.xlu0 %879
    %882 = vrot.lane.b32.xlu0 %v873, 92
    %v883 = vpop.permute.xlu0 %882
    %v885 = vsel %vm311, %v880, %v883
    %887 = vrot.lane.b32.xlu0 %v885, 24
    %v888 = vpop.permute.xlu0 %887
    %890 = vst.msk [vmem:[%s535] sm:$0xff] %vm318, %v888
    %s891 = scalar_lea.vmem [#allocation4], 48
    %v892 = vld [vmem:[%s891] sm:$0xff]
    %v893 = vsel %vm204, %v876, 0
    %895 = vmatprep.subr.mxu0 0.0
    %896 = vmatpush1.msra.mxu0 %v200
    %897 = vmatprep.subr.mxu0 0.0
    %898 = vmatpush1.msra.mxu0 %v201
    %899 = vmatprep.subr.mxu0 0.0
    %900 = vmatpush1.msra.mxu0 %v202
    %901 = vmatprep.subr.mxu0 0.0
    %902 = vmatpush1.msra.mxu0 0.0
    %903 = vmatprep.subr.mxu0 0.0
    %904 = vmatpush1.msra.mxu0 0.0
    %905 = vmatprep.subr.mxu0 0.0
    %906 = vmatpush1.msra.mxu0 0.0
    %907 = vmatprep.subr.mxu0 0.0
    %908 = vmatpush1.msra.mxu0 0.0
    %909 = vmatprep.subr.mxu0 0.0
    %910 = vmatpush1.msra.mxu0 0.0
    %911 = vmatprep.subr.mxu0 0.0
    %912 = vmatpush1.msra.mxu0 0.0
    %913 = vmatprep.subr.mxu0 0.0
    %914 = vmatpush1.msra.mxu0 0.0
    %915 = vmatprep.subr.mxu0 0.0
    %916 = vmatpush1.msra.mxu0 0.0
    %917 = vmatprep.subr.mxu0 0.0
    %918 = vmatpush1.msra.mxu0 0.0
    %919 = vmatprep.subr.mxu0 0.0
    %920 = vmatpush1.msra.mxu0 0.0
    %921 = vmatprep.subr.mxu0 0.0
    %922 = vmatpush1.msra.mxu0 0.0
    %923 = vmatprep.subr.mxu0 0.0
    %924 = vmatpush1.msra.mxu0 0.0
    %925 = vmatprep.subr.mxu0 0.0
    %926 = vmatpush1.msra.mxu0 0.0
    %927 = vmatprep.subr.mxu0 0.0
    %928 = vmatpush1.msra.mxu0 0.0
    %929 = vmatprep.subr.mxu0 0.0
    %930 = vmatpush1.msra.mxu0 0.0
    %931 = vmatprep.subr.mxu0 0.0
    %932 = vmatpush1.msra.mxu0 0.0
    %933 = vmatprep.subr.mxu0 0.0
    %934 = vmatpush1.msra.mxu0 0.0
    %935 = vmatprep.subr.mxu0 0.0
    %936 = vmatpush1.msra.mxu0 0.0
    %937 = vmatprep.subr.mxu0 0.0
    %938 = vmatpush1.msra.mxu0 0.0
    %939 = vmatprep.subr.mxu0 0.0
    %940 = vmatpush1.msra.mxu0 0.0
    %941 = vmatprep.subr.mxu0 0.0
    %942 = vmatpush1.msra.mxu0 0.0
    %943 = vmatprep.subr.mxu0 0.0
    %944 = vmatpush1.msra.mxu0 0.0
    %945 = vmatprep.subr.mxu0 0.0
    %946 = vmatpush1.msra.mxu0 0.0
    %947 = vmatprep.subr.mxu0 0.0
    %948 = vmatpush1.msra.mxu0 0.0
    %949 = vmatprep.subr.mxu0 0.0
    %950 = vmatpush1.msra.mxu0 0.0
    %951 = vmatprep.subr.mxu0 0.0
    %952 = vmatpush1.msra.mxu0 0.0
    %953 = vmatprep.subr.mxu0 0.0
    %954 = vmatpush1.msra.mxu0 0.0
    %955 = vmatprep.subr.mxu0 0.0
    %956 = vmatpush1.msra.mxu0 0.0
    %957 = vmatprep.subr.mxu0 0.0
    %958 = vmatpush1.msra.mxu0 0.0
    %959 = vmatprep.mubr.f32.mxu0 0.0
    %960 = vmatmul.mubr.f32.gmra.mrb[0].mxu0 %v893
    %v961 = vpop.f32.mrb[0].mxu0
    %v962 = vadd.f32 %v892, %v961
    %v963 = vpop.f32.mrb[0].mxu0
    %964 = vdwg.mxu0
    %v965 = vmul.f32 %v962, 0.5
    %v966 = vtanh.pop %v965
    %v967 = vmul.f32 %v966, 0.5
    %v968 = vadd.f32 %v967, 0.5
    %v969 = vtanh.pop %v962
    %v970 = vmul.f32 %v968, %v867
    %972 = vrot.lane.b32.xlu0 %v969, 56
    %v973 = vpop.permute.xlu0 %972
    %v975 = vmul.f32 %v968, %v973
    %977 = vrot.lane.b32.xlu0 %v975, 24
    %v978 = vpop.permute.xlu0 %977
    %v980 = vadd.f32 %v970, %v978
    %v981 = vtanh.pop %v980
    %983 = vrot.lane.b32.xlu0 %v981, 24
    %v984 = vpop.permute.xlu0 %983
    %v986 = vmul.f32 %v968, %v984
    %988 = vrot.lane.b32.xlu0 %v986, 80
    %v989 = vpop.permute.xlu0 %988
    %991 = vst.msk [vmem:[%s433] sm:$0xff] %vm204, %v989
    %992 = vrot.lane.b32.xlu0 %v986, 68
    %v993 = vpop.permute.xlu0 %992
    %995 = vrot.lane.b32.xlu0 %v986, 92
    %v996 = vpop.permute.xlu0 %995
    %v998 = vsel %vm311, %v993, %v996
    %1000 = vrot.lane.b32.xlu0 %v998, 24
    %v1001 = vpop.permute.xlu0 %1000
    %1003 = vst.msk [vmem:[%s420] sm:$0xff] %vm318, %v1001
    %s1004 = scalar_lea.vmem [#allocation4], 56
    %v1005 = vld [vmem:[%s1004] sm:$0xff]
    %v1006 = vsel %vm204, %v989, 0
    %1008 = vmatprep.subr.mxu0 0.0
    %1009 = vmatpush1.msra.mxu0 %v200
    %1010 = vmatprep.subr.mxu0 0.0
    %1011 = vmatpush1.msra.mxu0 %v201
    %1012 = vmatprep.subr.mxu0 0.0
    %1013 = vmatpush1.msra.mxu0 %v202
    %1014 = vmatprep.subr.mxu0 0.0
    %1015 = vmatpush1.msra.mxu0 0.0
    %1016 = vmatprep.subr.mxu0 0.0
    %1017 = vmatpush1.msra.mxu0 0.0
    %1018 = vmatprep.subr.mxu0 0.0
    %1019 = vmatpush1.msra.mxu0 0.0
    %1020 = vmatprep.subr.mxu0 0.0
    %1021 = vmatpush1.msra.mxu0 0.0
    %1022 = vmatprep.subr.mxu0 0.0
    %1023 = vmatpush1.msra.mxu0 0.0
    %1024 = vmatprep.subr.mxu0 0.0
    %1025 = vmatpush1.msra.mxu0 0.0
    %1026 = vmatprep.subr.mxu0 0.0
    %1027 = vmatpush1.msra.mxu0 0.0
    %1028 = vmatprep.subr.mxu0 0.0
    %1029 = vmatpush1.msra.mxu0 0.0
    %1030 = vmatprep.subr.mxu0 0.0
    %1031 = vmatpush1.msra.mxu0 0.0
    %1032 = vmatprep.subr.mxu0 0.0
    %1033 = vmatpush1.msra.mxu0 0.0
    %1034 = vmatprep.subr.mxu0 0.0
    %1035 = vmatpush1.msra.mxu0 0.0
    %1036 = vmatprep.subr.mxu0 0.0
    %1037 = vmatpush1.msra.mxu0 0.0
    %1038 = vmatprep.subr.mxu0 0.0
    %1039 = vmatpush1.msra.mxu0 0.0
    %1040 = vmatprep.subr.mxu0 0.0
    %1041 = vmatpush1.msra.mxu0 0.0
    %1042 = vmatprep.subr.mxu0 0.0
    %1043 = vmatpush1.msra.mxu0 0.0
    %1044 = vmatprep.subr.mxu0 0.0
    %1045 = vmatpush1.msra.mxu0 0.0
    %1046 = vmatprep.subr.mxu0 0.0
    %1047 = vmatpush1.msra.mxu0 0.0
    %1048 = vmatprep.subr.mxu0 0.0
    %1049 = vmatpush1.msra.mxu0 0.0
    %1050 = vmatprep.subr.mxu0 0.0
    %1051 = vmatpush1.msra.mxu0 0.0
    %1052 = vmatprep.subr.mxu0 0.0
    %1053 = vmatpush1.msra.mxu0 0.0
    %1054 = vmatprep.subr.mxu0 0.0
    %1055 = vmatpush1.msra.mxu0 0.0
    %1056 = vmatprep.subr.mxu0 0.0
    %1057 = vmatpush1.msra.mxu0 0.0
    %1058 = vmatprep.subr.mxu0 0.0
    %1059 = vmatpush1.msra.mxu0 0.0
    %1060 = vmatprep.subr.mxu0 0.0
    %1061 = vmatpush1.msra.mxu0 0.0
    %1062 = vmatprep.subr.mxu0 0.0
    %1063 = vmatpush1.msra.mxu0 0.0
    %1064 = vmatprep.subr.mxu0 0.0
    %1065 = vmatpush1.msra.mxu0 0.0
    %1066 = vmatprep.subr.mxu0 0.0
    %1067 = vmatpush1.msra.mxu0 0.0
    %1068 = vmatprep.subr.mxu0 0.0
    %1069 = vmatpush1.msra.mxu0 0.0
    %1070 = vmatprep.subr.mxu0 0.0
    %1071 = vmatpush1.msra.mxu0 0.0
    %1072 = vmatprep.mubr.f32.mxu0 0.0
    %1073 = vmatmul.mubr.f32.gmra.mrb[0].mxu0 %v1006
    %v1074 = vpop.f32.mrb[0].mxu0
    %v1075 = vadd.f32 %v1005, %v1074
    %v1076 = vpop.f32.mrb[0].mxu0
    %1077 = vdwg.mxu0
    %v1078 = vmul.f32 %v1075, 0.5
    %v1079 = vtanh.pop %v1078
    %v1080 = vmul.f32 %v1079, 0.5
    %v1081 = vadd.f32 %v1080, 0.5
    %v1082 = vtanh.pop %v1075
    %v1083 = vmul.f32 %v1081, %v980
    %1085 = vrot.lane.b32.xlu0 %v1082, 56
    %v1086 = vpop.permute.xlu0 %1085
    %v1088 = vmul.f32 %v1081, %v1086
    %1090 = vrot.lane.b32.xlu0 %v1088, 24
    %v1091 = vpop.permute.xlu0 %1090
    %v1093 = vadd.f32 %v1083, %v1091
    %v1094 = vtanh.pop %v1093
    %1096 = vrot.lane.b32.xlu0 %v1094, 24
    %v1097 = vpop.permute.xlu0 %1096
    %v1099 = vmul.f32 %v1081, %v1097
    %1101 = vrot.lane.b32.xlu0 %v1099, 80
    %v1102 = vpop.permute.xlu0 %1101
    %1104 = vst.msk [vmem:[%s317] sm:$0xff] %vm204, %v1102
    %1105 = vrot.lane.b32.xlu0 %v1099, 68
    %v1106 = vpop.permute.xlu0 %1105
    %1108 = vrot.lane.b32.xlu0 %v1099, 92
    %v1109 = vpop.permute.xlu0 %1108
    %v1111 = vsel %vm311, %v1106, %v1109
    %1113 = vrot.lane.b32.xlu0 %v1111, 24
    %v1114 = vpop.permute.xlu0 %1113
    %1116 = vst.msk [vmem:[#allocation2] sm:$0xff] %vm318, %v1114
    %v1117 = vld [vmem:[#allocation2] sm:$0xff]
    %v1118 = vld [vmem:[#allocation2 + $0x8] sm:$0xff]
    %v1119 = vld [vmem:[#allocation2 + $0x10] sm:$0xff]
    %v1120 = vld [vmem:[#allocation2 + $0x18] sm:$0xff]
    %v1121 = vld [vmem:[#allocation2 + $0x20] sm:$0xff]
    %v1122 = vld [vmem:[#allocation2 + $0x28] sm:$0xff]
    %v1123 = vld [vmem:[#allocation2 + $0x30] sm:$0xff]
    %v1124 = vld [vmem:[#allocation2 + $0x38] sm:$0xff]
    %s1125 = scalar_lea.vmem [#allocation6], 48
    %v1126 = vld [vmem:[%s1125] sm:$0xff]
    %v1127 = vld [vmem:[%s1125 + $0x8] sm:$0xff]
    %v1128 = vld [vmem:[%s1125 + $0x10] sm:$0xff]
    %v1129 = vld [vmem:[%s1125 + $0x18] sm:$0xff]
    %v1130 = vld [vmem:[%s1125 + $0x20] sm:$0xff]
    %v1131 = vld [vmem:[%s1125 + $0x28] sm:$0xff]
    %s1132 = scalar_lea.vmem %s3, 1
    %v1133 = vld [vmem:[%s1132] sm:$0x1]
    %v1135 = vlaneseq
    %v1136 = vshrl.u32 %v1135, 7
    %v1137 = vsub.s32 0, %v1136
    %v1138 = vrot.slane %v1133, %v1137
    %v1141 = vsel %vm61, %v1117, 0
    %v1144 = vsel %vm61, %v1118, 0
    %v1147 = vsel %vm61, %v1119, 0
    %v1150 = vsel %vm61, %v1120, 0
    %v1153 = vsel %vm61, %v1121, 0
    %v1156 = vsel %vm61, %v1122, 0
    %v1159 = vsel %vm61, %v1123, 0
    %v1162 = vsel %vm61, %v1124, 0
    %1164 = vmatprep.subr.mxu0 0.0
    %1165 = vmatpush1.msra.mxu0 %v1126
    %1166 = vmatprep.subr.mxu0 0.0
    %1167 = vmatpush1.msra.mxu0 %v1127
    %1168 = vmatprep.subr.mxu0 0.0
    %1169 = vmatpush1.msra.mxu0 %v1128
    %1170 = vmatprep.subr.mxu0 0.0
    %1171 = vmatpush1.msra.mxu0 %v1129
    %1172 = vmatprep.subr.mxu0 0.0
    %1173 = vmatpush1.msra.mxu0 %v1130
    %1174 = vmatprep.subr.mxu0 0.0
    %1175 = vmatpush1.msra.mxu0 %v1131
    %1176 = vmatprep.subr.mxu0 0.0
    %1177 = vmatpush1.msra.mxu0 0.0
    %1178 = vmatprep.subr.mxu0 0.0
    %1179 = vmatpush1.msra.mxu0 0.0
    %1180 = vmatprep.subr.mxu0 0.0
    %1181 = vmatpush1.msra.mxu0 0.0
    %1182 = vmatprep.subr.mxu0 0.0
    %1183 = vmatpush1.msra.mxu0 0.0
    %1184 = vmatprep.subr.mxu0 0.0
    %1185 = vmatpush1.msra.mxu0 0.0
    %1186 = vmatprep.subr.mxu0 0.0
    %1187 = vmatpush1.msra.mxu0 0.0
    %1188 = vmatprep.subr.mxu0 0.0
    %1189 = vmatpush1.msra.mxu0 0.0
    %1190 = vmatprep.subr.mxu0 0.0
    %1191 = vmatpush1.msra.mxu0 0.0
    %1192 = vmatprep.subr.mxu0 0.0
    %1193 = vmatpush1.msra.mxu0 0.0
    %1194 = vmatprep.subr.mxu0 0.0
    %1195 = vmatpush1.msra.mxu0 0.0
    %1196 = vmatprep.subr.mxu0 0.0
    %1197 = vmatpush1.msra.mxu0 0.0
    %1198 = vmatprep.subr.mxu0 0.0
    %1199 = vmatpush1.msra.mxu0 0.0
    %1200 = vmatprep.subr.mxu0 0.0
    %1201 = vmatpush1.msra.mxu0 0.0
    %1202 = vmatprep.subr.mxu0 0.0
    %1203 = vmatpush1.msra.mxu0 0.0
    %1204 = vmatprep.subr.mxu0 0.0
    %1205 = vmatpush1.msra.mxu0 0.0
    %1206 = vmatprep.subr.mxu0 0.0
    %1207 = vmatpush1.msra.mxu0 0.0
    %1208 = vmatprep.subr.mxu0 0.0
    %1209 = vmatpush1.msra.mxu0 0.0
    %1210 = vmatprep.subr.mxu0 0.0
    %1211 = vmatpush1.msra.mxu0 0.0
    %1212 = vmatprep.subr.mxu0 0.0
    %1213 = vmatpush1.msra.mxu0 0.0
    %1214 = vmatprep.subr.mxu0 0.0
    %1215 = vmatpush1.msra.mxu0 0.0
    %1216 = vmatprep.subr.mxu0 0.0
    %1217 = vmatpush1.msra.mxu0 0.0
    %1218 = vmatprep.subr.mxu0 0.0
    %1219 = vmatpush1.msra.mxu0 0.0
    %1220 = vmatprep.subr.mxu0 0.0
    %1221 = vmatpush1.msra.mxu0 0.0
    %1222 = vmatprep.subr.mxu0 0.0
    %1223 = vmatpush1.msra.mxu0 0.0
    %1224 = vmatprep.subr.mxu0 0.0
    %1225 = vmatpush1.msra.mxu0 0.0
    %1226 = vmatprep.subr.mxu0 0.0
    %1227 = vmatpush1.msra.mxu0 0.0
    %1228 = vmatprep.mubr.f32.mxu0 0.0
    %1229 = vmatmul.mubr.f32.gmra.mrb[0].mxu0 %v1141
    %v1230 = vpop.f32.mrb[0].mxu0
    %v1231 = vadd.f32 %v1138, %v1230
    %v1232 = vpop.f32.mrb[0].mxu0
    %1233 = vmatprep.mubr.f32.mxu0 0.0
    %1234 = vmatmul.mubr.f32.gmra.mrb[0].mxu0 %v1144
    %v1235 = vpop.f32.mrb[0].mxu0
    %v1236 = vadd.f32 %v1138, %v1235
    %v1237 = vpop.f32.mrb[0].mxu0
    %1238 = vmatprep.mubr.f32.mxu0 0.0
    %1239 = vmatmul.mubr.f32.gmra.mrb[0].mxu0 %v1147
    %v1240 = vpop.f32.mrb[0].mxu0
    %v1241 = vadd.f32 %v1138, %v1240
    %v1242 = vpop.f32.mrb[0].mxu0
    %1243 = vmatprep.mubr.f32.mxu0 0.0
    %1244 = vmatmul.mubr.f32.gmra.mrb[0].mxu0 %v1150
    %v1245 = vpop.f32.mrb[0].mxu0
    %v1246 = vadd.f32 %v1138, %v1245
    %v1247 = vpop.f32.mrb[0].mxu0
    %1248 = vmatprep.mubr.f32.mxu0 0.0
    %1249 = vmatmul.mubr.f32.gmra.mrb[0].mxu0 %v1153
    %v1250 = vpop.f32.mrb[0].mxu0
    %v1251 = vadd.f32 %v1138, %v1250
    %v1252 = vpop.f32.mrb[0].mxu0
    %1253 = vmatprep.mubr.f32.mxu0 0.0
    %1254 = vmatmul.mubr.f32.gmra.mrb[0].mxu0 %v1156
    %v1255 = vpop.f32.mrb[0].mxu0
    %v1256 = vadd.f32 %v1138, %v1255
    %v1257 = vpop.f32.mrb[0].mxu0
    %1258 = vmatprep.mubr.f32.mxu0 0.0
    %1259 = vmatmul.mubr.f32.gmra.mrb[0].mxu0 %v1159
    %v1260 = vpop.f32.mrb[0].mxu0
    %v1261 = vadd.f32 %v1138, %v1260
    %v1262 = vpop.f32.mrb[0].mxu0
    %1263 = vmatprep.mubr.f32.mxu0 0.0
    %1264 = vmatmul.mubr.f32.gmra.mrb[0].mxu0 %v1162
    %v1265 = vpop.f32.mrb[0].mxu0
    %v1266 = vadd.f32 %v1138, %v1265
    %v1267 = vpop.f32.mrb[0].mxu0
    %1268 = vdwg.mxu0
    %1269 = vst.msk [vmem:[#allocation4] sm:$0xff] %vm191, %v1231
    %1270 = vst.msk [vmem:[#allocation4 + $0x8] sm:$0xff] %vm191, %v1236
    %1271 = vst.msk [vmem:[#allocation4 + $0x10] sm:$0xff] %vm191, %v1241
    %1272 = vst.msk [vmem:[#allocation4 + $0x18] sm:$0xff] %vm191, %v1246
    %1273 = vst.msk [vmem:[#allocation4 + $0x20] sm:$0xff] %vm191, %v1251
    %1274 = vst.msk [vmem:[#allocation4 + $0x28] sm:$0xff] %vm191, %v1256
    %1275 = vst.msk [vmem:[#allocation4 + $0x30] sm:$0xff] %vm191, %v1261
    %1276 = vst.msk [vmem:[#allocation4 + $0x38] sm:$0xff] %vm191, %v1266
    %s1277 = scalar_lea.vmem %s2, 24
    %v1278 = vld [vmem:[%s1277] sm:$0xff]
    %v1279 = vld [vmem:[%s1277 + $0x8] sm:$0xff]
    %v1280 = vld [vmem:[%s1277 + $0x10] sm:$0xff]
    %v1281 = vld [vmem:[#allocation4] sm:$0xff]
    %1282 = vmatprep.subr.mxu0 0.0
    %1283 = vmatpush1.msra.mxu0 %v1278
    %1284 = vmatprep.subr.mxu0 0.0
    %1285 = vmatpush1.msra.mxu0 %v1279
    %1286 = vmatprep.subr.mxu0 0.0
    %1287 = vmatpush1.msra.mxu0 %v1280
    %1288 = vmatprep.subr.mxu0 0.0
    %1289 = vmatpush1.msra.mxu0 0.0
    %1290 = vmatprep.subr.mxu0 0.0
    %1291 = vmatpush1.msra.mxu0 0.0
    %1292 = vmatprep.subr.mxu0 0.0
    %1293 = vmatpush1.msra.mxu0 0.0
    %1294 = vmatprep.subr.mxu0 0.0
    %1295 = vmatpush1.msra.mxu0 0.0
    %1296 = vmatprep.subr.mxu0 0.0
    %1297 = vmatpush1.msra.mxu0 0.0
    %1298 = vmatprep.subr.mxu0 0.0
    %1299 = vmatpush1.msra.mxu0 0.0
    %1300 = vmatprep.subr.mxu0 0.0
    %1301 = vmatpush1.msra.mxu0 0.0
    %1302 = vmatprep.subr.mxu0 0.0
    %1303 = vmatpush1.msra.mxu0 0.0
    %1304 = vmatprep.subr.mxu0 0.0
    %1305 = vmatpush1.msra.mxu0 0.0
    %1306 = vmatprep.subr.mxu0 0.0
    %1307 = vmatpush1.msra.mxu0 0.0
    %1308 = vmatprep.subr.mxu0 0.0
    %1309 = vmatpush1.msra.mxu0 0.0
    %1310 = vmatprep.subr.mxu0 0.0
    %1311 = vmatpush1.msra.mxu0 0.0
    %1312 = vmatprep.subr.mxu0 0.0
    %1313 = vmatpush1.msra.mxu0 0.0
    %1314 = vmatprep.subr.mxu0 0.0
    %1315 = vmatpush1.msra.mxu0 0.0
    %1316 = vmatprep.subr.mxu0 0.0
    %1317 = vmatpush1.msra.mxu0 0.0
    %1318 = vmatprep.subr.mxu0 0.0
    %1319 = vmatpush1.msra.mxu0 0.0
    %1320 = vmatprep.subr.mxu0 0.0
    %1321 = vmatpush1.msra.mxu0 0.0
    %1322 = vmatprep.subr.mxu0 0.0
    %1323 = vmatpush1.msra.mxu0 0.0
    %1324 = vmatprep.subr.mxu0 0.0
    %1325 = vmatpush1.msra.mxu0 0.0
    %1326 = vmatprep.subr.mxu0 0.0
    %1327 = vmatpush1.msra.mxu0 0.0
    %1328 = vmatprep.subr.mxu0 0.0
    %1329 = vmatpush1.msra.mxu0 0.0
    %1330 = vmatprep.subr.mxu0 0.0
    %1331 = vmatpush1.msra.mxu0 0.0
    %1332 = vmatprep.subr.mxu0 0.0
    %1333 = vmatpush1.msra.mxu0 0.0
    %1334 = vmatprep.subr.mxu0 0.0
    %1335 = vmatpush1.msra.mxu0 0.0
    %1336 = vmatprep.subr.mxu0 0.0
    %1337 = vmatpush1.msra.mxu0 0.0
    %1338 = vmatprep.subr.mxu0 0.0
    %1339 = vmatpush1.msra.mxu0 0.0
    %1340 = vmatprep.subr.mxu0 0.0
    %1341 = vmatpush1.msra.mxu0 0.0
    %1342 = vmatprep.subr.mxu0 0.0
    %1343 = vmatpush1.msra.mxu0 0.0
    %1344 = vmatprep.subr.mxu0 0.0
    %1345 = vmatpush1.msra.mxu0 0.0
    %1346 = vmatprep.mubr.f32.mxu0 0.0
    %1347 = vmatmul.mubr.f32.gmra.mrb[0].mxu0 %v206
    %v1348 = vpop.f32.mrb[0].mxu0
    %v1349 = vadd.f32 %v1281, %v1348
    %v1350 = vpop.f32.mrb[0].mxu0
    %1351 = vdwg.mxu0
    %v1352 = vmul.f32 %v1349, 0.5
    %v1353 = vtanh.pop %v1352
    %v1354 = vmul.f32 %v1353, 0.5
    %v1355 = vadd.f32 %v1354, 0.5
    %v1356 = vtanh.pop %v1349
    %v1357 = vmul.f32 %v1355, 0.0
    %1359 = vrot.lane.b32.xlu0 %v1356, 56
    %v1360 = vpop.permute.xlu0 %1359
    %v1362 = vmul.f32 %v1355, %v1360
    %1364 = vrot.lane.b32.xlu0 %v1362, 24
    %v1365 = vpop.permute.xlu0 %1364
    %v1367 = vadd.f32 %v1357, %v1365
    %v1368 = vtanh.pop %v1367
    %1370 = vrot.lane.b32.xlu0 %v1368, 24
    %v1371 = vpop.permute.xlu0 %1370
    %v1373 = vmul.f32 %v1355, %v1371
    %1375 = vrot.lane.b32.xlu0 %v1373, 80
    %v1376 = vpop.permute.xlu0 %1375
    %1378 = vst.msk [vmem:[#allocation3] sm:$0xff] %vm204, %v1376
    %1379 = vrot.lane.b32.xlu0 %v1373, 68
    %v1380 = vpop.permute.xlu0 %1379
    %1382 = vrot.lane.b32.xlu0 %v1373, 92
    %v1383 = vpop.permute.xlu0 %1382
    %v1385 = vsel %vm311, %v1380, %v1383
    %1387 = vrot.lane.b32.xlu0 %v1385, 24
    %v1388 = vpop.permute.xlu0 %1387
    %s1390 = scalar_lea.vmem [#allocation3], 56
    %1391 = vst.msk [vmem:[%s1390] sm:$0xff] %vm318, %v1388
    %v1392 = vld [vmem:[%s320] sm:$0xff]
    %v1393 = vsel %vm204, %v1376, 0
    %1395 = vmatprep.subr.mxu0 0.0
    %1396 = vmatpush1.msra.mxu0 %v1278
    %1397 = vmatprep.subr.mxu0 0.0
    %1398 = vmatpush1.msra.mxu0 %v1279
    %1399 = vmatprep.subr.mxu0 0.0
    %1400 = vmatpush1.msra.mxu0 %v1280
    %1401 = vmatprep.subr.mxu0 0.0
    %1402 = vmatpush1.msra.mxu0 0.0
    %1403 = vmatprep.subr.mxu0 0.0
    %1404 = vmatpush1.msra.mxu0 0.0
    %1405 = vmatprep.subr.mxu0 0.0
    %1406 = vmatpush1.msra.mxu0 0.0
    %1407 = vmatprep.subr.mxu0 0.0
    %1408 = vmatpush1.msra.mxu0 0.0
    %1409 = vmatprep.subr.mxu0 0.0
    %1410 = vmatpush1.msra.mxu0 0.0
    %1411 = vmatprep.subr.mxu0 0.0
    %1412 = vmatpush1.msra.mxu0 0.0
    %1413 = vmatprep.subr.mxu0 0.0
    %1414 = vmatpush1.msra.mxu0 0.0
    %1415 = vmatprep.subr.mxu0 0.0
    %1416 = vmatpush1.msra.mxu0 0.0
    %1417 = vmatprep.subr.mxu0 0.0
    %1418 = vmatpush1.msra.mxu0 0.0
    %1419 = vmatprep.subr.mxu0 0.0
    %1420 = vmatpush1.msra.mxu0 0.0
    %1421 = vmatprep.subr.mxu0 0.0
    %1422 = vmatpush1.msra.mxu0 0.0
    %1423 = vmatprep.subr.mxu0 0.0
    %1424 = vmatpush1.msra.mxu0 0.0
    %1425 = vmatprep.subr.mxu0 0.0
    %1426 = vmatpush1.msra.mxu0 0.0
    %1427 = vmatprep.subr.mxu0 0.0
    %1428 = vmatpush1.msra.mxu0 0.0
    %1429 = vmatprep.subr.mxu0 0.0
    %1430 = vmatpush1.msra.mxu0 0.0
    %1431 = vmatprep.subr.mxu0 0.0
    %1432 = vmatpush1.msra.mxu0 0.0
    %1433 = vmatprep.subr.mxu0 0.0
    %1434 = vmatpush1.msra.mxu0 0.0
    %1435 = vmatprep.subr.mxu0 0.0
    %1436 = vmatpush1.msra.mxu0 0.0
    %1437 = vmatprep.subr.mxu0 0.0
    %1438 = vmatpush1.msra.mxu0 0.0
    %1439 = vmatprep.subr.mxu0 0.0
    %1440 = vmatpush1.msra.mxu0 0.0
    %1441 = vmatprep.subr.mxu0 0.0
    %1442 = vmatpush1.msra.mxu0 0.0
    %1443 = vmatprep.subr.mxu0 0.0
    %1444 = vmatpush1.msra.mxu0 0.0
    %1445 = vmatprep.subr.mxu0 0.0
    %1446 = vmatpush1.msra.mxu0 0.0
    %1447 = vmatprep.subr.mxu0 0.0
    %1448 = vmatpush1.msra.mxu0 0.0
    %1449 = vmatprep.subr.mxu0 0.0
    %1450 = vmatpush1.msra.mxu0 0.0
    %1451 = vmatprep.subr.mxu0 0.0
    %1452 = vmatpush1.msra.mxu0 0.0
    %1453 = vmatprep.subr.mxu0 0.0
    %1454 = vmatpush1.msra.mxu0 0.0
    %1455 = vmatprep.subr.mxu0 0.0
    %1456 = vmatpush1.msra.mxu0 0.0
    %1457 = vmatprep.subr.mxu0 0.0
    %1458 = vmatpush1.msra.mxu0 0.0
    %1459 = vmatprep.mubr.f32.mxu0 0.0
    %1460 = vmatmul.mubr.f32.gmra.mrb[0].mxu0 %v1393
    %v1461 = vpop.f32.mrb[0].mxu0
    %v1462 = vadd.f32 %v1392, %v1461
    %v1463 = vpop.f32.mrb[0].mxu0
    %1464 = vdwg.mxu0
    %v1465 = vmul.f32 %v1462, 0.5
    %v1466 = vtanh.pop %v1465
    %v1467 = vmul.f32 %v1466, 0.5
    %v1468 = vadd.f32 %v1467, 0.5
    %v1469 = vtanh.pop %v1462
    %v1470 = vmul.f32 %v1468, %v1367
    %1472 = vrot.lane.b32.xlu0 %v1469, 56
    %v1473 = vpop.permute.xlu0 %1472
    %v1475 = vmul.f32 %v1468, %v1473
    %1477 = vrot.lane.b32.xlu0 %v1475, 24
    %v1478 = vpop.permute.xlu0 %1477
    %v1480 = vadd.f32 %v1470, %v1478
    %v1481 = vtanh.pop %v1480
    %1483 = vrot.lane.b32.xlu0 %v1481, 24
    %v1484 = vpop.permute.xlu0 %1483
    %v1486 = vmul.f32 %v1468, %v1484
    %1488 = vrot.lane.b32.xlu0 %v1486, 80
    %v1489 = vpop.permute.xlu0 %1488
    %s1491 = scalar_lea.vmem [#allocation3], 8
    %1492 = vst.msk [vmem:[%s1491] sm:$0xff] %vm204, %v1489
    %1493 = vrot.lane.b32.xlu0 %v1486, 68
    %v1494 = vpop.permute.xlu0 %1493
    %1496 = vrot.lane.b32.xlu0 %v1486, 92
    %v1497 = vpop.permute.xlu0 %1496
    %v1499 = vsel %vm311, %v1494, %v1497
    %1501 = vrot.lane.b32.xlu0 %v1499, 24
    %v1502 = vpop.permute.xlu0 %1501
    %s1504 = scalar_lea.vmem [#allocation3], 48
    %1505 = vst.msk [vmem:[%s1504] sm:$0xff] %vm318, %v1502
    %v1506 = vld [vmem:[%s435] sm:$0xff]
    %v1507 = vsel %vm204, %v1489, 0
    %1509 = vmatprep.subr.mxu0 0.0
    %1510 = vmatpush1.msra.mxu0 %v1278
    %1511 = vmatprep.subr.mxu0 0.0
    %1512 = vmatpush1.msra.mxu0 %v1279
    %1513 = vmatprep.subr.mxu0 0.0
    %1514 = vmatpush1.msra.mxu0 %v1280
    %1515 = vmatprep.subr.mxu0 0.0
    %1516 = vmatpush1.msra.mxu0 0.0
    %1517 = vmatprep.subr.mxu0 0.0
    %1518 = vmatpush1.msra.mxu0 0.0
    %1519 = vmatprep.subr.mxu0 0.0
    %1520 = vmatpush1.msra.mxu0 0.0
    %1521 = vmatprep.subr.mxu0 0.0
    %1522 = vmatpush1.msra.mxu0 0.0
    %1523 = vmatprep.subr.mxu0 0.0
    %1524 = vmatpush1.msra.mxu0 0.0
    %1525 = vmatprep.subr.mxu0 0.0
    %1526 = vmatpush1.msra.mxu0 0.0
    %1527 = vmatprep.subr.mxu0 0.0
    %1528 = vmatpush1.msra.mxu0 0.0
    %1529 = vmatprep.subr.mxu0 0.0
    %1530 = vmatpush1.msra.mxu0 0.0
    %1531 = vmatprep.subr.mxu0 0.0
    %1532 = vmatpush1.msra.mxu0 0.0
    %1533 = vmatprep.subr.mxu0 0.0
    %1534 = vmatpush1.msra.mxu0 0.0
    %1535 = vmatprep.subr.mxu0 0.0
    %1536 = vmatpush1.msra.mxu0 0.0
    %1537 = vmatprep.subr.mxu0 0.0
    %1538 = vmatpush1.msra.mxu0 0.0
    %1539 = vmatprep.subr.mxu0 0.0
    %1540 = vmatpush1.msra.mxu0 0.0
    %1541 = vmatprep.subr.mxu0 0.0
    %1542 = vmatpush1.msra.mxu0 0.0
    %1543 = vmatprep.subr.mxu0 0.0
    %1544 = vmatpush1.msra.mxu0 0.0
    %1545 = vmatprep.subr.mxu0 0.0
    %1546 = vmatpush1.msra.mxu0 0.0
    %1547 = vmatprep.subr.mxu0 0.0
    %1548 = vmatpush1.msra.mxu0 0.0
    %1549 = vmatprep.subr.mxu0 0.0
    %1550 = vmatpush1.msra.mxu0 0.0
    %1551 = vmatprep.subr.mxu0 0.0
    %1552 = vmatpush1.msra.mxu0 0.0
    %1553 = vmatprep.subr.mxu0 0.0
    %1554 = vmatpush1.msra.mxu0 0.0
    %1555 = vmatprep.subr.mxu0 0.0
    %1556 = vmatpush1.msra.mxu0 0.0
    %1557 = vmatprep.subr.mxu0 0.0
    %1558 = vmatpush1.msra.mxu0 0.0
    %1559 = vmatprep.subr.mxu0 0.0
    %1560 = vmatpush1.msra.mxu0 0.0
    %1561 = vmatprep.subr.mxu0 0.0
    %1562 = vmatpush1.msra.mxu0 0.0
    %1563 = vmatprep.subr.mxu0 0.0
    %1564 = vmatpush1.msra.mxu0 0.0
    %1565 = vmatprep.subr.mxu0 0.0
    %1566 = vmatpush1.msra.mxu0 0.0
    %1567 = vmatprep.subr.mxu0 0.0
    %1568 = vmatpush1.msra.mxu0 0.0
    %1569 = vmatprep.subr.mxu0 0.0
    %1570 = vmatpush1.msra.mxu0 0.0
    %1571 = vmatprep.subr.mxu0 0.0
    %1572 = vmatpush1.msra.mxu0 0.0
    %1573 = vmatprep.mubr.f32.mxu0 0.0
    %1574 = vmatmul.mubr.f32.gmra.mrb[0].mxu0 %v1507
    %v1575 = vpop.f32.mrb[0].mxu0
    %v1576 = vadd.f32 %v1506, %v1575
    %v1577 = vpop.f32.mrb[0].mxu0
    %1578 = vdwg.mxu0
    %v1579 = vmul.f32 %v1576, 0.5
    %v1580 = vtanh.pop %v1579
    %v1581 = vmul.f32 %v1580, 0.5
    %v1582 = vadd.f32 %v1581, 0.5
    %v1583 = vtanh.pop %v1576
    %v1584 = vmul.f32 %v1582, %v1480
    %1586 = vrot.lane.b32.xlu0 %v1583, 56
    %v1587 = vpop.permute.xlu0 %1586
    %v1589 = vmul.f32 %v1582, %v1587
    %1591 = vrot.lane.b32.xlu0 %v1589, 24
    %v1592 = vpop.permute.xlu0 %1591
    %v1594 = vadd.f32 %v1584, %v1592
    %v1595 = vtanh.pop %v1594
    %1597 = vrot.lane.b32.xlu0 %v1595, 24
    %v1598 = vpop.permute.xlu0 %1597
    %v1600 = vmul.f32 %v1582, %v1598
    %1602 = vrot.lane.b32.xlu0 %v1600, 80
    %v1603 = vpop.permute.xlu0 %1602
    %s1605 = scalar_lea.vmem [#allocation3], 16
    %1606 = vst.msk [vmem:[%s1605] sm:$0xff] %vm204, %v1603
    %1607 = vrot.lane.b32.xlu0 %v1600, 68
    %v1608 = vpop.permute.xlu0 %1607
    %1610 = vrot.lane.b32.xlu0 %v1600, 92
    %v1611 = vpop.permute.xlu0 %1610
    %v1613 = vsel %vm311, %v1608, %v1611
    %1615 = vrot.lane.b32.xlu0 %v1613, 24
    %v1616 = vpop.permute.xlu0 %1615
    %s1618 = scalar_lea.vmem [#allocation3], 40
    %1619 = vst.msk [vmem:[%s1618] sm:$0xff] %vm318, %v1616
    %v1620 = vld [vmem:[%s550] sm:$0xff]
    %v1621 = vsel %vm204, %v1603, 0
    %1623 = vmatprep.subr.mxu0 0.0
    %1624 = vmatpush1.msra.mxu0 %v1278
    %1625 = vmatprep.subr.mxu0 0.0
    %1626 = vmatpush1.msra.mxu0 %v1279
    %1627 = vmatprep.subr.mxu0 0.0
    %1628 = vmatpush1.msra.mxu0 %v1280
    %1629 = vmatprep.subr.mxu0 0.0
    %1630 = vmatpush1.msra.mxu0 0.0
    %1631 = vmatprep.subr.mxu0 0.0
    %1632 = vmatpush1.msra.mxu0 0.0
    %1633 = vmatprep.subr.mxu0 0.0
    %1634 = vmatpush1.msra.mxu0 0.0
    %1635 = vmatprep.subr.mxu0 0.0
    %1636 = vmatpush1.msra.mxu0 0.0
    %1637 = vmatprep.subr.mxu0 0.0
    %1638 = vmatpush1.msra.mxu0 0.0
    %1639 = vmatprep.subr.mxu0 0.0
    %1640 = vmatpush1.msra.mxu0 0.0
    %1641 = vmatprep.subr.mxu0 0.0
    %1642 = vmatpush1.msra.mxu0 0.0
    %1643 = vmatprep.subr.mxu0 0.0
    %1644 = vmatpush1.msra.mxu0 0.0
    %1645 = vmatprep.subr.mxu0 0.0
    %1646 = vmatpush1.msra.mxu0 0.0
    %1647 = vmatprep.subr.mxu0 0.0
    %1648 = vmatpush1.msra.mxu0 0.0
    %1649 = vmatprep.subr.mxu0 0.0
    %1650 = vmatpush1.msra.mxu0 0.0
    %1651 = vmatprep.subr.mxu0 0.0
    %1652 = vmatpush1.msra.mxu0 0.0
    %1653 = vmatprep.subr.mxu0 0.0
    %1654 = vmatpush1.msra.mxu0 0.0
    %1655 = vmatprep.subr.mxu0 0.0
    %1656 = vmatpush1.msra.mxu0 0.0
    %1657 = vmatprep.subr.mxu0 0.0
    %1658 = vmatpush1.msra.mxu0 0.0
    %1659 = vmatprep.subr.mxu0 0.0
    %1660 = vmatpush1.msra.mxu0 0.0
    %1661 = vmatprep.subr.mxu0 0.0
    %1662 = vmatpush1.msra.mxu0 0.0
    %1663 = vmatprep.subr.mxu0 0.0
    %1664 = vmatpush1.msra.mxu0 0.0
    %1665 = vmatprep.subr.mxu0 0.0
    %1666 = vmatpush1.msra.mxu0 0.0
    %1667 = vmatprep.subr.mxu0 0.0
    %1668 = vmatpush1.msra.mxu0 0.0
    %1669 = vmatprep.subr.mxu0 0.0
    %1670 = vmatpush1.msra.mxu0 0.0
    %1671 = vmatprep.subr.mxu0 0.0
    %1672 = vmatpush1.msra.mxu0 0.0
    %1673 = vmatprep.subr.mxu0 0.0
    %1674 = vmatpush1.msra.mxu0 0.0
    %1675 = vmatprep.subr.mxu0 0.0
    %1676 = vmatpush1.msra.mxu0 0.0
    %1677 = vmatprep.subr.mxu0 0.0
    %1678 = vmatpush1.msra.mxu0 0.0
    %1679 = vmatprep.subr.mxu0 0.0
    %1680 = vmatpush1.msra.mxu0 0.0
    %1681 = vmatprep.subr.mxu0 0.0
    %1682 = vmatpush1.msra.mxu0 0.0
    %1683 = vmatprep.subr.mxu0 0.0
    %1684 = vmatpush1.msra.mxu0 0.0
    %1685 = vmatprep.subr.mxu0 0.0
    %1686 = vmatpush1.msra.mxu0 0.0
    %1687 = vmatprep.mubr.f32.mxu0 0.0
    %1688 = vmatmul.mubr.f32.gmra.mrb[0].mxu0 %v1621
    %v1689 = vpop.f32.mrb[0].mxu0
    %v1690 = vadd.f32 %v1620, %v1689
    %v1691 = vpop.f32.mrb[0].mxu0
    %1692 = vdwg.mxu0
    %v1693 = vmul.f32 %v1690, 0.5
    %v1694 = vtanh.pop %v1693
    %v1695 = vmul.f32 %v1694, 0.5
    %v1696 = vadd.f32 %v1695, 0.5
    %v1697 = vtanh.pop %v1690
    %v1698 = vmul.f32 %v1696, %v1594
    %1700 = vrot.lane.b32.xlu0 %v1697, 56
    %v1701 = vpop.permute.xlu0 %1700
    %v1703 = vmul.f32 %v1696, %v1701
    %1705 = vrot.lane.b32.xlu0 %v1703, 24
    %v1706 = vpop.permute.xlu0 %1705
    %v1708 = vadd.f32 %v1698, %v1706
    %v1709 = vtanh.pop %v1708
    %1711 = vrot.lane.b32.xlu0 %v1709, 24
    %v1712 = vpop.permute.xlu0 %1711
    %v1714 = vmul.f32 %v1696, %v1712
    %1716 = vrot.lane.b32.xlu0 %v1714, 80
    %v1717 = vpop.permute.xlu0 %1716
    %s1719 = scalar_lea.vmem [#allocation3], 24
    %1720 = vst.msk [vmem:[%s1719] sm:$0xff] %vm204, %v1717
    %1721 = vrot.lane.b32.xlu0 %v1714, 68
    %v1722 = vpop.permute.xlu0 %1721
    %1724 = vrot.lane.b32.xlu0 %v1714, 92
    %v1725 = vpop.permute.xlu0 %1724
    %v1727 = vsel %vm311, %v1722, %v1725
    %1729 = vrot.lane.b32.xlu0 %v1727, 24
    %v1730 = vpop.permute.xlu0 %1729
    %s1732 = scalar_lea.vmem [#allocation3], 32
    %1733 = vst.msk [vmem:[%s1732] sm:$0xff] %vm318, %v1730
    %v1734 = vld [vmem:[%s665] sm:$0xff]
    %v1735 = vsel %vm204, %v1717, 0
    %1737 = vmatprep.subr.mxu0 0.0
    %1738 = vmatpush1.msra.mxu0 %v1278
    %1739 = vmatprep.subr.mxu0 0.0
    %1740 = vmatpush1.msra.mxu0 %v1279
    %1741 = vmatprep.subr.mxu0 0.0
    %1742 = vmatpush1.msra.mxu0 %v1280
    %1743 = vmatprep.subr.mxu0 0.0
    %1744 = vmatpush1.msra.mxu0 0.0
    %1745 = vmatprep.subr.mxu0 0.0
    %1746 = vmatpush1.msra.mxu0 0.0
    %1747 = vmatprep.subr.mxu0 0.0
    %1748 = vmatpush1.msra.mxu0 0.0
    %1749 = vmatprep.subr.mxu0 0.0
    %1750 = vmatpush1.msra.mxu0 0.0
    %1751 = vmatprep.subr.mxu0 0.0
    %1752 = vmatpush1.msra.mxu0 0.0
    %1753 = vmatprep.subr.mxu0 0.0
    %1754 = vmatpush1.msra.mxu0 0.0
    %1755 = vmatprep.subr.mxu0 0.0
    %1756 = vmatpush1.msra.mxu0 0.0
    %1757 = vmatprep.subr.mxu0 0.0
    %1758 = vmatpush1.msra.mxu0 0.0
    %1759 = vmatprep.subr.mxu0 0.0
    %1760 = vmatpush1.msra.mxu0 0.0
    %1761 = vmatprep.subr.mxu0 0.0
    %1762 = vmatpush1.msra.mxu0 0.0
    %1763 = vmatprep.subr.mxu0 0.0
    %1764 = vmatpush1.msra.mxu0 0.0
    %1765 = vmatprep.subr.mxu0 0.0
    %1766 = vmatpush1.msra.mxu0 0.0
    %1767 = vmatprep.subr.mxu0 0.0
    %1768 = vmatpush1.msra.mxu0 0.0
    %1769 = vmatprep.subr.mxu0 0.0
    %1770 = vmatpush1.msra.mxu0 0.0
    %1771 = vmatprep.subr.mxu0 0.0
    %1772 = vmatpush1.msra.mxu0 0.0
    %1773 = vmatprep.subr.mxu0 0.0
    %1774 = vmatpush1.msra.mxu0 0.0
    %1775 = vmatprep.subr.mxu0 0.0
    %1776 = vmatpush1.msra.mxu0 0.0
    %1777 = vmatprep.subr.mxu0 0.0
    %1778 = vmatpush1.msra.mxu0 0.0
    %1779 = vmatprep.subr.mxu0 0.0
    %1780 = vmatpush1.msra.mxu0 0.0
    %1781 = vmatprep.subr.mxu0 0.0
    %1782 = vmatpush1.msra.mxu0 0.0
    %1783 = vmatprep.subr.mxu0 0.0
    %1784 = vmatpush1.msra.mxu0 0.0
    %1785 = vmatprep.subr.mxu0 0.0
    %1786 = vmatpush1.msra.mxu0 0.0
    %1787 = vmatprep.subr.mxu0 0.0
    %1788 = vmatpush1.msra.mxu0 0.0
    %1789 = vmatprep.subr.mxu0 0.0
    %1790 = vmatpush1.msra.mxu0 0.0
    %1791 = vmatprep.subr.mxu0 0.0
    %1792 = vmatpush1.msra.mxu0 0.0
    %1793 = vmatprep.subr.mxu0 0.0
    %1794 = vmatpush1.msra.mxu0 0.0
    %1795 = vmatprep.subr.mxu0 0.0
    %1796 = vmatpush1.msra.mxu0 0.0
    %1797 = vmatprep.subr.mxu0 0.0
    %1798 = vmatpush1.msra.mxu0 0.0
    %1799 = vmatprep.subr.mxu0 0.0
    %1800 = vmatpush1.msra.mxu0 0.0
    %1801 = vmatprep.mubr.f32.mxu0 0.0
    %1802 = vmatmul.mubr.f32.gmra.mrb[0].mxu0 %v1735
    %v1803 = vpop.f32.mrb[0].mxu0
    %v1804 = vadd.f32 %v1734, %v1803
    %v1805 = vpop.f32.mrb[0].mxu0
    %1806 = vdwg.mxu0
    %v1807 = vmul.f32 %v1804, 0.5
    %v1808 = vtanh.pop %v1807
    %v1809 = vmul.f32 %v1808, 0.5
    %v1810 = vadd.f32 %v1809, 0.5
    %v1811 = vtanh.pop %v1804
    %v1812 = vmul.f32 %v1810, %v1708
    %1814 = vrot.lane.b32.xlu0 %v1811, 56
    %v1815 = vpop.permute.xlu0 %1814
    %v1817 = vmul.f32 %v1810, %v1815
    %1819 = vrot.lane.b32.xlu0 %v1817, 24
    %v1820 = vpop.permute.xlu0 %1819
    %v1822 = vadd.f32 %v1812, %v1820
    %v1823 = vtanh.pop %v1822
    %1825 = vrot.lane.b32.xlu0 %v1823, 24
    %v1826 = vpop.permute.xlu0 %1825
    %v1828 = vmul.f32 %v1810, %v1826
    %1830 = vrot.lane.b32.xlu0 %v1828, 80
    %v1831 = vpop.permute.xlu0 %1830
    %1833 = vst.msk [vmem:[%s1732] sm:$0xff] %vm204, %v1831
    %1834 = vrot.lane.b32.xlu0 %v1828, 68
    %v1835 = vpop.permute.xlu0 %1834
    %1837 = vrot.lane.b32.xlu0 %v1828, 92
    %v1838 = vpop.permute.xlu0 %1837
    %v1840 = vsel %vm311, %v1835, %v1838
    %1842 = vrot.lane.b32.xlu0 %v1840, 24
    %v1843 = vpop.permute.xlu0 %1842
    %1845 = vst.msk [vmem:[%s1719] sm:$0xff] %vm318, %v1843
    %v1846 = vld [vmem:[%s778] sm:$0xff]
    %v1847 = vsel %vm204, %v1831, 0
    %1849 = vmatprep.subr.mxu0 0.0
    %1850 = vmatpush1.msra.mxu0 %v1278
    %1851 = vmatprep.subr.mxu0 0.0
    %1852 = vmatpush1.msra.mxu0 %v1279
    %1853 = vmatprep.subr.mxu0 0.0
    %1854 = vmatpush1.msra.mxu0 %v1280
    %1855 = vmatprep.subr.mxu0 0.0
    %1856 = vmatpush1.msra.mxu0 0.0
    %1857 = vmatprep.subr.mxu0 0.0
    %1858 = vmatpush1.msra.mxu0 0.0
    %1859 = vmatprep.subr.mxu0 0.0
    %1860 = vmatpush1.msra.mxu0 0.0
    %1861 = vmatprep.subr.mxu0 0.0
    %1862 = vmatpush1.msra.mxu0 0.0
    %1863 = vmatprep.subr.mxu0 0.0
    %1864 = vmatpush1.msra.mxu0 0.0
    %1865 = vmatprep.subr.mxu0 0.0
    %1866 = vmatpush1.msra.mxu0 0.0
    %1867 = vmatprep.subr.mxu0 0.0
    %1868 = vmatpush1.msra.mxu0 0.0
    %1869 = vmatprep.subr.mxu0 0.0
    %1870 = vmatpush1.msra.mxu0 0.0
    %1871 = vmatprep.subr.mxu0 0.0
    %1872 = vmatpush1.msra.mxu0 0.0
    %1873 = vmatprep.subr.mxu0 0.0
    %1874 = vmatpush1.msra.mxu0 0.0
    %1875 = vmatprep.subr.mxu0 0.0
    %1876 = vmatpush1.msra.mxu0 0.0
    %1877 = vmatprep.subr.mxu0 0.0
    %1878 = vmatpush1.msra.mxu0 0.0
    %1879 = vmatprep.subr.mxu0 0.0
    %1880 = vmatpush1.msra.mxu0 0.0
    %1881 = vmatprep.subr.mxu0 0.0
    %1882 = vmatpush1.msra.mxu0 0.0
    %1883 = vmatprep.subr.mxu0 0.0
    %1884 = vmatpush1.msra.mxu0 0.0
    %1885 = vmatprep.subr.mxu0 0.0
    %1886 = vmatpush1.msra.mxu0 0.0
    %1887 = vmatprep.subr.mxu0 0.0
    %1888 = vmatpush1.msra.mxu0 0.0
    %1889 = vmatprep.subr.mxu0 0.0
    %1890 = vmatpush1.msra.mxu0 0.0
    %1891 = vmatprep.subr.mxu0 0.0
    %1892 = vmatpush1.msra.mxu0 0.0
    %1893 = vmatprep.subr.mxu0 0.0
    %1894 = vmatpush1.msra.mxu0 0.0
    %1895 = vmatprep.subr.mxu0 0.0
    %1896 = vmatpush1.msra.mxu0 0.0
    %1897 = vmatprep.subr.mxu0 0.0
    %1898 = vmatpush1.msra.mxu0 0.0
    %1899 = vmatprep.subr.mxu0 0.0
    %1900 = vmatpush1.msra.mxu0 0.0
    %1901 = vmatprep.subr.mxu0 0.0
    %1902 = vmatpush1.msra.mxu0 0.0
    %1903 = vmatprep.subr.mxu0 0.0
    %1904 = vmatpush1.msra.mxu0 0.0
    %1905 = vmatprep.subr.mxu0 0.0
    %1906 = vmatpush1.msra.mxu0 0.0
    %1907 = vmatprep.subr.mxu0 0.0
    %1908 = vmatpush1.msra.mxu0 0.0
    %1909 = vmatprep.subr.mxu0 0.0
    %1910 = vmatpush1.msra.mxu0 0.0
    %1911 = vmatprep.subr.mxu0 0.0
    %1912 = vmatpush1.msra.mxu0 0.0
    %1913 = vmatprep.mubr.f32.mxu0 0.0
    %1914 = vmatmul.mubr.f32.gmra.mrb[0].mxu0 %v1847
    %v1915 = vpop.f32.mrb[0].mxu0
    %v1916 = vadd.f32 %v1846, %v1915
    %v1917 = vpop.f32.mrb[0].mxu0
    %1918 = vdwg.mxu0
    %v1919 = vmul.f32 %v1916, 0.5
    %v1920 = vtanh.pop %v1919
    %v1921 = vmul.f32 %v1920, 0.5
    %v1922 = vadd.f32 %v1921, 0.5
    %v1923 = vtanh.pop %v1916
    %v1924 = vmul.f32 %v1922, %v1822
    %1926 = vrot.lane.b32.xlu0 %v1923, 56
    %v1927 = vpop.permute.xlu0 %1926
    %v1929 = vmul.f32 %v1922, %v1927
    %1931 = vrot.lane.b32.xlu0 %v1929, 24
    %v1932 = vpop.permute.xlu0 %1931
    %v1934 = vadd.f32 %v1924, %v1932
    %v1935 = vtanh.pop %v1934
    %1937 = vrot.lane.b32.xlu0 %v1935, 24
    %v1938 = vpop.permute.xlu0 %1937
    %v1940 = vmul.f32 %v1922, %v1938
    %1942 = vrot.lane.b32.xlu0 %v1940, 80
    %v1943 = vpop.permute.xlu0 %1942
    %1945 = vst.msk [vmem:[%s1618] sm:$0xff] %vm204, %v1943
    %1946 = vrot.lane.b32.xlu0 %v1940, 68
    %v1947 = vpop.permute.xlu0 %1946
    %1949 = vrot.lane.b32.xlu0 %v1940, 92
    %v1950 = vpop.permute.xlu0 %1949
    %v1952 = vsel %vm311, %v1947, %v1950
    %1954 = vrot.lane.b32.xlu0 %v1952, 24
    %v1955 = vpop.permute.xlu0 %1954
    %1957 = vst.msk [vmem:[%s1605] sm:$0xff] %vm318, %v1955
    %v1958 = vld [vmem:[%s891] sm:$0xff]
    %v1959 = vsel %vm204, %v1943, 0
    %1961 = vmatprep.subr.mxu0 0.0
    %1962 = vmatpush1.msra.mxu0 %v1278
    %1963 = vmatprep.subr.mxu0 0.0
    %1964 = vmatpush1.msra.mxu0 %v1279
    %1965 = vmatprep.subr.mxu0 0.0
    %1966 = vmatpush1.msra.mxu0 %v1280
    %1967 = vmatprep.subr.mxu0 0.0
    %1968 = vmatpush1.msra.mxu0 0.0
    %1969 = vmatprep.subr.mxu0 0.0
    %1970 = vmatpush1.msra.mxu0 0.0
    %1971 = vmatprep.subr.mxu0 0.0
    %1972 = vmatpush1.msra.mxu0 0.0
    %1973 = vmatprep.subr.mxu0 0.0
    %1974 = vmatpush1.msra.mxu0 0.0
    %1975 = vmatprep.subr.mxu0 0.0
    %1976 = vmatpush1.msra.mxu0 0.0
    %1977 = vmatprep.subr.mxu0 0.0
    %1978 = vmatpush1.msra.mxu0 0.0
    %1979 = vmatprep.subr.mxu0 0.0
    %1980 = vmatpush1.msra.mxu0 0.0
    %1981 = vmatprep.subr.mxu0 0.0
    %1982 = vmatpush1.msra.mxu0 0.0
    %1983 = vmatprep.subr.mxu0 0.0
    %1984 = vmatpush1.msra.mxu0 0.0
    %1985 = vmatprep.subr.mxu0 0.0
    %1986 = vmatpush1.msra.mxu0 0.0
    %1987 = vmatprep.subr.mxu0 0.0
    %1988 = vmatpush1.msra.mxu0 0.0
    %1989 = vmatprep.subr.mxu0 0.0
    %1990 = vmatpush1.msra.mxu0 0.0
    %1991 = vmatprep.subr.mxu0 0.0
    %1992 = vmatpush1.msra.mxu0 0.0
    %1993 = vmatprep.subr.mxu0 0.0
    %1994 = vmatpush1.msra.mxu0 0.0
    %1995 = vmatprep.subr.mxu0 0.0
    %1996 = vmatpush1.msra.mxu0 0.0
    %1997 = vmatprep.subr.mxu0 0.0
    %1998 = vmatpush1.msra.mxu0 0.0
    %1999 = vmatprep.subr.mxu0 0.0
    %2000 = vmatpush1.msra.mxu0 0.0
    %2001 = vmatprep.subr.mxu0 0.0
    %2002 = vmatpush1.msra.mxu0 0.0
    %2003 = vmatprep.subr.mxu0 0.0
    %2004 = vmatpush1.msra.mxu0 0.0
    %2005 = vmatprep.subr.mxu0 0.0
    %2006 = vmatpush1.msra.mxu0 0.0
    %2007 = vmatprep.subr.mxu0 0.0
    %2008 = vmatpush1.msra.mxu0 0.0
    %2009 = vmatprep.subr.mxu0 0.0
    %2010 = vmatpush1.msra.mxu0 0.0
    %2011 = vmatprep.subr.mxu0 0.0
    %2012 = vmatpush1.msra.mxu0 0.0
    %2013 = vmatprep.subr.mxu0 0.0
    %2014 = vmatpush1.msra.mxu0 0.0
    %2015 = vmatprep.subr.mxu0 0.0
    %2016 = vmatpush1.msra.mxu0 0.0
    %2017 = vmatprep.subr.mxu0 0.0
    %2018 = vmatpush1.msra.mxu0 0.0
    %2019 = vmatprep.subr.mxu0 0.0
    %2020 = vmatpush1.msra.mxu0 0.0
    %2021 = vmatprep.subr.mxu0 0.0
    %2022 = vmatpush1.msra.mxu0 0.0
    %2023 = vmatprep.subr.mxu0 0.0
    %2024 = vmatpush1.msra.mxu0 0.0
    %2025 = vmatprep.mubr.f32.mxu0 0.0
    %2026 = vmatmul.mubr.f32.gmra.mrb[0].mxu0 %v1959
    %v2027 = vpop.f32.mrb[0].mxu0
    %v2028 = vadd.f32 %v1958, %v2027
    %v2029 = vpop.f32.mrb[0].mxu0
    %2030 = vdwg.mxu0
    %v2031 = vmul.f32 %v2028, 0.5
    %v2032 = vtanh.pop %v2031
    %v2033 = vmul.f32 %v2032, 0.5
    %v2034 = vadd.f32 %v2033, 0.5
    %v2035 = vtanh.pop %v2028
    %v2036 = vmul.f32 %v2034, %v1934
    %2038 = vrot.lane.b32.xlu0 %v2035, 56
    %v2039 = vpop.permute.xlu0 %2038
    %v2041 = vmul.f32 %v2034, %v2039
    %2043 = vrot.lane.b32.xlu0 %v2041, 24
    %v2044 = vpop.permute.xlu0 %2043
    %v2046 = vadd.f32 %v2036, %v2044
    %v2047 = vtanh.pop %v2046
    %2049 = vrot.lane.b32.xlu0 %v2047, 24
    %v2050 = vpop.permute.xlu0 %2049
    %v2052 = vmul.f32 %v2034, %v2050
    %2054 = vrot.lane.b32.xlu0 %v2052, 80
    %v2055 = vpop.permute.xlu0 %2054
    %2057 = vst.msk [vmem:[%s1504] sm:$0xff] %vm204, %v2055
    %2058 = vrot.lane.b32.xlu0 %v2052, 68
    %v2059 = vpop.permute.xlu0 %2058
    %2061 = vrot.lane.b32.xlu0 %v2052, 92
    %v2062 = vpop.permute.xlu0 %2061
    %v2064 = vsel %vm311, %v2059, %v2062
    %2066 = vrot.lane.b32.xlu0 %v2064, 24
    %v2067 = vpop.permute.xlu0 %2066
    %2069 = vst.msk [vmem:[%s1491] sm:$0xff] %vm318, %v2067
    %v2070 = vld [vmem:[%s1004] sm:$0xff]
    %v2071 = vsel %vm204, %v2055, 0
    %2073 = vmatprep.subr.mxu0 0.0
    %2074 = vmatpush1.msra.mxu0 %v1278
    %2075 = vmatprep.subr.mxu0 0.0
    %2076 = vmatpush1.msra.mxu0 %v1279
    %2077 = vmatprep.subr.mxu0 0.0
    %2078 = vmatpush1.msra.mxu0 %v1280
    %2079 = vmatprep.subr.mxu0 0.0
    %2080 = vmatpush1.msra.mxu0 0.0
    %2081 = vmatprep.subr.mxu0 0.0
    %2082 = vmatpush1.msra.mxu0 0.0
    %2083 = vmatprep.subr.mxu0 0.0
    %2084 = vmatpush1.msra.mxu0 0.0
    %2085 = vmatprep.subr.mxu0 0.0
    %2086 = vmatpush1.msra.mxu0 0.0
    %2087 = vmatprep.subr.mxu0 0.0
    %2088 = vmatpush1.msra.mxu0 0.0
    %2089 = vmatprep.subr.mxu0 0.0
    %2090 = vmatpush1.msra.mxu0 0.0
    %2091 = vmatprep.subr.mxu0 0.0
    %2092 = vmatpush1.msra.mxu0 0.0
    %2093 = vmatprep.subr.mxu0 0.0
    %2094 = vmatpush1.msra.mxu0 0.0
    %2095 = vmatprep.subr.mxu0 0.0
    %2096 = vmatpush1.msra.mxu0 0.0
    %2097 = vmatprep.subr.mxu0 0.0
    %2098 = vmatpush1.msra.mxu0 0.0
    %2099 = vmatprep.subr.mxu0 0.0
    %2100 = vmatpush1.msra.mxu0 0.0
    %2101 = vmatprep.subr.mxu0 0.0
    %2102 = vmatpush1.msra.mxu0 0.0
    %2103 = vmatprep.subr.mxu0 0.0
    %2104 = vmatpush1.msra.mxu0 0.0
    %2105 = vmatprep.subr.mxu0 0.0
    %2106 = vmatpush1.msra.mxu0 0.0
    %2107 = vmatprep.subr.mxu0 0.0
    %2108 = vmatpush1.msra.mxu0 0.0
    %2109 = vmatprep.subr.mxu0 0.0
    %2110 = vmatpush1.msra.mxu0 0.0
    %2111 = vmatprep.subr.mxu0 0.0
    %2112 = vmatpush1.msra.mxu0 0.0
    %2113 = vmatprep.subr.mxu0 0.0
    %2114 = vmatpush1.msra.mxu0 0.0
    %2115 = vmatprep.subr.mxu0 0.0
    %2116 = vmatpush1.msra.mxu0 0.0
    %2117 = vmatprep.subr.mxu0 0.0
    %2118 = vmatpush1.msra.mxu0 0.0
    %2119 = vmatprep.subr.mxu0 0.0
    %2120 = vmatpush1.msra.mxu0 0.0
    %2121 = vmatprep.subr.mxu0 0.0
    %2122 = vmatpush1.msra.mxu0 0.0
    %2123 = vmatprep.subr.mxu0 0.0
    %2124 = vmatpush1.msra.mxu0 0.0
    %2125 = vmatprep.subr.mxu0 0.0
    %2126 = vmatpush1.msra.mxu0 0.0
    %2127 = vmatprep.subr.mxu0 0.0
    %2128 = vmatpush1.msra.mxu0 0.0
    %2129 = vmatprep.subr.mxu0 0.0
    %2130 = vmatpush1.msra.mxu0 0.0
    %2131 = vmatprep.subr.mxu0 0.0
    %2132 = vmatpush1.msra.mxu0 0.0
    %2133 = vmatprep.subr.mxu0 0.0
    %2134 = vmatpush1.msra.mxu0 0.0
    %2135 = vmatprep.subr.mxu0 0.0
    %2136 = vmatpush1.msra.mxu0 0.0
    %2137 = vmatprep.mubr.f32.mxu0 0.0
    %2138 = vmatmul.mubr.f32.gmra.mrb[0].mxu0 %v2071
    %v2139 = vpop.f32.mrb[0].mxu0
    %v2140 = vadd.f32 %v2070, %v2139
    %v2141 = vpop.f32.mrb[0].mxu0
    %2142 = vdwg.mxu0
    %v2143 = vmul.f32 %v2140, 0.5
    %v2144 = vtanh.pop %v2143
    %v2145 = vmul.f32 %v2144, 0.5
    %v2146 = vadd.f32 %v2145, 0.5
    %v2147 = vtanh.pop %v2140
    %v2148 = vmul.f32 %v2146, %v2046
    %2150 = vrot.lane.b32.xlu0 %v2147, 56
    %v2151 = vpop.permute.xlu0 %2150
    %v2153 = vmul.f32 %v2146, %v2151
    %2155 = vrot.lane.b32.xlu0 %v2153, 24
    %v2156 = vpop.permute.xlu0 %2155
    %v2158 = vadd.f32 %v2148, %v2156
    %v2159 = vtanh.pop %v2158
    %2161 = vrot.lane.b32.xlu0 %v2159, 24
    %v2162 = vpop.permute.xlu0 %2161
    %v2164 = vmul.f32 %v2146, %v2162
    %2166 = vrot.lane.b32.xlu0 %v2164, 80
    %v2167 = vpop.permute.xlu0 %2166
    %2169 = vst.msk [vmem:[%s1390] sm:$0xff] %vm204, %v2167
    %2170 = vrot.lane.b32.xlu0 %v2164, 68
    %v2171 = vpop.permute.xlu0 %2170
    %2173 = vrot.lane.b32.xlu0 %v2164, 92
    %v2174 = vpop.permute.xlu0 %2173
    %v2176 = vsel %vm311, %v2171, %v2174
    %2178 = vrot.lane.b32.xlu0 %v2176, 24
    %v2179 = vpop.permute.xlu0 %2178
    %2181 = vst.msk [vmem:[#allocation3] sm:$0xff] %vm318, %v2179
    %v2182 = vld [vmem:[#allocation3] sm:$0xff]
    %v2183 = vld [vmem:[#allocation3 + $0x8] sm:$0xff]
    %v2184 = vld [vmem:[#allocation3 + $0x10] sm:$0xff]
    %v2185 = vld [vmem:[#allocation3 + $0x18] sm:$0xff]
    %v2186 = vld [vmem:[#allocation3 + $0x20] sm:$0xff]
    %v2187 = vld [vmem:[#allocation3 + $0x28] sm:$0xff]
    %v2188 = vld [vmem:[#allocation3 + $0x30] sm:$0xff]
    %v2189 = vld [vmem:[#allocation3 + $0x38] sm:$0xff]
    %s2190 = scalar_lea.vmem [#allocation6], 96
    %v2191 = vld [vmem:[%s2190] sm:$0xff]
    %v2192 = vld [vmem:[%s2190 + $0x8] sm:$0xff]
    %v2193 = vld [vmem:[%s2190 + $0x10] sm:$0xff]
    %v2194 = vld [vmem:[%s2190 + $0x18] sm:$0xff]
    %v2195 = vld [vmem:[%s2190 + $0x20] sm:$0xff]
    %v2196 = vld [vmem:[%s2190 + $0x28] sm:$0xff]
    %s2197 = scalar_lea.vmem %s3, 2
    %v2198 = vld [vmem:[%s2197] sm:$0x1]
    %v2200 = vlaneseq
    %v2201 = vshrl.u32 %v2200, 7
    %v2202 = vsub.s32 0, %v2201
    %v2203 = vrot.slane %v2198, %v2202
    %v2206 = vsel %vm61, %v2182, 0
    %v2209 = vsel %vm61, %v2183, 0
    %v2212 = vsel %vm61, %v2184, 0
    %v2215 = vsel %vm61, %v2185, 0
    %v2218 = vsel %vm61, %v2186, 0
    %v2221 = vsel %vm61, %v2187, 0
    %v2224 = vsel %vm61, %v2188, 0
    %v2227 = vsel %vm61, %v2189, 0
    %2229 = vmatprep.subr.mxu0 0.0
    %2230 = vmatpush1.msra.mxu0 %v2191
    %2231 = vmatprep.subr.mxu0 0.0
    %2232 = vmatpush1.msra.mxu0 %v2192
    %2233 = vmatprep.subr.mxu0 0.0
    %2234 = vmatpush1.msra.mxu0 %v2193
    %2235 = vmatprep.subr.mxu0 0.0
    %2236 = vmatpush1.msra.mxu0 %v2194
    %2237 = vmatprep.subr.mxu0 0.0
    %2238 = vmatpush1.msra.mxu0 %v2195
    %2239 = vmatprep.subr.mxu0 0.0
    %2240 = vmatpush1.msra.mxu0 %v2196
    %2241 = vmatprep.subr.mxu0 0.0
    %2242 = vmatpush1.msra.mxu0 0.0
    %2243 = vmatprep.subr.mxu0 0.0
    %2244 = vmatpush1.msra.mxu0 0.0
    %2245 = vmatprep.subr.mxu0 0.0
    %2246 = vmatpush1.msra.mxu0 0.0
    %2247 = vmatprep.subr.mxu0 0.0
    %2248 = vmatpush1.msra.mxu0 0.0
    %2249 = vmatprep.subr.mxu0 0.0
    %2250 = vmatpush1.msra.mxu0 0.0
    %2251 = vmatprep.subr.mxu0 0.0
    %2252 = vmatpush1.msra.mxu0 0.0
    %2253 = vmatprep.subr.mxu0 0.0
    %2254 = vmatpush1.msra.mxu0 0.0
    %2255 = vmatprep.subr.mxu0 0.0
    %2256 = vmatpush1.msra.mxu0 0.0
    %2257 = vmatprep.subr.mxu0 0.0
    %2258 = vmatpush1.msra.mxu0 0.0
    %2259 = vmatprep.subr.mxu0 0.0
    %2260 = vmatpush1.msra.mxu0 0.0
    %2261 = vmatprep.subr.mxu0 0.0
    %2262 = vmatpush1.msra.mxu0 0.0
    %2263 = vmatprep.subr.mxu0 0.0
    %2264 = vmatpush1.msra.mxu0 0.0
    %2265 = vmatprep.subr.mxu0 0.0
    %2266 = vmatpush1.msra.mxu0 0.0
    %2267 = vmatprep.subr.mxu0 0.0
    %2268 = vmatpush1.msra.mxu0 0.0
    %2269 = vmatprep.subr.mxu0 0.0
    %2270 = vmatpush1.msra.mxu0 0.0
    %2271 = vmatprep.subr.mxu0 0.0
    %2272 = vmatpush1.msra.mxu0 0.0
    %2273 = vmatprep.subr.mxu0 0.0
    %2274 = vmatpush1.msra.mxu0 0.0
    %2275 = vmatprep.subr.mxu0 0.0
    %2276 = vmatpush1.msra.mxu0 0.0
    %2277 = vmatprep.subr.mxu0 0.0
    %2278 = vmatpush1.msra.mxu0 0.0
    %2279 = vmatprep.subr.mxu0 0.0
    %2280 = vmatpush1.msra.mxu0 0.0
    %2281 = vmatprep.subr.mxu0 0.0
    %2282 = vmatpush1.msra.mxu0 0.0
    %2283 = vmatprep.subr.mxu0 0.0
    %2284 = vmatpush1.msra.mxu0 0.0
    %2285 = vmatprep.subr.mxu0 0.0
    %2286 = vmatpush1.msra.mxu0 0.0
    %2287 = vmatprep.subr.mxu0 0.0
    %2288 = vmatpush1.msra.mxu0 0.0
    %2289 = vmatprep.subr.mxu0 0.0
    %2290 = vmatpush1.msra.mxu0 0.0
    %2291 = vmatprep.subr.mxu0 0.0
    %2292 = vmatpush1.msra.mxu0 0.0
    %2293 = vmatprep.mubr.f32.mxu0 0.0
    %2294 = vmatmul.mubr.f32.gmra.mrb[0].mxu0 %v2206
    %v2295 = vpop.f32.mrb[0].mxu0
    %v2296 = vadd.f32 %v2203, %v2295
    %v2297 = vpop.f32.mrb[0].mxu0
    %2298 = vmatprep.mubr.f32.mxu0 0.0
    %2299 = vmatmul.mubr.f32.gmra.mrb[0].mxu0 %v2209
    %v2300 = vpop.f32.mrb[0].mxu0
    %v2301 = vadd.f32 %v2203, %v2300
    %v2302 = vpop.f32.mrb[0].mxu0
    %2303 = vmatprep.mubr.f32.mxu0 0.0
    %2304 = vmatmul.mubr.f32.gmra.mrb[0].mxu0 %v2212
    %v2305 = vpop.f32.mrb[0].mxu0
    %v2306 = vadd.f32 %v2203, %v2305
    %v2307 = vpop.f32.mrb[0].mxu0
    %2308 = vmatprep.mubr.f32.mxu0 0.0
    %2309 = vmatmul.mubr.f32.gmra.mrb[0].mxu0 %v2215
    %v2310 = vpop.f32.mrb[0].mxu0
    %v2311 = vadd.f32 %v2203, %v2310
    %v2312 = vpop.f32.mrb[0].mxu0
    %2313 = vmatprep.mubr.f32.mxu0 0.0
    %2314 = vmatmul.mubr.f32.gmra.mrb[0].mxu0 %v2218
    %v2315 = vpop.f32.mrb[0].mxu0
    %v2316 = vadd.f32 %v2203, %v2315
    %v2317 = vpop.f32.mrb[0].mxu0
    %2318 = vmatprep.mubr.f32.mxu0 0.0
    %2319 = vmatmul.mubr.f32.gmra.mrb[0].mxu0 %v2221
    %v2320 = vpop.f32.mrb[0].mxu0
    %v2321 = vadd.f32 %v2203, %v2320
    %v2322 = vpop.f32.mrb[0].mxu0
    %2323 = vmatprep.mubr.f32.mxu0 0.0
    %2324 = vmatmul.mubr.f32.gmra.mrb[0].mxu0 %v2224
    %v2325 = vpop.f32.mrb[0].mxu0
    %v2326 = vadd.f32 %v2203, %v2325
    %v2327 = vpop.f32.mrb[0].mxu0
    %2328 = vmatprep.mubr.f32.mxu0 0.0
    %2329 = vmatmul.mubr.f32.gmra.mrb[0].mxu0 %v2227
    %v2330 = vpop.f32.mrb[0].mxu0
    %v2331 = vadd.f32 %v2203, %v2330
    %v2332 = vpop.f32.mrb[0].mxu0
    %2333 = vdwg.mxu0
    %2334 = vst.msk [vmem:[#allocation4] sm:$0xff] %vm191, %v2296
    %2335 = vst.msk [vmem:[#allocation4 + $0x8] sm:$0xff] %vm191, %v2301
    %2336 = vst.msk [vmem:[#allocation4 + $0x10] sm:$0xff] %vm191, %v2306
    %2337 = vst.msk [vmem:[#allocation4 + $0x18] sm:$0xff] %vm191, %v2311
    %2338 = vst.msk [vmem:[#allocation4 + $0x20] sm:$0xff] %vm191, %v2316
    %2339 = vst.msk [vmem:[#allocation4 + $0x28] sm:$0xff] %vm191, %v2321
    %2340 = vst.msk [vmem:[#allocation4 + $0x30] sm:$0xff] %vm191, %v2326
    %2341 = vst.msk [vmem:[#allocation4 + $0x38] sm:$0xff] %vm191, %v2331
    %s2342 = scalar_lea.vmem %s2, 48
    %v2343 = vld [vmem:[%s2342] sm:$0xff]
    %v2344 = vld [vmem:[%s2342 + $0x8] sm:$0xff]
    %v2345 = vld [vmem:[%s2342 + $0x10] sm:$0xff]
    %v2346 = vld [vmem:[#allocation4] sm:$0xff]
    %2347 = vmatprep.subr.mxu0 0.0
    %2348 = vmatpush1.msra.mxu0 %v2343
    %2349 = vmatprep.subr.mxu0 0.0
    %2350 = vmatpush1.msra.mxu0 %v2344
    %2351 = vmatprep.subr.mxu0 0.0
    %2352 = vmatpush1.msra.mxu0 %v2345
    %2353 = vmatprep.subr.mxu0 0.0
    %2354 = vmatpush1.msra.mxu0 0.0
    %2355 = vmatprep.subr.mxu0 0.0
    %2356 = vmatpush1.msra.mxu0 0.0
    %2357 = vmatprep.subr.mxu0 0.0
    %2358 = vmatpush1.msra.mxu0 0.0
    %2359 = vmatprep.subr.mxu0 0.0
    %2360 = vmatpush1.msra.mxu0 0.0
    %2361 = vmatprep.subr.mxu0 0.0
    %2362 = vmatpush1.msra.mxu0 0.0
    %2363 = vmatprep.subr.mxu0 0.0
    %2364 = vmatpush1.msra.mxu0 0.0
    %2365 = vmatprep.subr.mxu0 0.0
    %2366 = vmatpush1.msra.mxu0 0.0
    %2367 = vmatprep.subr.mxu0 0.0
    %2368 = vmatpush1.msra.mxu0 0.0
    %2369 = vmatprep.subr.mxu0 0.0
    %2370 = vmatpush1.msra.mxu0 0.0
    %2371 = vmatprep.subr.mxu0 0.0
    %2372 = vmatpush1.msra.mxu0 0.0
    %2373 = vmatprep.subr.mxu0 0.0
    %2374 = vmatpush1.msra.mxu0 0.0
    %2375 = vmatprep.subr.mxu0 0.0
    %2376 = vmatpush1.msra.mxu0 0.0
    %2377 = vmatprep.subr.mxu0 0.0
    %2378 = vmatpush1.msra.mxu0 0.0
    %2379 = vmatprep.subr.mxu0 0.0
    %2380 = vmatpush1.msra.mxu0 0.0
    %2381 = vmatprep.subr.mxu0 0.0
    %2382 = vmatpush1.msra.mxu0 0.0
    %2383 = vmatprep.subr.mxu0 0.0
    %2384 = vmatpush1.msra.mxu0 0.0
    %2385 = vmatprep.subr.mxu0 0.0
    %2386 = vmatpush1.msra.mxu0 0.0
    %2387 = vmatprep.subr.mxu0 0.0
    %2388 = vmatpush1.msra.mxu0 0.0
    %2389 = vmatprep.subr.mxu0 0.0
    %2390 = vmatpush1.msra.mxu0 0.0
    %2391 = vmatprep.subr.mxu0 0.0
    %2392 = vmatpush1.msra.mxu0 0.0
    %2393 = vmatprep.subr.mxu0 0.0
    %2394 = vmatpush1.msra.mxu0 0.0
    %2395 = vmatprep.subr.mxu0 0.0
    %2396 = vmatpush1.msra.mxu0 0.0
    %2397 = vmatprep.subr.mxu0 0.0
    %2398 = vmatpush1.msra.mxu0 0.0
    %2399 = vmatprep.subr.mxu0 0.0
    %2400 = vmatpush1.msra.mxu0 0.0
    %2401 = vmatprep.subr.mxu0 0.0
    %2402 = vmatpush1.msra.mxu0 0.0
    %2403 = vmatprep.subr.mxu0 0.0
    %2404 = vmatpush1.msra.mxu0 0.0
    %2405 = vmatprep.subr.mxu0 0.0
    %2406 = vmatpush1.msra.mxu0 0.0
    %2407 = vmatprep.subr.mxu0 0.0
    %2408 = vmatpush1.msra.mxu0 0.0
    %2409 = vmatprep.subr.mxu0 0.0
    %2410 = vmatpush1.msra.mxu0 0.0
    %2411 = vmatprep.mubr.f32.mxu0 0.0
    %2412 = vmatmul.mubr.f32.gmra.mrb[0].mxu0 %v206
    %v2413 = vpop.f32.mrb[0].mxu0
    %v2414 = vadd.f32 %v2346, %v2413
    %v2415 = vpop.f32.mrb[0].mxu0
    %2416 = vdwg.mxu0
    %v2417 = vmul.f32 %v2414, 0.5
    %v2418 = vtanh.pop %v2417
    %v2419 = vmul.f32 %v2418, 0.5
    %v2420 = vadd.f32 %v2419, 0.5
    %v2421 = vtanh.pop %v2414
    %v2422 = vmul.f32 %v2420, 0.0
    %2424 = vrot.lane.b32.xlu0 %v2421, 56
    %v2425 = vpop.permute.xlu0 %2424
    %v2427 = vmul.f32 %v2420, %v2425
    %2429 = vrot.lane.b32.xlu0 %v2427, 24
    %v2430 = vpop.permute.xlu0 %2429
    %v2432 = vadd.f32 %v2422, %v2430
    %v2433 = vtanh.pop %v2432
    %2435 = vrot.lane.b32.xlu0 %v2433, 24
    %v2436 = vpop.permute.xlu0 %2435
    %v2438 = vmul.f32 %v2420, %v2436
    %2440 = vrot.lane.b32.xlu0 %v2438, 80
    %v2441 = vpop.permute.xlu0 %2440
    %2443 = vst.msk [vmem:[#allocation2] sm:$0xff] %vm311, %v2441
    %vm2444 = vcmask 195680
    %2445 = vst.msk [vmem:[%s317] sm:$0xff] %vm2444, %v2441
    %v2446 = vld [vmem:[%s320] sm:$0xff]
    %v2447 = vsel %vm204, %v2441, 0
    %2449 = vmatprep.subr.mxu0 0.0
    %2450 = vmatpush1.msra.mxu0 %v2343
    %2451 = vmatprep.subr.mxu0 0.0
    %2452 = vmatpush1.msra.mxu0 %v2344
    %2453 = vmatprep.subr.mxu0 0.0
    %2454 = vmatpush1.msra.mxu0 %v2345
    %2455 = vmatprep.subr.mxu0 0.0
    %2456 = vmatpush1.msra.mxu0 0.0
    %2457 = vmatprep.subr.mxu0 0.0
    %2458 = vmatpush1.msra.mxu0 0.0
    %2459 = vmatprep.subr.mxu0 0.0
    %2460 = vmatpush1.msra.mxu0 0.0
    %2461 = vmatprep.subr.mxu0 0.0
    %2462 = vmatpush1.msra.mxu0 0.0
    %2463 = vmatprep.subr.mxu0 0.0
    %2464 = vmatpush1.msra.mxu0 0.0
    %2465 = vmatprep.subr.mxu0 0.0
    %2466 = vmatpush1.msra.mxu0 0.0
    %2467 = vmatprep.subr.mxu0 0.0
    %2468 = vmatpush1.msra.mxu0 0.0
    %2469 = vmatprep.subr.mxu0 0.0
    %2470 = vmatpush1.msra.mxu0 0.0
    %2471 = vmatprep.subr.mxu0 0.0
    %2472 = vmatpush1.msra.mxu0 0.0
    %2473 = vmatprep.subr.mxu0 0.0
    %2474 = vmatpush1.msra.mxu0 0.0
    %2475 = vmatprep.subr.mxu0 0.0
    %2476 = vmatpush1.msra.mxu0 0.0
    %2477 = vmatprep.subr.mxu0 0.0
    %2478 = vmatpush1.msra.mxu0 0.0
    %2479 = vmatprep.subr.mxu0 0.0
    %2480 = vmatpush1.msra.mxu0 0.0
    %2481 = vmatprep.subr.mxu0 0.0
    %2482 = vmatpush1.msra.mxu0 0.0
    %2483 = vmatprep.subr.mxu0 0.0
    %2484 = vmatpush1.msra.mxu0 0.0
    %2485 = vmatprep.subr.mxu0 0.0
    %2486 = vmatpush1.msra.mxu0 0.0
    %2487 = vmatprep.subr.mxu0 0.0
    %2488 = vmatpush1.msra.mxu0 0.0
    %2489 = vmatprep.subr.mxu0 0.0
    %2490 = vmatpush1.msra.mxu0 0.0
    %2491 = vmatprep.subr.mxu0 0.0
    %2492 = vmatpush1.msra.mxu0 0.0
    %2493 = vmatprep.subr.mxu0 0.0
    %2494 = vmatpush1.msra.mxu0 0.0
    %2495 = vmatprep.subr.mxu0 0.0
    %2496 = vmatpush1.msra.mxu0 0.0
    %2497 = vmatprep.subr.mxu0 0.0
    %2498 = vmatpush1.msra.mxu0 0.0
    %2499 = vmatprep.subr.mxu0 0.0
    %2500 = vmatpush1.msra.mxu0 0.0
    %2501 = vmatprep.subr.mxu0 0.0
    %2502 = vmatpush1.msra.mxu0 0.0
    %2503 = vmatprep.subr.mxu0 0.0
    %2504 = vmatpush1.msra.mxu0 0.0
    %2505 = vmatprep.subr.mxu0 0.0
    %2506 = vmatpush1.msra.mxu0 0.0
    %2507 = vmatprep.subr.mxu0 0.0
    %2508 = vmatpush1.msra.mxu0 0.0
    %2509 = vmatprep.subr.mxu0 0.0
    %2510 = vmatpush1.msra.mxu0 0.0
    %2511 = vmatprep.subr.mxu0 0.0
    %2512 = vmatpush1.msra.mxu0 0.0
    %2513 = vmatprep.mubr.f32.mxu0 0.0
    %2514 = vmatmul.mubr.f32.gmra.mrb[0].mxu0 %v2447
    %v2515 = vpop.f32.mrb[0].mxu0
    %v2516 = vadd.f32 %v2446, %v2515
    %v2517 = vpop.f32.mrb[0].mxu0
    %2518 = vdwg.mxu0
    %v2519 = vmul.f32 %v2516, 0.5
    %v2520 = vtanh.pop %v2519
    %v2521 = vmul.f32 %v2520, 0.5
    %v2522 = vadd.f32 %v2521, 0.5
    %v2523 = vtanh.pop %v2516
    %v2524 = vmul.f32 %v2522, %v2432
    %2526 = vrot.lane.b32.xlu0 %v2523, 56
    %v2527 = vpop.permute.xlu0 %2526
    %v2529 = vmul.f32 %v2522, %v2527
    %2531 = vrot.lane.b32.xlu0 %v2529, 24
    %v2532 = vpop.permute.xlu0 %2531
    %v2534 = vadd.f32 %v2524, %v2532
    %v2535 = vtanh.pop %v2534
    %2537 = vrot.lane.b32.xlu0 %v2535, 24
    %v2538 = vpop.permute.xlu0 %2537
    %v2540 = vmul.f32 %v2522, %v2538
    %2542 = vrot.lane.b32.xlu0 %v2540, 80
    %v2543 = vpop.permute.xlu0 %2542
    %2545 = vst.msk [vmem:[%s420] sm:$0xff] %vm311, %v2543
    %2546 = vst.msk [vmem:[%s433] sm:$0xff] %vm2444, %v2543
    %v2547 = vld [vmem:[%s435] sm:$0xff]
    %v2548 = vsel %vm204, %v2543, 0
    %2550 = vmatprep.subr.mxu0 0.0
    %2551 = vmatpush1.msra.mxu0 %v2343
    %2552 = vmatprep.subr.mxu0 0.0
    %2553 = vmatpush1.msra.mxu0 %v2344
    %2554 = vmatprep.subr.mxu0 0.0
    %2555 = vmatpush1.msra.mxu0 %v2345
    %2556 = vmatprep.subr.mxu0 0.0
    %2557 = vmatpush1.msra.mxu0 0.0
    %2558 = vmatprep.subr.mxu0 0.0
    %2559 = vmatpush1.msra.mxu0 0.0
    %2560 = vmatprep.subr.mxu0 0.0
    %2561 = vmatpush1.msra.mxu0 0.0
    %2562 = vmatprep.subr.mxu0 0.0
    %2563 = vmatpush1.msra.mxu0 0.0
    %2564 = vmatprep.subr.mxu0 0.0
    %2565 = vmatpush1.msra.mxu0 0.0
    %2566 = vmatprep.subr.mxu0 0.0
    %2567 = vmatpush1.msra.mxu0 0.0
    %2568 = vmatprep.subr.mxu0 0.0
    %2569 = vmatpush1.msra.mxu0 0.0
    %2570 = vmatprep.subr.mxu0 0.0
    %2571 = vmatpush1.msra.mxu0 0.0
    %2572 = vmatprep.subr.mxu0 0.0
    %2573 = vmatpush1.msra.mxu0 0.0
    %2574 = vmatprep.subr.mxu0 0.0
    %2575 = vmatpush1.msra.mxu0 0.0
    %2576 = vmatprep.subr.mxu0 0.0
    %2577 = vmatpush1.msra.mxu0 0.0
    %2578 = vmatprep.subr.mxu0 0.0
    %2579 = vmatpush1.msra.mxu0 0.0
    %2580 = vmatprep.subr.mxu0 0.0
    %2581 = vmatpush1.msra.mxu0 0.0
    %2582 = vmatprep.subr.mxu0 0.0
    %2583 = vmatpush1.msra.mxu0 0.0
    %2584 = vmatprep.subr.mxu0 0.0
    %2585 = vmatpush1.msra.mxu0 0.0
    %2586 = vmatprep.subr.mxu0 0.0
    %2587 = vmatpush1.msra.mxu0 0.0
    %2588 = vmatprep.subr.mxu0 0.0
    %2589 = vmatpush1.msra.mxu0 0.0
    %2590 = vmatprep.subr.mxu0 0.0
    %2591 = vmatpush1.msra.mxu0 0.0
    %2592 = vmatprep.subr.mxu0 0.0
    %2593 = vmatpush1.msra.mxu0 0.0
    %2594 = vmatprep.subr.mxu0 0.0
    %2595 = vmatpush1.msra.mxu0 0.0
    %2596 = vmatprep.subr.mxu0 0.0
    %2597 = vmatpush1.msra.mxu0 0.0
    %2598 = vmatprep.subr.mxu0 0.0
    %2599 = vmatpush1.msra.mxu0 0.0
    %2600 = vmatprep.subr.mxu0 0.0
    %2601 = vmatpush1.msra.mxu0 0.0
    %2602 = vmatprep.subr.mxu0 0.0
    %2603 = vmatpush1.msra.mxu0 0.0
    %2604 = vmatprep.subr.mxu0 0.0
    %2605 = vmatpush1.msra.mxu0 0.0
    %2606 = vmatprep.subr.mxu0 0.0
    %2607 = vmatpush1.msra.mxu0 0.0
    %2608 = vmatprep.subr.mxu0 0.0
    %2609 = vmatpush1.msra.mxu0 0.0
    %2610 = vmatprep.subr.mxu0 0.0
    %2611 = vmatpush1.msra.mxu0 0.0
    %2612 = vmatprep.subr.mxu0 0.0
    %2613 = vmatpush1.msra.mxu0 0.0
    %2614 = vmatprep.mubr.f32.mxu0 0.0
    %2615 = vmatmul.mubr.f32.gmra.mrb[0].mxu0 %v2548
    %v2616 = vpop.f32.mrb[0].mxu0
    %v2617 = vadd.f32 %v2547, %v2616
    %v2618 = vpop.f32.mrb[0].mxu0
    %2619 = vdwg.mxu0
    %v2620 = vmul.f32 %v2617, 0.5
    %v2621 = vtanh.pop %v2620
    %v2622 = vmul.f32 %v2621, 0.5
    %v2623 = vadd.f32 %v2622, 0.5
    %v2624 = vtanh.pop %v2617
    %v2625 = vmul.f32 %v2623, %v2534
    %2627 = vrot.lane.b32.xlu0 %v2624, 56
    %v2628 = vpop.permute.xlu0 %2627
    %v2630 = vmul.f32 %v2623, %v2628
    %2632 = vrot.lane.b32.xlu0 %v2630, 24
    %v2633 = vpop.permute.xlu0 %2632
    %v2635 = vadd.f32 %v2625, %v2633
    %v2636 = vtanh.pop %v2635
    %2638 = vrot.lane.b32.xlu0 %v2636, 24
    %v2639 = vpop.permute.xlu0 %2638
    %v2641 = vmul.f32 %v2623, %v2639
    %2643 = vrot.lane.b32.xlu0 %v2641, 80
    %v2644 = vpop.permute.xlu0 %2643
    %2646 = vst.msk [vmem:[%s535] sm:$0xff] %vm311, %v2644
    %2647 = vst.msk [vmem:[%s548] sm:$0xff] %vm2444, %v2644
    %v2648 = vld [vmem:[%s550] sm:$0xff]
    %v2649 = vsel %vm204, %v2644, 0
    %2651 = vmatprep.subr.mxu0 0.0
    %2652 = vmatpush1.msra.mxu0 %v2343
    %2653 = vmatprep.subr.mxu0 0.0
    %2654 = vmatpush1.msra.mxu0 %v2344
    %2655 = vmatprep.subr.mxu0 0.0
    %2656 = vmatpush1.msra.mxu0 %v2345
    %2657 = vmatprep.subr.mxu0 0.0
    %2658 = vmatpush1.msra.mxu0 0.0
    %2659 = vmatprep.subr.mxu0 0.0
    %2660 = vmatpush1.msra.mxu0 0.0
    %2661 = vmatprep.subr.mxu0 0.0
    %2662 = vmatpush1.msra.mxu0 0.0
    %2663 = vmatprep.subr.mxu0 0.0
    %2664 = vmatpush1.msra.mxu0 0.0
    %2665 = vmatprep.subr.mxu0 0.0
    %2666 = vmatpush1.msra.mxu0 0.0
    %2667 = vmatprep.subr.mxu0 0.0
    %2668 = vmatpush1.msra.mxu0 0.0
    %2669 = vmatprep.subr.mxu0 0.0
    %2670 = vmatpush1.msra.mxu0 0.0
    %2671 = vmatprep.subr.mxu0 0.0
    %2672 = vmatpush1.msra.mxu0 0.0
    %2673 = vmatprep.subr.mxu0 0.0
    %2674 = vmatpush1.msra.mxu0 0.0
    %2675 = vmatprep.subr.mxu0 0.0
    %2676 = vmatpush1.msra.mxu0 0.0
    %2677 = vmatprep.subr.mxu0 0.0
    %2678 = vmatpush1.msra.mxu0 0.0
    %2679 = vmatprep.subr.mxu0 0.0
    %2680 = vmatpush1.msra.mxu0 0.0
    %2681 = vmatprep.subr.mxu0 0.0
    %2682 = vmatpush1.msra.mxu0 0.0
    %2683 = vmatprep.subr.mxu0 0.0
    %2684 = vmatpush1.msra.mxu0 0.0
    %2685 = vmatprep.subr.mxu0 0.0
    %2686 = vmatpush1.msra.mxu0 0.0
    %2687 = vmatprep.subr.mxu0 0.0
    %2688 = vmatpush1.msra.mxu0 0.0
    %2689 = vmatprep.subr.mxu0 0.0
    %2690 = vmatpush1.msra.mxu0 0.0
    %2691 = vmatprep.subr.mxu0 0.0
    %2692 = vmatpush1.msra.mxu0 0.0
    %2693 = vmatprep.subr.mxu0 0.0
    %2694 = vmatpush1.msra.mxu0 0.0
    %2695 = vmatprep.subr.mxu0 0.0
    %2696 = vmatpush1.msra.mxu0 0.0
    %2697 = vmatprep.subr.mxu0 0.0
    %2698 = vmatpush1.msra.mxu0 0.0
    %2699 = vmatprep.subr.mxu0 0.0
    %2700 = vmatpush1.msra.mxu0 0.0
    %2701 = vmatprep.subr.mxu0 0.0
    %2702 = vmatpush1.msra.mxu0 0.0
    %2703 = vmatprep.subr.mxu0 0.0
    %2704 = vmatpush1.msra.mxu0 0.0
    %2705 = vmatprep.subr.mxu0 0.0
    %2706 = vmatpush1.msra.mxu0 0.0
    %2707 = vmatprep.subr.mxu0 0.0
    %2708 = vmatpush1.msra.mxu0 0.0
    %2709 = vmatprep.subr.mxu0 0.0
    %2710 = vmatpush1.msra.mxu0 0.0
    %2711 = vmatprep.subr.mxu0 0.0
    %2712 = vmatpush1.msra.mxu0 0.0
    %2713 = vmatprep.subr.mxu0 0.0
    %2714 = vmatpush1.msra.mxu0 0.0
    %2715 = vmatprep.mubr.f32.mxu0 0.0
    %2716 = vmatmul.mubr.f32.gmra.mrb[0].mxu0 %v2649
    %v2717 = vpop.f32.mrb[0].mxu0
    %v2718 = vadd.f32 %v2648, %v2717
    %v2719 = vpop.f32.mrb[0].mxu0
    %2720 = vdwg.mxu0
    %v2721 = vmul.f32 %v2718, 0.5
    %v2722 = vtanh.pop %v2721
    %v2723 = vmul.f32 %v2722, 0.5
    %v2724 = vadd.f32 %v2723, 0.5
    %v2725 = vtanh.pop %v2718
    %v2726 = vmul.f32 %v2724, %v2635
    %2728 = vrot.lane.b32.xlu0 %v2725, 56
    %v2729 = vpop.permute.xlu0 %2728
    %v2731 = vmul.f32 %v2724, %v2729
    %2733 = vrot.lane.b32.xlu0 %v2731, 24
    %v2734 = vpop.permute.xlu0 %2733
    %v2736 = vadd.f32 %v2726, %v2734
    %v2737 = vtanh.pop %v2736
    %2739 = vrot.lane.b32.xlu0 %v2737, 24
    %v2740 = vpop.permute.xlu0 %2739
    %v2742 = vmul.f32 %v2724, %v2740
    %2744 = vrot.lane.b32.xlu0 %v2742, 80
    %v2745 = vpop.permute.xlu0 %2744
    %2747 = vst.msk [vmem:[%s650] sm:$0xff] %vm311, %v2745
    %2748 = vst.msk [vmem:[%s663] sm:$0xff] %vm2444, %v2745
    %v2749 = vld [vmem:[%s665] sm:$0xff]
    %v2750 = vsel %vm204, %v2745, 0
    %2752 = vmatprep.subr.mxu0 0.0
    %2753 = vmatpush1.msra.mxu0 %v2343
    %2754 = vmatprep.subr.mxu0 0.0
    %2755 = vmatpush1.msra.mxu0 %v2344
    %2756 = vmatprep.subr.mxu0 0.0
    %2757 = vmatpush1.msra.mxu0 %v2345
    %2758 = vmatprep.subr.mxu0 0.0
    %2759 = vmatpush1.msra.mxu0 0.0
    %2760 = vmatprep.subr.mxu0 0.0
    %2761 = vmatpush1.msra.mxu0 0.0
    %2762 = vmatprep.subr.mxu0 0.0
    %2763 = vmatpush1.msra.mxu0 0.0
    %2764 = vmatprep.subr.mxu0 0.0
    %2765 = vmatpush1.msra.mxu0 0.0
    %2766 = vmatprep.subr.mxu0 0.0
    %2767 = vmatpush1.msra.mxu0 0.0
    %2768 = vmatprep.subr.mxu0 0.0
    %2769 = vmatpush1.msra.mxu0 0.0
    %2770 = vmatprep.subr.mxu0 0.0
    %2771 = vmatpush1.msra.mxu0 0.0
    %2772 = vmatprep.subr.mxu0 0.0
    %2773 = vmatpush1.msra.mxu0 0.0
    %2774 = vmatprep.subr.mxu0 0.0
    %2775 = vmatpush1.msra.mxu0 0.0
    %2776 = vmatprep.subr.mxu0 0.0
    %2777 = vmatpush1.msra.mxu0 0.0
    %2778 = vmatprep.subr.mxu0 0.0
    %2779 = vmatpush1.msra.mxu0 0.0
    %2780 = vmatprep.subr.mxu0 0.0
    %2781 = vmatpush1.msra.mxu0 0.0
    %2782 = vmatprep.subr.mxu0 0.0
    %2783 = vmatpush1.msra.mxu0 0.0
    %2784 = vmatprep.subr.mxu0 0.0
    %2785 = vmatpush1.msra.mxu0 0.0
    %2786 = vmatprep.subr.mxu0 0.0
    %2787 = vmatpush1.msra.mxu0 0.0
    %2788 = vmatprep.subr.mxu0 0.0
    %2789 = vmatpush1.msra.mxu0 0.0
    %2790 = vmatprep.subr.mxu0 0.0
    %2791 = vmatpush1.msra.mxu0 0.0
    %2792 = vmatprep.subr.mxu0 0.0
    %2793 = vmatpush1.msra.mxu0 0.0
    %2794 = vmatprep.subr.mxu0 0.0
    %2795 = vmatpush1.msra.mxu0 0.0
    %2796 = vmatprep.subr.mxu0 0.0
    %2797 = vmatpush1.msra.mxu0 0.0
    %2798 = vmatprep.subr.mxu0 0.0
    %2799 = vmatpush1.msra.mxu0 0.0
    %2800 = vmatprep.subr.mxu0 0.0
    %2801 = vmatpush1.msra.mxu0 0.0
    %2802 = vmatprep.subr.mxu0 0.0
    %2803 = vmatpush1.msra.mxu0 0.0
    %2804 = vmatprep.subr.mxu0 0.0
    %2805 = vmatpush1.msra.mxu0 0.0
    %2806 = vmatprep.subr.mxu0 0.0
    %2807 = vmatpush1.msra.mxu0 0.0
    %2808 = vmatprep.subr.mxu0 0.0
    %2809 = vmatpush1.msra.mxu0 0.0
    %2810 = vmatprep.subr.mxu0 0.0
    %2811 = vmatpush1.msra.mxu0 0.0
    %2812 = vmatprep.subr.mxu0 0.0
    %2813 = vmatpush1.msra.mxu0 0.0
    %2814 = vmatprep.subr.mxu0 0.0
    %2815 = vmatpush1.msra.mxu0 0.0
    %2816 = vmatprep.mubr.f32.mxu0 0.0
    %2817 = vmatmul.mubr.f32.gmra.mrb[0].mxu0 %v2750
    %v2818 = vpop.f32.mrb[0].mxu0
    %v2819 = vadd.f32 %v2749, %v2818
    %v2820 = vpop.f32.mrb[0].mxu0
    %2821 = vdwg.mxu0
    %v2822 = vmul.f32 %v2819, 0.5
    %v2823 = vtanh.pop %v2822
    %v2824 = vmul.f32 %v2823, 0.5
    %v2825 = vadd.f32 %v2824, 0.5
    %v2826 = vtanh.pop %v2819
    %v2827 = vmul.f32 %v2825, %v2736
    %2829 = vrot.lane.b32.xlu0 %v2826, 56
    %v2830 = vpop.permute.xlu0 %2829
    %v2832 = vmul.f32 %v2825, %v2830
    %2834 = vrot.lane.b32.xlu0 %v2832, 24
    %v2835 = vpop.permute.xlu0 %2834
    %v2837 = vadd.f32 %v2827, %v2835
    %v2838 = vtanh.pop %v2837
    %2840 = vrot.lane.b32.xlu0 %v2838, 24
    %v2841 = vpop.permute.xlu0 %2840
    %v2843 = vmul.f32 %v2825, %v2841
    %2845 = vrot.lane.b32.xlu0 %v2843, 80
    %v2846 = vpop.permute.xlu0 %2845
    %2848 = vst.msk [vmem:[%s663] sm:$0xff] %vm311, %v2846
    %2849 = vst.msk [vmem:[%s650] sm:$0xff] %vm2444, %v2846
    %v2850 = vld [vmem:[%s778] sm:$0xff]
    %v2851 = vsel %vm204, %v2846, 0
    %2853 = vmatprep.subr.mxu0 0.0
    %2854 = vmatpush1.msra.mxu0 %v2343
    %2855 = vmatprep.subr.mxu0 0.0
    %2856 = vmatpush1.msra.mxu0 %v2344
    %2857 = vmatprep.subr.mxu0 0.0
    %2858 = vmatpush1.msra.mxu0 %v2345
    %2859 = vmatprep.subr.mxu0 0.0
    %2860 = vmatpush1.msra.mxu0 0.0
    %2861 = vmatprep.subr.mxu0 0.0
    %2862 = vmatpush1.msra.mxu0 0.0
    %2863 = vmatprep.subr.mxu0 0.0
    %2864 = vmatpush1.msra.mxu0 0.0
    %2865 = vmatprep.subr.mxu0 0.0
    %2866 = vmatpush1.msra.mxu0 0.0
    %2867 = vmatprep.subr.mxu0 0.0
    %2868 = vmatpush1.msra.mxu0 0.0
    %2869 = vmatprep.subr.mxu0 0.0
    %2870 = vmatpush1.msra.mxu0 0.0
    %2871 = vmatprep.subr.mxu0 0.0
    %2872 = vmatpush1.msra.mxu0 0.0
    %2873 = vmatprep.subr.mxu0 0.0
    %2874 = vmatpush1.msra.mxu0 0.0
    %2875 = vmatprep.subr.mxu0 0.0
    %2876 = vmatpush1.msra.mxu0 0.0
    %2877 = vmatprep.subr.mxu0 0.0
    %2878 = vmatpush1.msra.mxu0 0.0
    %2879 = vmatprep.subr.mxu0 0.0
    %2880 = vmatpush1.msra.mxu0 0.0
    %2881 = vmatprep.subr.mxu0 0.0
    %2882 = vmatpush1.msra.mxu0 0.0
    %2883 = vmatprep.subr.mxu0 0.0
    %2884 = vmatpush1.msra.mxu0 0.0
    %2885 = vmatprep.subr.mxu0 0.0
    %2886 = vmatpush1.msra.mxu0 0.0
    %2887 = vmatprep.subr.mxu0 0.0
    %2888 = vmatpush1.msra.mxu0 0.0
    %2889 = vmatprep.subr.mxu0 0.0
    %2890 = vmatpush1.msra.mxu0 0.0
    %2891 = vmatprep.subr.mxu0 0.0
    %2892 = vmatpush1.msra.mxu0 0.0
    %2893 = vmatprep.subr.mxu0 0.0
    %2894 = vmatpush1.msra.mxu0 0.0
    %2895 = vmatprep.subr.mxu0 0.0
    %2896 = vmatpush1.msra.mxu0 0.0
    %2897 = vmatprep.subr.mxu0 0.0
    %2898 = vmatpush1.msra.mxu0 0.0
    %2899 = vmatprep.subr.mxu0 0.0
    %2900 = vmatpush1.msra.mxu0 0.0
    %2901 = vmatprep.subr.mxu0 0.0
    %2902 = vmatpush1.msra.mxu0 0.0
    %2903 = vmatprep.subr.mxu0 0.0
    %2904 = vmatpush1.msra.mxu0 0.0
    %2905 = vmatprep.subr.mxu0 0.0
    %2906 = vmatpush1.msra.mxu0 0.0
    %2907 = vmatprep.subr.mxu0 0.0
    %2908 = vmatpush1.msra.mxu0 0.0
    %2909 = vmatprep.subr.mxu0 0.0
    %2910 = vmatpush1.msra.mxu0 0.0
    %2911 = vmatprep.subr.mxu0 0.0
    %2912 = vmatpush1.msra.mxu0 0.0
    %2913 = vmatprep.subr.mxu0 0.0
    %2914 = vmatpush1.msra.mxu0 0.0
    %2915 = vmatprep.subr.mxu0 0.0
    %2916 = vmatpush1.msra.mxu0 0.0
    %2917 = vmatprep.mubr.f32.mxu0 0.0
    %2918 = vmatmul.mubr.f32.gmra.mrb[0].mxu0 %v2851
    %v2919 = vpop.f32.mrb[0].mxu0
    %v2920 = vadd.f32 %v2850, %v2919
    %v2921 = vpop.f32.mrb[0].mxu0
    %2922 = vdwg.mxu0
    %v2923 = vmul.f32 %v2920, 0.5
    %v2924 = vtanh.pop %v2923
    %v2925 = vmul.f32 %v2924, 0.5
    %v2926 = vadd.f32 %v2925, 0.5
    %v2927 = vtanh.pop %v2920
    %v2928 = vmul.f32 %v2926, %v2837
    %2930 = vrot.lane.b32.xlu0 %v2927, 56
    %v2931 = vpop.permute.xlu0 %2930
    %v2933 = vmul.f32 %v2926, %v2931
    %2935 = vrot.lane.b32.xlu0 %v2933, 24
    %v2936 = vpop.permute.xlu0 %2935
    %v2938 = vadd.f32 %v2928, %v2936
    %v2939 = vtanh.pop %v2938
    %2941 = vrot.lane.b32.xlu0 %v2939, 24
    %v2942 = vpop.permute.xlu0 %2941
    %v2944 = vmul.f32 %v2926, %v2942
    %2946 = vrot.lane.b32.xlu0 %v2944, 80
    %v2947 = vpop.permute.xlu0 %2946
    %2949 = vst.msk [vmem:[%s548] sm:$0xff] %vm311, %v2947
    %2950 = vst.msk [vmem:[%s535] sm:$0xff] %vm2444, %v2947
    %v2951 = vld [vmem:[%s891] sm:$0xff]
    %v2952 = vsel %vm204, %v2947, 0
    %2954 = vmatprep.subr.mxu0 0.0
    %2955 = vmatpush1.msra.mxu0 %v2343
    %2956 = vmatprep.subr.mxu0 0.0
    %2957 = vmatpush1.msra.mxu0 %v2344
    %2958 = vmatprep.subr.mxu0 0.0
    %2959 = vmatpush1.msra.mxu0 %v2345
    %2960 = vmatprep.subr.mxu0 0.0
    %2961 = vmatpush1.msra.mxu0 0.0
    %2962 = vmatprep.subr.mxu0 0.0
    %2963 = vmatpush1.msra.mxu0 0.0
    %2964 = vmatprep.subr.mxu0 0.0
    %2965 = vmatpush1.msra.mxu0 0.0
    %2966 = vmatprep.subr.mxu0 0.0
    %2967 = vmatpush1.msra.mxu0 0.0
    %2968 = vmatprep.subr.mxu0 0.0
    %2969 = vmatpush1.msra.mxu0 0.0
    %2970 = vmatprep.subr.mxu0 0.0
    %2971 = vmatpush1.msra.mxu0 0.0
    %2972 = vmatprep.subr.mxu0 0.0
    %2973 = vmatpush1.msra.mxu0 0.0
    %2974 = vmatprep.subr.mxu0 0.0
    %2975 = vmatpush1.msra.mxu0 0.0
    %2976 = vmatprep.subr.mxu0 0.0
    %2977 = vmatpush1.msra.mxu0 0.0
    %2978 = vmatprep.subr.mxu0 0.0
    %2979 = vmatpush1.msra.mxu0 0.0
    %2980 = vmatprep.subr.mxu0 0.0
    %2981 = vmatpush1.msra.mxu0 0.0
    %2982 = vmatprep.subr.mxu0 0.0
    %2983 = vmatpush1.msra.mxu0 0.0
    %2984 = vmatprep.subr.mxu0 0.0
    %2985 = vmatpush1.msra.mxu0 0.0
    %2986 = vmatprep.subr.mxu0 0.0
    %2987 = vmatpush1.msra.mxu0 0.0
    %2988 = vmatprep.subr.mxu0 0.0
    %2989 = vmatpush1.msra.mxu0 0.0
    %2990 = vmatprep.subr.mxu0 0.0
    %2991 = vmatpush1.msra.mxu0 0.0
    %2992 = vmatprep.subr.mxu0 0.0
    %2993 = vmatpush1.msra.mxu0 0.0
    %2994 = vmatprep.subr.mxu0 0.0
    %2995 = vmatpush1.msra.mxu0 0.0
    %2996 = vmatprep.subr.mxu0 0.0
    %2997 = vmatpush1.msra.mxu0 0.0
    %2998 = vmatprep.subr.mxu0 0.0
    %2999 = vmatpush1.msra.mxu0 0.0
    %3000 = vmatprep.subr.mxu0 0.0
    %3001 = vmatpush1.msra.mxu0 0.0
    %3002 = vmatprep.subr.mxu0 0.0
    %3003 = vmatpush1.msra.mxu0 0.0
    %3004 = vmatprep.subr.mxu0 0.0
    %3005 = vmatpush1.msra.mxu0 0.0
    %3006 = vmatprep.subr.mxu0 0.0
    %3007 = vmatpush1.msra.mxu0 0.0
    %3008 = vmatprep.subr.mxu0 0.0
    %3009 = vmatpush1.msra.mxu0 0.0
    %3010 = vmatprep.subr.mxu0 0.0
    %3011 = vmatpush1.msra.mxu0 0.0
    %3012 = vmatprep.subr.mxu0 0.0
    %3013 = vmatpush1.msra.mxu0 0.0
    %3014 = vmatprep.subr.mxu0 0.0
    %3015 = vmatpush1.msra.mxu0 0.0
    %3016 = vmatprep.subr.mxu0 0.0
    %3017 = vmatpush1.msra.mxu0 0.0
    %3018 = vmatprep.mubr.f32.mxu0 0.0
    %3019 = vmatmul.mubr.f32.gmra.mrb[0].mxu0 %v2952
    %v3020 = vpop.f32.mrb[0].mxu0
    %v3021 = vadd.f32 %v2951, %v3020
    %v3022 = vpop.f32.mrb[0].mxu0
    %3023 = vdwg.mxu0
    %v3024 = vmul.f32 %v3021, 0.5
    %v3025 = vtanh.pop %v3024
    %v3026 = vmul.f32 %v3025, 0.5
    %v3027 = vadd.f32 %v3026, 0.5
    %v3028 = vtanh.pop %v3021
    %v3029 = vmul.f32 %v3027, %v2938
    %3031 = vrot.lane.b32.xlu0 %v3028, 56
    %v3032 = vpop.permute.xlu0 %3031
    %v3034 = vmul.f32 %v3027, %v3032
    %3036 = vrot.lane.b32.xlu0 %v3034, 24
    %v3037 = vpop.permute.xlu0 %3036
    %v3039 = vadd.f32 %v3029, %v3037
    %v3040 = vtanh.pop %v3039
    %3042 = vrot.lane.b32.xlu0 %v3040, 24
    %v3043 = vpop.permute.xlu0 %3042
    %v3045 = vmul.f32 %v3027, %v3043
    %3047 = vrot.lane.b32.xlu0 %v3045, 80
    %v3048 = vpop.permute.xlu0 %3047
    %3050 = vst.msk [vmem:[%s433] sm:$0xff] %vm311, %v3048
    %3051 = vst.msk [vmem:[%s420] sm:$0xff] %vm2444, %v3048
    %v3052 = vld [vmem:[%s1004] sm:$0xff]
    %v3053 = vsel %vm204, %v3048, 0
    %3055 = vmatprep.subr.mxu0 0.0
    %3056 = vmatpush1.msra.mxu0 %v2343
    %3057 = vmatprep.subr.mxu0 0.0
    %3058 = vmatpush1.msra.mxu0 %v2344
    %3059 = vmatprep.subr.mxu0 0.0
    %3060 = vmatpush1.msra.mxu0 %v2345
    %3061 = vmatprep.subr.mxu0 0.0
    %3062 = vmatpush1.msra.mxu0 0.0
    %3063 = vmatprep.subr.mxu0 0.0
    %3064 = vmatpush1.msra.mxu0 0.0
    %3065 = vmatprep.subr.mxu0 0.0
    %3066 = vmatpush1.msra.mxu0 0.0
    %3067 = vmatprep.subr.mxu0 0.0
    %3068 = vmatpush1.msra.mxu0 0.0
    %3069 = vmatprep.subr.mxu0 0.0
    %3070 = vmatpush1.msra.mxu0 0.0
    %3071 = vmatprep.subr.mxu0 0.0
    %3072 = vmatpush1.msra.mxu0 0.0
    %3073 = vmatprep.subr.mxu0 0.0
    %3074 = vmatpush1.msra.mxu0 0.0
    %3075 = vmatprep.subr.mxu0 0.0
    %3076 = vmatpush1.msra.mxu0 0.0
    %3077 = vmatprep.subr.mxu0 0.0
    %3078 = vmatpush1.msra.mxu0 0.0
    %3079 = vmatprep.subr.mxu0 0.0
    %3080 = vmatpush1.msra.mxu0 0.0
    %3081 = vmatprep.subr.mxu0 0.0
    %3082 = vmatpush1.msra.mxu0 0.0
    %3083 = vmatprep.subr.mxu0 0.0
    %3084 = vmatpush1.msra.mxu0 0.0
    %3085 = vmatprep.subr.mxu0 0.0
    %3086 = vmatpush1.msra.mxu0 0.0
    %3087 = vmatprep.subr.mxu0 0.0
    %3088 = vmatpush1.msra.mxu0 0.0
    %3089 = vmatprep.subr.mxu0 0.0
    %3090 = vmatpush1.msra.mxu0 0.0
    %3091 = vmatprep.subr.mxu0 0.0
    %3092 = vmatpush1.msra.mxu0 0.0
    %3093 = vmatprep.subr.mxu0 0.0
    %3094 = vmatpush1.msra.mxu0 0.0
    %3095 = vmatprep.subr.mxu0 0.0
    %3096 = vmatpush1.msra.mxu0 0.0
    %3097 = vmatprep.subr.mxu0 0.0
    %3098 = vmatpush1.msra.mxu0 0.0
    %3099 = vmatprep.subr.mxu0 0.0
    %3100 = vmatpush1.msra.mxu0 0.0
    %3101 = vmatprep.subr.mxu0 0.0
    %3102 = vmatpush1.msra.mxu0 0.0
    %3103 = vmatprep.subr.mxu0 0.0
    %3104 = vmatpush1.msra.mxu0 0.0
    %3105 = vmatprep.subr.mxu0 0.0
    %3106 = vmatpush1.msra.mxu0 0.0
    %3107 = vmatprep.subr.mxu0 0.0
    %3108 = vmatpush1.msra.mxu0 0.0
    %3109 = vmatprep.subr.mxu0 0.0
    %3110 = vmatpush1.msra.mxu0 0.0
    %3111 = vmatprep.subr.mxu0 0.0
    %3112 = vmatpush1.msra.mxu0 0.0
    %3113 = vmatprep.subr.mxu0 0.0
    %3114 = vmatpush1.msra.mxu0 0.0
    %3115 = vmatprep.subr.mxu0 0.0
    %3116 = vmatpush1.msra.mxu0 0.0
    %3117 = vmatprep.subr.mxu0 0.0
    %3118 = vmatpush1.msra.mxu0 0.0
    %3119 = vmatprep.mubr.f32.mxu0 0.0
    %3120 = vmatmul.mubr.f32.gmra.mrb[0].mxu0 %v3053
    %v3121 = vpop.f32.mrb[0].mxu0
    %v3122 = vadd.f32 %v3052, %v3121
    %v3123 = vpop.f32.mrb[0].mxu0
    %3124 = vdwg.mxu0
    %v3125 = vmul.f32 %v3122, 0.5
    %v3126 = vtanh.pop %v3125
    %v3127 = vmul.f32 %v3126, 0.5
    %v3128 = vadd.f32 %v3127, 0.5
    %v3129 = vtanh.pop %v3122
    %v3130 = vmul.f32 %v3128, %v3039
    %3132 = vrot.lane.b32.xlu0 %v3129, 56
    %v3133 = vpop.permute.xlu0 %3132
    %v3135 = vmul.f32 %v3128, %v3133
    %3137 = vrot.lane.b32.xlu0 %v3135, 24
    %v3138 = vpop.permute.xlu0 %3137
    %v3140 = vadd.f32 %v3130, %v3138
    %v3141 = vtanh.pop %v3140
    %3143 = vrot.lane.b32.xlu0 %v3141, 24
    %v3144 = vpop.permute.xlu0 %3143
    %v3146 = vmul.f32 %v3128, %v3144
    %3148 = vrot.lane.b32.xlu0 %v3146, 80
    %v3149 = vpop.permute.xlu0 %3148
    %3151 = vst.msk [vmem:[%s317] sm:$0xff] %vm311, %v3149
    %3152 = vst.msk [vmem:[#allocation2] sm:$0xff] %vm2444, %v3149
    %v3153 = vld [vmem:[#allocation2] sm:$0xff]
    %v3154 = vld [vmem:[#allocation2 + $0x8] sm:$0xff]
    %v3155 = vld [vmem:[#allocation2 + $0x10] sm:$0xff]
    %v3156 = vld [vmem:[#allocation2 + $0x18] sm:$0xff]
    %v3157 = vld [vmem:[#allocation2 + $0x20] sm:$0xff]
    %v3158 = vld [vmem:[#allocation2 + $0x28] sm:$0xff]
    %v3159 = vld [vmem:[#allocation2 + $0x30] sm:$0xff]
    %v3160 = vld [vmem:[#allocation2 + $0x38] sm:$0xff]
    %v3161 = vld [vmem:[%s4] sm:$0xff]
    %v3163 = vsel %vm204, %v3161, 0
    %v3166 = vsel %vm204, %v3153, 0
    %v3169 = vsel %vm204, %v3154, 0
    %v3172 = vsel %vm204, %v3155, 0
    %v3175 = vsel %vm204, %v3156, 0
    %v3178 = vsel %vm204, %v3157, 0
    %v3181 = vsel %vm204, %v3158, 0
    %v3184 = vsel %vm204, %v3159, 0
    %v3187 = vsel %vm204, %v3160, 0
    %3189 = vmatprep.subr.mxu0 0.0
    %3190 = vmatpush1.xpose.msra.mxu0 %v3166
    %3191 = vmatprep.subr.mxu0 0.0
    %3192 = vmatpush1.xpose.msra.mxu0 %v3169
    %3193 = vmatprep.subr.mxu0 0.0
    %3194 = vmatpush1.xpose.msra.mxu0 %v3172
    %3195 = vmatprep.subr.mxu0 0.0
    %3196 = vmatpush1.xpose.msra.mxu0 %v3175
    %3197 = vmatprep.subr.mxu0 0.0
    %3198 = vmatpush1.xpose.msra.mxu0 %v3178
    %3199 = vmatprep.subr.mxu0 0.0
    %3200 = vmatpush1.xpose.msra.mxu0 %v3181
    %3201 = vmatprep.subr.mxu0 0.0
    %3202 = vmatpush1.xpose.msra.mxu0 %v3184
    %3203 = vmatprep.subr.mxu0 0.0
    %3204 = vmatpush1.xpose.msra.mxu0 %v3187
    %3205 = vmatprep.subr.mxu0 0.0
    %3206 = vmatpush1.xpose.msra.mxu0 0.0
    %3207 = vmatprep.subr.mxu0 0.0
    %3208 = vmatpush1.xpose.msra.mxu0 0.0
    %3209 = vmatprep.subr.mxu0 0.0
    %3210 = vmatpush1.xpose.msra.mxu0 0.0
    %3211 = vmatprep.subr.mxu0 0.0
    %3212 = vmatpush1.xpose.msra.mxu0 0.0
    %3213 = vmatprep.subr.mxu0 0.0
    %3214 = vmatpush1.xpose.msra.mxu0 0.0
    %3215 = vmatprep.subr.mxu0 0.0
    %3216 = vmatpush1.xpose.msra.mxu0 0.0
    %3217 = vmatprep.subr.mxu0 0.0
    %3218 = vmatpush1.xpose.msra.mxu0 0.0
    %3219 = vmatprep.subr.mxu0 0.0
    %3220 = vmatpush1.xpose.msra.mxu0 0.0
    %3221 = vmatprep.subr.mxu0 0.0
    %3222 = vmatpush1.xpose.msra.mxu0 0.0
    %3223 = vmatprep.subr.mxu0 0.0
    %3224 = vmatpush1.xpose.msra.mxu0 0.0
    %3225 = vmatprep.subr.mxu0 0.0
    %3226 = vmatpush1.xpose.msra.mxu0 0.0
    %3227 = vmatprep.subr.mxu0 0.0
    %3228 = vmatpush1.xpose.msra.mxu0 0.0
    %3229 = vmatprep.subr.mxu0 0.0
    %3230 = vmatpush1.xpose.msra.mxu0 0.0
    %3231 = vmatprep.subr.mxu0 0.0
    %3232 = vmatpush1.xpose.msra.mxu0 0.0
    %3233 = vmatprep.subr.mxu0 0.0
    %3234 = vmatpush1.xpose.msra.mxu0 0.0
    %3235 = vmatprep.subr.mxu0 0.0
    %3236 = vmatpush1.xpose.msra.mxu0 0.0
    %3237 = vmatprep.subr.mxu0 0.0
    %3238 = vmatpush1.xpose.msra.mxu0 0.0
    %3239 = vmatprep.subr.mxu0 0.0
    %3240 = vmatpush1.xpose.msra.mxu0 0.0
    %3241 = vmatprep.subr.mxu0 0.0
    %3242 = vmatpush1.xpose.msra.mxu0 0.0
    %3243 = vmatprep.subr.mxu0 0.0
    %3244 = vmatpush1.xpose.msra.mxu0 0.0
    %3245 = vmatprep.subr.mxu0 0.0
    %3246 = vmatpush1.xpose.msra.mxu0 0.0
    %3247 = vmatprep.subr.mxu0 0.0
    %3248 = vmatpush1.xpose.msra.mxu0 0.0
    %3249 = vmatprep.subr.mxu0 0.0
    %3250 = vmatpush1.xpose.msra.mxu0 0.0
    %3251 = vmatprep.subr.mxu0 0.0
    %3252 = vmatpush1.xpose.msra.mxu0 0.0
    %3253 = vmatprep.mubr.f32.mxu0 0.0
    %3254 = vmatmul.mubr.f32.gmra.mrb[0].mxu0 %v3163
    %v3255 = vpop.f32.mrb[0].mxu0
    %v3256 = vadd.f32 0.0, %v3255
    %v3257 = vpop.f32.mrb[0].mxu0
    %3258 = vdwg.mxu0
    %v3259 = vld [vmem:[#allocation5] sm:$0x1]
    %s3260 = vtos %v3259
    %v3261 = vstv %s3260
    %v3262 = vadd.f32 %v3256, %v3261
    %v3263 = vxor.u32 %v3262, 2147483648
    %v3264 = vmul.f32 %v3263, 1.442695
    %v3265 = vpow.pop %v3264
    %v3266 = vadd.f32 %v3265, 1.0
    %v3267 = vrcp.pop %v3266
    %v3268 = vmul.f32 1.0, %v3267
    %vm3269 = vcmask 516096
    %3270 = vst.msk [vmem:[#allocation9] sm:$0x1] %vm3269, %v3268
    // Predicated region
    $region30: #{tpu_custom_call.1} parent=1 // pred_check
      _
    $region31: #{tpu_custom_call.1} parent=1 // pred_check_branch
      %3272 = sbr.rel (0) target = $region33
    $region32: #{tpu_custom_call.1} parent=1 // pred_region
      %s3274 = ssub.s32 16, 16
      %3275 = vsyncadd [#allocation8], %s3274
      %s3277 = sshll.u32 [#allocation9], 4
      %s3278 = int_to_ptr.vmem [resolvable:$true] %s3277
      %3280 = dma.vmem_to_hbm [thread:$0]  %s3278, 16, %s6, [#allocation8]
    $region33: #{tpu_custom_call.1} parent=1 // pred_fallthru
      _
    // Predicated region
    $region34: #{tpu_custom_call.1} parent=1 // pred_check
      _
    $region35: #{tpu_custom_call.1} parent=1 // pred_check_branch
      %3282 = sbr.rel (0) target = $region37
    $region36: #{tpu_custom_call.1} parent=1 // pred_region
      %3283 = dma.done [#allocation8], 16
    $region37: #{tpu_custom_call.1} parent=1 // pred_fallthru
      _
    %3284 = vsyncpa [#allocation7], 1
    %3285 = vsyncpa [#allocation8], 1

</llo_original>
